<compile_context>
chip_gen: v6e
topology: v6e:2x2x1
jax: 0.10.0
libtpu: 0.0.40
codegen_flags: <defaults>
</compile_context>

<pallas_src>
import math

import jax
import jax.numpy as jnp
from jax.experimental import pallas as pl
from jax.experimental.pallas import tpu as pltpu

# ----------------------------- small config ---------------------------------
HIDDEN = 32          # config.hidden_size
NUM_HEADS = 4
HEAD_DIM = HIDDEN // NUM_HEADS
MLP_DIM = 64         # config.transformer.mlp_dim
NUM_LAYERS = 2       # config.transformer.num_layers
PATCH = 4            # config.patches.size
IMG = 16             # img_size
IN_CH = 4            # input channels
N_PATCHES = (IMG // PATCH) ** 2
N_TEXT = 8           # number of text (Index) tokens
SEQ = N_PATCHES + N_TEXT
LN_EPS = 1e-6
ATTN_SCALE = 1.0 / math.sqrt(HEAD_DIM)
DTYPE = jnp.float32
WDTYPE = jnp.bfloat16   # matmul operand dtype (accumulation stays f32)


# --------------------------- in-kernel helpers -------------------------------
def _erf(x):
    # Abramowitz & Stegun 7.1.26 polynomial (|err| < 1.5e-7); VPU/EUP-only ops.
    a1, a2, a3, a4, a5 = (0.254829592, -0.284496736, 1.421413741,
                          -1.453152027, 1.061405429)
    pcoef = 0.3275911
    ax = jnp.abs(x)
    # EUP reciprocal instead of a VALU divide (error << bf16 matmul rounding).
    t = pl.reciprocal(1.0 + pcoef * ax, approx=True)
    poly = t * (a1 + t * (a2 + t * (a3 + t * (a4 + t * a5))))
    r = 1.0 - poly * jnp.exp(-ax * ax)
    return jnp.where(x >= 0.0, r, -r)


def _gelu_exact(x):
    # PyTorch nn.GELU default is the exact erf form.
    return 0.5 * x * (1.0 + _erf(x * (1.0 / math.sqrt(2.0))))


def _layernorm(x, g, b):
    mu = jnp.mean(x, axis=-1, keepdims=True)
    var = jnp.mean(jnp.square(x - mu), axis=-1, keepdims=True)
    return (x - mu) * jax.lax.rsqrt(var + LN_EPS) * g + b


# ----------------------------- fused kernel ----------------------------------
def _make_kernel(bc):
    """Kernel specialized for a static batch-chunk size `bc` (1 or B)."""
    seq = SEQ
    f32 = jnp.float32

    def kernel(xp_ref, text_ref, pw_ref, pb_ref, pos_ref,
               ln1g_ref, ln1b_ref, wqkv_ref, bqkv_ref, wo_ref, bo_ref,
               ln2g_ref, ln2b_ref, w1_ref, b1_ref, w2_ref, b2_ref,
               encg_ref, encb_ref,
               enc_ref, attn_ref):
        # ---- Embeddings: Conv2d(patch, stride=patch) as matmul + pos-emb ----
        xp = xp_ref[...].astype(WDTYPE)                               # (bc*16, 64)
        tok = jnp.dot(xp, pw_ref[...], preferred_element_type=f32)    # (bc*16, 32)
        tok = tok + pb_ref[...] + pos_ref[...]
        # dropout: identity (inference / eval mode)
        text = text_ref[...].astype(f32)                              # (bc*8, 32)

        # ---- fuse [patch tokens ; text tokens] per batch element (sublane concat)
        # TODO(synk): Embeddings' exact treatment of Index not given; passed through.
        parts = []
        for b in range(bc):
            parts.append(tok[b * N_PATCHES:(b + 1) * N_PATCHES])
            parts.append(text[b * N_TEXT:(b + 1) * N_TEXT])
        h = jnp.concatenate(parts, axis=0)                            # (bc*seq, 32)

        # ---- encoder: pre-LN ViT blocks (statically unrolled) ----
        for l in range(NUM_LAYERS):
            # --- multi-head self-attention ---
            hn = _layernorm(h, ln1g_ref[l], ln1b_ref[l])              # (bc*seq, 32)
            qkv = jnp.dot(hn.astype(WDTYPE), wqkv_ref[l],
                          preferred_element_type=f32) + bqkv_ref[l]   # (bc*seq, 96)
            qkv16 = qkv.astype(WDTYPE)

            q_l, k_l, v_l = [], [], []
            for b in range(bc):
                qb = qkv16[b * seq:(b + 1) * seq]                     # (seq, 96)
                for i in range(NUM_HEADS):
                    q_l.append(qb[:, i * HEAD_DIM:(i + 1) * HEAD_DIM])
                    k_l.append(qb[:, HIDDEN + i * HEAD_DIM:
                                  HIDDEN + (i + 1) * HEAD_DIM])
                    v_l.append(qb[:, 2 * HIDDEN + i * HEAD_DIM:
                                  2 * HIDDEN + (i + 1) * HEAD_DIM])
            q = jnp.stack(q_l)                                        # (bc*NH, S, HD)
            k = jnp.stack(k_l)
            v = jnp.stack(v_l)

            # batched scores + ONE softmax over all heads (and folded batches)
            s = jnp.einsum('hqd,hkd->hqk', q, k,
                           preferred_element_type=f32) * ATTN_SCALE   # (bc*NH,S,S)
            s = s - jnp.max(s, axis=-1, keepdims=True)
            e = jnp.exp(s)
            # exact divide: these probabilities are returned as attn_weights.
            p = e / jnp.sum(e, axis=-1, keepdims=True)
            ctx = jnp.einsum('hqk,hkd->hqd', p.astype(WDTYPE), v,
                             preferred_element_type=f32)              # (bc*NH,S,HD)

            rows = []
            for b in range(bc):
                # single attention-prob store per (batch, layer)
                attn_ref[b, l] = p[b * NUM_HEADS:(b + 1) * NUM_HEADS].astype(
                    attn_ref.dtype)
                # lane-concat head contexts -> (S, HIDDEN)
                rows.append(jnp.concatenate(
                    [ctx[b * NUM_HEADS + i] for i in range(NUM_HEADS)], axis=-1))
            ctx_all = jnp.concatenate(rows, axis=0)                   # (bc*seq, 32)

            # single fused out-projection (K=32) for all heads / batches
            attn_out = jnp.dot(ctx_all.astype(WDTYPE), wo_ref[l],
                               preferred_element_type=f32) + bo_ref[l]
            h = h + attn_out                                          # residual

            # --- MLP (exact-erf GELU) ---
            hn = _layernorm(h, ln2g_ref[l], ln2b_ref[l])
            m = jnp.dot(hn.astype(WDTYPE), w1_ref[l],
                        preferred_element_type=f32) + b1_ref[l]
            m = _gelu_exact(m)
            h = h + jnp.dot(m.astype(WDTYPE), w2_ref[l],
                            preferred_element_type=f32) + b2_ref[l]

        # ---- final encoder LayerNorm ----
        enc_ref[...] = _layernorm(h, encg_ref[...],
                                  encb_ref[...]).astype(enc_ref.dtype)

    return kernel


# ------------------------------ call wrapper ----------------------------------
def _has_dual_tensorcore():
    """True on chips where a parallel grid axis maps to 2 TensorCores (v7x)."""
    try:
        kind = jax.devices()[0].device_kind.lower()
    except Exception:
        return False
    return "v7" in kind


def _fused_forward(xp2, text2, prm, batch_in_grid):
    B = xp2.shape[0] // N_PATCHES
    Bc = 1 if batch_in_grid else B        # batch elements handled per grid step
    n_blocks = B // Bc
    seq = SEQ

    def w16(a):
        return a.astype(WDTYPE)

    # Matmul weights in bf16 (f32 accumulation); biases / LN / pos-emb stay f32.
    inputs = [
        xp2, text2,
        w16(prm['patch_w']), prm['patch_b'], jnp.tile(prm['pos_emb'], (Bc, 1)),
        prm['ln1_g'], prm['ln1_b'], w16(prm['wqkv']), prm['bqkv'],
        w16(prm['wo']), prm['bo'], prm['ln2_g'], prm['ln2_b'],
        w16(prm['w1']), prm['b1'], w16(prm['w2']), prm['b2'],
        prm['enc_ln_g'], prm['enc_ln_b'],
    ]

    def resident(a):
        nd = a.ndim
        return pl.BlockSpec(tuple(a.shape), lambda b, _nd=nd: (0,) * _nd)

    in_specs = [
        pl.BlockSpec((Bc * N_PATCHES, IN_CH * PATCH * PATCH), lambda b: (b, 0)),
        pl.BlockSpec((Bc * N_TEXT, HIDDEN), lambda b: (b, 0)),
    ] + [resident(a) for a in inputs[2:]]

    out_shape = (
        jax.ShapeDtypeStruct((B * seq, HIDDEN), DTYPE),
        jax.ShapeDtypeStruct((B, NUM_LAYERS, NUM_HEADS, seq, seq), jnp.float32),
    )
    out_specs = (
        pl.BlockSpec((Bc * seq, HIDDEN), lambda b: (b, 0)),
        pl.BlockSpec((Bc, NUM_LAYERS, NUM_HEADS, seq, seq),
                     lambda b: (b, 0, 0, 0, 0)),
    )

    # Advisory cost estimate for XLA scheduling around the custom call.
    flops = 2 * B * (
        N_PATCHES * IN_CH * PATCH * PATCH * HIDDEN
        + NUM_LAYERS * (seq * HIDDEN * 3 * HIDDEN
                        + NUM_HEADS * 2 * seq * seq * HEAD_DIM
                        + seq * HIDDEN * HIDDEN
                        + 2 * seq * HIDDEN * MLP_DIM))
    transcend = B * NUM_LAYERS * (NUM_HEADS * seq * seq + seq * MLP_DIM)
    bytes_accessed = int(
        sum(int(a.size) * a.dtype.itemsize for a in inputs)
        + sum(int(math.prod(s.shape)) * jnp.dtype(s.dtype).itemsize
              for s in out_shape))

    return pl.pallas_call(
        _make_kernel(Bc),
        grid=(n_blocks,),
        in_specs=in_specs,
        out_specs=out_specs,
        out_shape=out_shape,
        compiler_params=pltpu.CompilerParams(
            dimension_semantics=("parallel",)),   # v7x: batch sharded over 2 TCs
        cost_estimate=pl.CostEstimate(flops=flops, transcendentals=transcend,
                                      bytes_accessed=bytes_accessed),
    )(*inputs)


# ------------------------------ parameters ------------------------------------
def init_params(key):
    def normal(k, shape, std=0.02):
        return std * jax.random.normal(k, shape, dtype=DTYPE)

    keys = jax.random.split(key, 4 + NUM_LAYERS)
    # Conv2d weight in PyTorch layout [hidden, C, P, P]; flatten to (C*P*P, hidden)
    conv_w = normal(keys[0], (HIDDEN, IN_CH, PATCH, PATCH))
    params = {
        'patch_w': conv_w.transpose(1, 2, 3, 0).reshape(IN_CH * PATCH * PATCH, HIDDEN),
        'patch_b': jnp.zeros((1, HIDDEN), DTYPE),
        'pos_emb': normal(keys[1], (N_PATCHES, HIDDEN)),
        'enc_ln_g': jnp.ones((1, HIDDEN), DTYPE),
        'enc_ln_b': jnp.zeros((1, HIDDEN), DTYPE),
        # Transformer.Linear(2H, H): present in __init__, unused in forward().
        'fuse_w': normal(keys[2], (2 * HIDDEN, HIDDEN)),
        'fuse_b': jnp.zeros((HIDDEN,), DTYPE),
    }
    ln1_g, ln1_b, wqkv, bqkv, wo, bo = [], [], [], [], [], []
    ln2_g, ln2_b, w1, b1, w2, b2 = [], [], [], [], [], []
    for l in range(NUM_LAYERS):
        lk = jax.random.split(keys[4 + l], 6)
        ln1_g.append(jnp.ones((1, HIDDEN), DTYPE))
        ln1_b.append(jnp.zeros((1, HIDDEN), DTYPE))
        wq = normal(lk[0], (HIDDEN, HIDDEN))
        wk = normal(lk[1], (HIDDEN, HIDDEN))
        wv = normal(lk[2], (HIDDEN, HIDDEN))
        wqkv.append(jnp.concatenate([wq, wk, wv], axis=1))          # (32, 96)
        bqkv.append(jnp.zeros((1, 3 * HIDDEN), DTYPE))
        wo.append(normal(lk[3], (HIDDEN, HIDDEN)))
        bo.append(jnp.zeros((1, HIDDEN), DTYPE))
        ln2_g.append(jnp.ones((1, HIDDEN), DTYPE))
        ln2_b.append(jnp.zeros((1, HIDDEN), DTYPE))
        w1.append(normal(lk[4], (HIDDEN, MLP_DIM)))
        b1.append(jnp.zeros((1, MLP_DIM), DTYPE))
        w2.append(normal(lk[5], (MLP_DIM, HIDDEN)))
        b2.append(jnp.zeros((1, HIDDEN), DTYPE))
    params.update(
        ln1_g=jnp.stack(ln1_g), ln1_b=jnp.stack(ln1_b),
        wqkv=jnp.stack(wqkv), bqkv=jnp.stack(bqkv),
        wo=jnp.stack(wo), bo=jnp.stack(bo),
        ln2_g=jnp.stack(ln2_g), ln2_b=jnp.stack(ln2_b),
        w1=jnp.stack(w1), b1=jnp.stack(b1),
        w2=jnp.stack(w2), b2=jnp.stack(b2))
    return params


# ------------------------------ forward pass ----------------------------------
def transformer_forward(params, input_ids, index):
    """Mirrors Transformer.forward(input_ids, Index) -> (encoded, attn_weights)."""
    B = input_ids.shape[0]
    # Patch extraction for Conv2d(kernel==stride==PATCH): tiny one-time 6-D
    # reshape/transpose left to XLA; everything else runs inside one fused
    # Pallas kernel.
    xp = input_ids.reshape(B, IN_CH, IMG // PATCH, PATCH, IMG // PATCH, PATCH)
    xp = xp.transpose(0, 2, 4, 1, 3, 5).reshape(B * N_PATCHES,
                                                IN_CH * PATCH * PATCH)
    text2 = index.reshape(B * N_TEXT, HIDDEN)

    # v7x: one batch element per grid step (2 TCs); v5e/v6e: fold batch into
    # the sublane axis (grid=(1,)) to halve matmul pushes & per-step overhead.
    batch_in_grid = _has_dual_tensorcore() and B > 1

    enc_flat, attn = _fused_forward(xp, text2, params, batch_in_grid)
    encoded = enc_flat.reshape(B, SEQ, HIDDEN)
    # attn is (B, L, NH, S, S); the reference returns a per-layer list of
    # (B, NH, S, S) -> pure slices, no transpose/copy.
    attn_weights = [attn[:, l] for l in range(NUM_LAYERS)]
    return encoded, attn_weights


# ---------------------------------- main ---------------------------------------
if __name__ == "__main__":
    key = jax.random.PRNGKey(0)
    k_param, k_img, k_txt = jax.random.split(key, 3)

    params = init_params(k_param)
    input_ids = jax.random.normal(k_img, (2, IN_CH, IMG, IMG), dtype=DTYPE)   # NCHW
    index = jax.random.normal(k_txt, (2, N_TEXT, HIDDEN), dtype=DTYPE)        # text tokens

    encoded, attn_weights = transformer_forward(params, input_ids, index)

    jax.block_until_ready(encoded)
    for w in attn_weights:
        jax.block_until_ready(w)

    S = SEQ
    assert encoded.shape == (2, S, HIDDEN)
    assert len(attn_weights) == NUM_LAYERS
    assert all(w.shape == (2, NUM_HEADS, S, S) for w in attn_weights)
    assert bool(jnp.all(jnp.isfinite(encoded)))
    # softmax rows sum to ~1 (exact divide kept for parity)
    row_sums = jnp.sum(attn_weights[0], axis=-1)
    assert bool(jnp.all(jnp.abs(row_sums - 1.0) < 1e-3))
    print("KERNEL_OK")
</pallas_src>

<mosaic_0001>
module attributes {stable_mosaic.version = 11 : i64} {
  func.func @kernel(%arg0: i32, %arg1: memref<32x64xf32, #tpu.memory_space<vmem>>, %arg2: memref<16x32xf32, #tpu.memory_space<vmem>>, %arg3: memref<64x32xbf16, #tpu.memory_space<vmem>>, %arg4: memref<1x32xf32, #tpu.memory_space<vmem>>, %arg5: memref<32x32xf32, #tpu.memory_space<vmem>>, %arg6: memref<2x1x32xf32, #tpu.memory_space<vmem>>, %arg7: memref<2x1x32xf32, #tpu.memory_space<vmem>>, %arg8: memref<2x32x96xbf16, #tpu.memory_space<vmem>>, %arg9: memref<2x1x96xf32, #tpu.memory_space<vmem>>, %arg10: memref<2x32x32xbf16, #tpu.memory_space<vmem>>, %arg11: memref<2x1x32xf32, #tpu.memory_space<vmem>>, %arg12: memref<2x1x32xf32, #tpu.memory_space<vmem>>, %arg13: memref<2x1x32xf32, #tpu.memory_space<vmem>>, %arg14: memref<2x32x64xbf16, #tpu.memory_space<vmem>>, %arg15: memref<2x1x64xf32, #tpu.memory_space<vmem>>, %arg16: memref<2x64x32xbf16, #tpu.memory_space<vmem>>, %arg17: memref<2x1x32xf32, #tpu.memory_space<vmem>>, %arg18: memref<1x32xf32, #tpu.memory_space<vmem>>, %arg19: memref<1x32xf32, #tpu.memory_space<vmem>>, %arg20: memref<48x32xf32, #tpu.memory_space<vmem>>, %arg21: memref<2x2x4x24x24xf32, #tpu.memory_space<vmem>>) attributes {dimension_semantics = [#tpu.dimension_semantics<parallel>], iteration_bounds = array<i64: 1>, scalar_prefetch = 0 : i64, scratch_operands = 0 : i64, tpu.core_type = #tpu.core_type<tc>, window_params = [{transform_indices = @transform_0, window_bounds = array<i64: 32, 64>}, {transform_indices = @transform_1, window_bounds = array<i64: 16, 32>}, {pipeline_mode = #tpu.pipeline_mode<synchronous>, transform_indices = @transform_2, window_bounds = array<i64: 64, 32>}, {pipeline_mode = #tpu.pipeline_mode<synchronous>, transform_indices = @transform_3, window_bounds = array<i64: 1, 32>}, {pipeline_mode = #tpu.pipeline_mode<synchronous>, transform_indices = @transform_4, window_bounds = array<i64: 32, 32>}, {pipeline_mode = #tpu.pipeline_mode<synchronous>, transform_indices = @transform_5, window_bounds = array<i64: 2, 1, 32>}, {pipeline_mode = #tpu.pipeline_mode<synchronous>, transform_indices = @transform_6, window_bounds = array<i64: 2, 1, 32>}, {pipeline_mode = #tpu.pipeline_mode<synchronous>, transform_indices = @transform_7, window_bounds = array<i64: 2, 32, 96>}, {pipeline_mode = #tpu.pipeline_mode<synchronous>, transform_indices = @transform_8, window_bounds = array<i64: 2, 1, 96>}, {pipeline_mode = #tpu.pipeline_mode<synchronous>, transform_indices = @transform_9, window_bounds = array<i64: 2, 32, 32>}, {pipeline_mode = #tpu.pipeline_mode<synchronous>, transform_indices = @transform_10, window_bounds = array<i64: 2, 1, 32>}, {pipeline_mode = #tpu.pipeline_mode<synchronous>, transform_indices = @transform_11, window_bounds = array<i64: 2, 1, 32>}, {pipeline_mode = #tpu.pipeline_mode<synchronous>, transform_indices = @transform_12, window_bounds = array<i64: 2, 1, 32>}, {pipeline_mode = #tpu.pipeline_mode<synchronous>, transform_indices = @transform_13, window_bounds = array<i64: 2, 32, 64>}, {pipeline_mode = #tpu.pipeline_mode<synchronous>, transform_indices = @transform_14, window_bounds = array<i64: 2, 1, 64>}, {pipeline_mode = #tpu.pipeline_mode<synchronous>, transform_indices = @transform_15, window_bounds = array<i64: 2, 64, 32>}, {pipeline_mode = #tpu.pipeline_mode<synchronous>, transform_indices = @transform_16, window_bounds = array<i64: 2, 1, 32>}, {pipeline_mode = #tpu.pipeline_mode<synchronous>, transform_indices = @transform_17, window_bounds = array<i64: 1, 32>}, {pipeline_mode = #tpu.pipeline_mode<synchronous>, transform_indices = @transform_18, window_bounds = array<i64: 1, 32>}, {transform_indices = @transform_19, window_bounds = array<i64: 48, 32>}, {transform_indices = @transform_20, window_bounds = array<i64: 2, 2, 4, 24, 24>}]} {
    %c0 = arith.constant 0 : index
    %c0_0 = arith.constant 0 : index
    %0 = vector.load %arg1[%c0, %c0_0] : memref<32x64xf32, #tpu.memory_space<vmem>>, vector<32x64xf32>
    %1 = arith.truncf %0 : vector<32x64xf32> to vector<32x64xbf16>
    %c0_1 = arith.constant 0 : index
    %c0_2 = arith.constant 0 : index
    %2 = vector.load %arg3[%c0_1, %c0_2] : memref<64x32xbf16, #tpu.memory_space<vmem>>, vector<64x32xbf16>
    %cst = arith.constant dense<0.000000e+00> : vector<32x32xf32>
    %3 = tpu.matmul %1, %2, %cst {dimension_numbers = #tpu.dot_dimension_numbers<[1], [0], [0], [1], [0, 0, 1, 1], [], []>} : vector<32x64xbf16>, vector<64x32xbf16>, vector<32x32xf32> -> vector<32x32xf32>
    %c0_3 = arith.constant 0 : index
    %c0_4 = arith.constant 0 : index
    %4 = vector.load %arg4[%c0_3, %c0_4] : memref<1x32xf32, #tpu.memory_space<vmem>>, vector<1x32xf32>
    %5 = vector.broadcast %4 : vector<1x32xf32> to vector<32x32xf32>
    %6 = arith.addf %3, %5 : vector<32x32xf32>
    %c0_5 = arith.constant 0 : index
    %c0_6 = arith.constant 0 : index
    %7 = vector.load %arg5[%c0_5, %c0_6] : memref<32x32xf32, #tpu.memory_space<vmem>>, vector<32x32xf32>
    %8 = arith.addf %6, %7 : vector<32x32xf32>
    %c0_7 = arith.constant 0 : index
    %c0_8 = arith.constant 0 : index
    %9 = vector.load %arg2[%c0_7, %c0_8] : memref<16x32xf32, #tpu.memory_space<vmem>>, vector<16x32xf32>
    %10 = vector.extract_strided_slice %8 {offsets = [0, 0], sizes = [16, 32], strides = [1, 1]} : vector<32x32xf32> to vector<16x32xf32>
    %11 = vector.extract_strided_slice %9 {offsets = [0, 0], sizes = [8, 32], strides = [1, 1]} : vector<16x32xf32> to vector<8x32xf32>
    %12 = vector.extract_strided_slice %8 {offsets = [16, 0], sizes = [16, 32], strides = [1, 1]} : vector<32x32xf32> to vector<16x32xf32>
    %13 = vector.extract_strided_slice %9 {offsets = [8, 0], sizes = [8, 32], strides = [1, 1]} : vector<16x32xf32> to vector<8x32xf32>
    %14 = tpu.concatenate %10, %11, %12, %13 in 0 : vector<16x32xf32>, vector<8x32xf32>, vector<16x32xf32>, vector<8x32xf32> -> vector<48x32xf32>
    %c0_9 = arith.constant 0 : index
    %c0_10 = arith.constant 0 : index
    %c0_11 = arith.constant 0 : index
    %15 = vector.load %arg6[%c0_9, %c0_10, %c0_11] : memref<2x1x32xf32, #tpu.memory_space<vmem>>, vector<1x1x32xf32>
    %16 = vector.shape_cast %15 : vector<1x1x32xf32> to vector<1x32xf32>
    %c0_12 = arith.constant 0 : index
    %c0_13 = arith.constant 0 : index
    %c0_14 = arith.constant 0 : index
    %17 = vector.load %arg7[%c0_12, %c0_13, %c0_14] : memref<2x1x32xf32, #tpu.memory_space<vmem>>, vector<1x1x32xf32>
    %18 = vector.shape_cast %17 : vector<1x1x32xf32> to vector<1x32xf32>
    %cst_15 = arith.constant dense<0.000000e+00> : vector<48xf32>
    %19 = vector.multi_reduction <add>, %14, %cst_15 [1] : vector<48x32xf32> to vector<48xf32>
    %20 = vector.shape_cast %19 : vector<48xf32> to vector<48x1xf32>
    %cst_16 = arith.constant 3.200000e+01 : f32
    %21 = vector.broadcast %cst_16 : f32 to vector<48x1xf32>
    %22 = arith.divf %20, %21 : vector<48x1xf32>
    %23 = vector.broadcast %22 : vector<48x1xf32> to vector<48x32xf32>
    %24 = arith.subf %14, %23 : vector<48x32xf32>
    %25 = arith.mulf %24, %24 : vector<48x32xf32>
    %cst_17 = arith.constant dense<0.000000e+00> : vector<48xf32>
    %26 = vector.multi_reduction <add>, %25, %cst_17 [1] : vector<48x32xf32> to vector<48xf32>
    %27 = vector.shape_cast %26 : vector<48xf32> to vector<48x1xf32>
    %cst_18 = arith.constant 3.200000e+01 : f32
    %28 = vector.broadcast %cst_18 : f32 to vector<48x1xf32>
    %29 = arith.divf %27, %28 : vector<48x1xf32>
    %30 = vector.broadcast %22 : vector<48x1xf32> to vector<48x32xf32>
    %31 = arith.subf %14, %30 : vector<48x32xf32>
    %cst_19 = arith.constant 9.99999997E-7 : f32
    %32 = vector.broadcast %cst_19 : f32 to vector<48x1xf32>
    %33 = arith.addf %29, %32 : vector<48x1xf32>
    %34 = math.rsqrt %33 : vector<48x1xf32>
    %35 = vector.broadcast %34 : vector<48x1xf32> to vector<48x32xf32>
    %36 = arith.mulf %31, %35 : vector<48x32xf32>
    %37 = vector.broadcast %16 : vector<1x32xf32> to vector<48x32xf32>
    %38 = arith.mulf %36, %37 : vector<48x32xf32>
    %39 = vector.broadcast %18 : vector<1x32xf32> to vector<48x32xf32>
    %40 = arith.addf %38, %39 : vector<48x32xf32>
    %41 = arith.truncf %40 : vector<48x32xf32> to vector<48x32xbf16>
    %c0_20 = arith.constant 0 : index
    %c0_21 = arith.constant 0 : index
    %c0_22 = arith.constant 0 : index
    %42 = vector.load %arg8[%c0_20, %c0_21, %c0_22] : memref<2x32x96xbf16, #tpu.memory_space<vmem>>, vector<1x32x96xbf16>
    %43 = vector.shape_cast %42 : vector<1x32x96xbf16> to vector<32x96xbf16>
    %cst_23 = arith.constant dense<0.000000e+00> : vector<48x96xf32>
    %44 = tpu.matmul %41, %43, %cst_23 {dimension_numbers = #tpu.dot_dimension_numbers<[1], [0], [0], [1], [0, 0, 1, 1], [], []>} : vector<48x32xbf16>, vector<32x96xbf16>, vector<48x96xf32> -> vector<48x96xf32>
    %c0_24 = arith.constant 0 : index
    %c0_25 = arith.constant 0 : index
    %c0_26 = arith.constant 0 : index
    %45 = vector.load %arg9[%c0_24, %c0_25, %c0_26] : memref<2x1x96xf32, #tpu.memory_space<vmem>>, vector<1x1x96xf32>
    %46 = vector.shape_cast %45 : vector<1x1x96xf32> to vector<1x96xf32>
    %47 = vector.broadcast %46 : vector<1x96xf32> to vector<48x96xf32>
    %48 = arith.addf %44, %47 : vector<48x96xf32>
    %49 = arith.truncf %48 : vector<48x96xf32> to vector<48x96xbf16>
    %50 = vector.extract_strided_slice %49 {offsets = [0, 0], sizes = [24, 96], strides = [1, 1]} : vector<48x96xbf16> to vector<24x96xbf16>
    %51 = vector.extract_strided_slice %50 {offsets = [0, 0], sizes = [24, 8], strides = [1, 1]} : vector<24x96xbf16> to vector<24x8xbf16>
    %52 = vector.extract_strided_slice %50 {offsets = [0, 32], sizes = [24, 8], strides = [1, 1]} : vector<24x96xbf16> to vector<24x8xbf16>
    %53 = vector.extract_strided_slice %50 {offsets = [0, 64], sizes = [24, 8], strides = [1, 1]} : vector<24x96xbf16> to vector<24x8xbf16>
    %54 = vector.extract_strided_slice %50 {offsets = [0, 8], sizes = [24, 8], strides = [1, 1]} : vector<24x96xbf16> to vector<24x8xbf16>
    %55 = vector.extract_strided_slice %50 {offsets = [0, 40], sizes = [24, 8], strides = [1, 1]} : vector<24x96xbf16> to vector<24x8xbf16>
    %56 = vector.extract_strided_slice %50 {offsets = [0, 72], sizes = [24, 8], strides = [1, 1]} : vector<24x96xbf16> to vector<24x8xbf16>
    %57 = vector.extract_strided_slice %50 {offsets = [0, 16], sizes = [24, 8], strides = [1, 1]} : vector<24x96xbf16> to vector<24x8xbf16>
    %58 = vector.extract_strided_slice %50 {offsets = [0, 48], sizes = [24, 8], strides = [1, 1]} : vector<24x96xbf16> to vector<24x8xbf16>
    %59 = vector.extract_strided_slice %50 {offsets = [0, 80], sizes = [24, 8], strides = [1, 1]} : vector<24x96xbf16> to vector<24x8xbf16>
    %60 = vector.extract_strided_slice %50 {offsets = [0, 24], sizes = [24, 8], strides = [1, 1]} : vector<24x96xbf16> to vector<24x8xbf16>
    %61 = vector.extract_strided_slice %50 {offsets = [0, 56], sizes = [24, 8], strides = [1, 1]} : vector<24x96xbf16> to vector<24x8xbf16>
    %62 = vector.extract_strided_slice %50 {offsets = [0, 88], sizes = [24, 8], strides = [1, 1]} : vector<24x96xbf16> to vector<24x8xbf16>
    %63 = vector.extract_strided_slice %49 {offsets = [24, 0], sizes = [24, 96], strides = [1, 1]} : vector<48x96xbf16> to vector<24x96xbf16>
    %64 = vector.extract_strided_slice %63 {offsets = [0, 0], sizes = [24, 8], strides = [1, 1]} : vector<24x96xbf16> to vector<24x8xbf16>
    %65 = vector.extract_strided_slice %63 {offsets = [0, 32], sizes = [24, 8], strides = [1, 1]} : vector<24x96xbf16> to vector<24x8xbf16>
    %66 = vector.extract_strided_slice %63 {offsets = [0, 64], sizes = [24, 8], strides = [1, 1]} : vector<24x96xbf16> to vector<24x8xbf16>
    %67 = vector.extract_strided_slice %63 {offsets = [0, 8], sizes = [24, 8], strides = [1, 1]} : vector<24x96xbf16> to vector<24x8xbf16>
    %68 = vector.extract_strided_slice %63 {offsets = [0, 40], sizes = [24, 8], strides = [1, 1]} : vector<24x96xbf16> to vector<24x8xbf16>
    %69 = vector.extract_strided_slice %63 {offsets = [0, 72], sizes = [24, 8], strides = [1, 1]} : vector<24x96xbf16> to vector<24x8xbf16>
    %70 = vector.extract_strided_slice %63 {offsets = [0, 16], sizes = [24, 8], strides = [1, 1]} : vector<24x96xbf16> to vector<24x8xbf16>
    %71 = vector.extract_strided_slice %63 {offsets = [0, 48], sizes = [24, 8], strides = [1, 1]} : vector<24x96xbf16> to vector<24x8xbf16>
    %72 = vector.extract_strided_slice %63 {offsets = [0, 80], sizes = [24, 8], strides = [1, 1]} : vector<24x96xbf16> to vector<24x8xbf16>
    %73 = vector.extract_strided_slice %63 {offsets = [0, 24], sizes = [24, 8], strides = [1, 1]} : vector<24x96xbf16> to vector<24x8xbf16>
    %74 = vector.extract_strided_slice %63 {offsets = [0, 56], sizes = [24, 8], strides = [1, 1]} : vector<24x96xbf16> to vector<24x8xbf16>
    %75 = vector.extract_strided_slice %63 {offsets = [0, 88], sizes = [24, 8], strides = [1, 1]} : vector<24x96xbf16> to vector<24x8xbf16>
    %76 = vector.shape_cast %51 : vector<24x8xbf16> to vector<1x24x8xbf16>
    %77 = vector.shape_cast %54 : vector<24x8xbf16> to vector<1x24x8xbf16>
    %78 = vector.shape_cast %57 : vector<24x8xbf16> to vector<1x24x8xbf16>
    %79 = vector.shape_cast %60 : vector<24x8xbf16> to vector<1x24x8xbf16>
    %80 = vector.shape_cast %64 : vector<24x8xbf16> to vector<1x24x8xbf16>
    %81 = vector.shape_cast %67 : vector<24x8xbf16> to vector<1x24x8xbf16>
    %82 = vector.shape_cast %70 : vector<24x8xbf16> to vector<1x24x8xbf16>
    %83 = vector.shape_cast %73 : vector<24x8xbf16> to vector<1x24x8xbf16>
    %84 = tpu.concatenate %76, %77, %78, %79, %80, %81, %82, %83 in 0 : vector<1x24x8xbf16>, vector<1x24x8xbf16>, vector<1x24x8xbf16>, vector<1x24x8xbf16>, vector<1x24x8xbf16>, vector<1x24x8xbf16>, vector<1x24x8xbf16>, vector<1x24x8xbf16> -> vector<8x24x8xbf16>
    %85 = vector.shape_cast %52 : vector<24x8xbf16> to vector<1x24x8xbf16>
    %86 = vector.shape_cast %55 : vector<24x8xbf16> to vector<1x24x8xbf16>
    %87 = vector.shape_cast %58 : vector<24x8xbf16> to vector<1x24x8xbf16>
    %88 = vector.shape_cast %61 : vector<24x8xbf16> to vector<1x24x8xbf16>
    %89 = vector.shape_cast %65 : vector<24x8xbf16> to vector<1x24x8xbf16>
    %90 = vector.shape_cast %68 : vector<24x8xbf16> to vector<1x24x8xbf16>
    %91 = vector.shape_cast %71 : vector<24x8xbf16> to vector<1x24x8xbf16>
    %92 = vector.shape_cast %74 : vector<24x8xbf16> to vector<1x24x8xbf16>
    %93 = tpu.concatenate %85, %86, %87, %88, %89, %90, %91, %92 in 0 : vector<1x24x8xbf16>, vector<1x24x8xbf16>, vector<1x24x8xbf16>, vector<1x24x8xbf16>, vector<1x24x8xbf16>, vector<1x24x8xbf16>, vector<1x24x8xbf16>, vector<1x24x8xbf16> -> vector<8x24x8xbf16>
    %94 = vector.shape_cast %53 : vector<24x8xbf16> to vector<1x24x8xbf16>
    %95 = vector.shape_cast %56 : vector<24x8xbf16> to vector<1x24x8xbf16>
    %96 = vector.shape_cast %59 : vector<24x8xbf16> to vector<1x24x8xbf16>
    %97 = vector.shape_cast %62 : vector<24x8xbf16> to vector<1x24x8xbf16>
    %98 = vector.shape_cast %66 : vector<24x8xbf16> to vector<1x24x8xbf16>
    %99 = vector.shape_cast %69 : vector<24x8xbf16> to vector<1x24x8xbf16>
    %100 = vector.shape_cast %72 : vector<24x8xbf16> to vector<1x24x8xbf16>
    %101 = vector.shape_cast %75 : vector<24x8xbf16> to vector<1x24x8xbf16>
    %102 = tpu.concatenate %94, %95, %96, %97, %98, %99, %100, %101 in 0 : vector<1x24x8xbf16>, vector<1x24x8xbf16>, vector<1x24x8xbf16>, vector<1x24x8xbf16>, vector<1x24x8xbf16>, vector<1x24x8xbf16>, vector<1x24x8xbf16>, vector<1x24x8xbf16> -> vector<8x24x8xbf16>
    "tpu.trace_start"() <{level = 10 : i32, message = "hqd,hkd->hqk"}> : () -> ()
    %cst_27 = arith.constant dense<0.000000e+00> : vector<8x24x24xf32>
    %103 = tpu.matmul %84, %93, %cst_27 {dimension_numbers = #tpu.dot_dimension_numbers<[2], [2], [1], [1], [0, 0, 0, 1, 1, 1], [0], [0]>} : vector<8x24x8xbf16>, vector<8x24x8xbf16>, vector<8x24x24xf32> -> vector<8x24x24xf32>
    "tpu.trace_stop"() : () -> ()
    %cst_28 = arith.constant 0.353553385 : f32
    %104 = vector.broadcast %cst_28 : f32 to vector<8x24x24xf32>
    %105 = arith.mulf %103, %104 : vector<8x24x24xf32>
    %cst_29 = arith.constant dense<0xFF800000> : vector<8x24xf32>
    %106 = vector.multi_reduction <maximumf>, %105, %cst_29 [2] : vector<8x24x24xf32> to vector<8x24xf32>
    %107 = vector.shape_cast %106 : vector<8x24xf32> to vector<8x24x1xf32>
    %108 = vector.broadcast %107 : vector<8x24x1xf32> to vector<8x24x24xf32>
    %109 = arith.subf %105, %108 : vector<8x24x24xf32>
    %110 = math.exp %109 : vector<8x24x24xf32>
    %cst_30 = arith.constant dense<0.000000e+00> : vector<8x24xf32>
    %111 = vector.multi_reduction <add>, %110, %cst_30 [2] : vector<8x24x24xf32> to vector<8x24xf32>
    %112 = vector.shape_cast %111 : vector<8x24xf32> to vector<8x24x1xf32>
    %113 = vector.broadcast %112 : vector<8x24x1xf32> to vector<8x24x24xf32>
    %114 = arith.divf %110, %113 : vector<8x24x24xf32>
    %115 = arith.truncf %114 : vector<8x24x24xf32> to vector<8x24x24xbf16>
    "tpu.trace_start"() <{level = 10 : i32, message = "hqk,hkd->hqd"}> : () -> ()
    %cst_31 = arith.constant dense<0.000000e+00> : vector<8x24x8xf32>
    %116 = tpu.matmul %115, %102, %cst_31 {dimension_numbers = #tpu.dot_dimension_numbers<[2], [1], [1], [2], [0, 0, 0, 1, 1, 2], [0], [0]>} : vector<8x24x24xbf16>, vector<8x24x8xbf16>, vector<8x24x8xf32> -> vector<8x24x8xf32>
    "tpu.trace_stop"() : () -> ()
    %117 = vector.extract_strided_slice %114 {offsets = [0, 0, 0], sizes = [4, 24, 24], strides = [1, 1, 1]} : vector<8x24x24xf32> to vector<4x24x24xf32>
    %c0_32 = arith.constant 0 : index
    %c0_33 = arith.constant 0 : index
    %c0_34 = arith.constant 0 : index
    %c0_35 = arith.constant 0 : index
    %c0_36 = arith.constant 0 : index
    %118 = vector.load %arg21[%c0_32, %c0_33, %c0_34, %c0_35, %c0_36] : memref<2x2x4x24x24xf32, #tpu.memory_space<vmem>>, vector<1x1x4x24x24xf32>
    %119 = vector.shape_cast %118 : vector<1x1x4x24x24xf32> to vector<4x24x24xf32>
    %120 = vector.shape_cast %117 : vector<4x24x24xf32> to vector<1x1x4x24x24xf32>
    tpu.vector_store %arg21[%c0_32, %c0_33, %c0_34, %c0_35, %c0_36], %120 {strides = array<i32>} : memref<2x2x4x24x24xf32, #tpu.memory_space<vmem>>, vector<1x1x4x24x24xf32>,
    %121 = vector.extract_strided_slice %116 {offsets = [0, 0, 0], sizes = [1, 24, 8], strides = [1, 1, 1]} : vector<8x24x8xf32> to vector<1x24x8xf32>
    %122 = vector.shape_cast %121 : vector<1x24x8xf32> to vector<24x8xf32>
    %123 = vector.extract_strided_slice %116 {offsets = [1, 0, 0], sizes = [1, 24, 8], strides = [1, 1, 1]} : vector<8x24x8xf32> to vector<1x24x8xf32>
    %124 = vector.shape_cast %123 : vector<1x24x8xf32> to vector<24x8xf32>
    %125 = vector.extract_strided_slice %116 {offsets = [2, 0, 0], sizes = [1, 24, 8], strides = [1, 1, 1]} : vector<8x24x8xf32> to vector<1x24x8xf32>
    %126 = vector.shape_cast %125 : vector<1x24x8xf32> to vector<24x8xf32>
    %127 = vector.extract_strided_slice %116 {offsets = [3, 0, 0], sizes = [1, 24, 8], strides = [1, 1, 1]} : vector<8x24x8xf32> to vector<1x24x8xf32>
    %128 = vector.shape_cast %127 : vector<1x24x8xf32> to vector<24x8xf32>
    %129 = tpu.concatenate %122, %124, %126, %128 in 1 : vector<24x8xf32>, vector<24x8xf32>, vector<24x8xf32>, vector<24x8xf32> -> vector<24x32xf32>
    %130 = vector.extract_strided_slice %114 {offsets = [4, 0, 0], sizes = [4, 24, 24], strides = [1, 1, 1]} : vector<8x24x24xf32> to vector<4x24x24xf32>
    %c1 = arith.constant 1 : index
    %c0_37 = arith.constant 0 : index
    %c0_38 = arith.constant 0 : index
    %c0_39 = arith.constant 0 : index
    %c0_40 = arith.constant 0 : index
    %131 = vector.load %arg21[%c1, %c0_37, %c0_38, %c0_39, %c0_40] : memref<2x2x4x24x24xf32, #tpu.memory_space<vmem>>, vector<1x1x4x24x24xf32>
    %132 = vector.shape_cast %131 : vector<1x1x4x24x24xf32> to vector<4x24x24xf32>
    %133 = vector.shape_cast %130 : vector<4x24x24xf32> to vector<1x1x4x24x24xf32>
    tpu.vector_store %arg21[%c1, %c0_37, %c0_38, %c0_39, %c0_40], %133 {strides = array<i32>} : memref<2x2x4x24x24xf32, #tpu.memory_space<vmem>>, vector<1x1x4x24x24xf32>,
    %134 = vector.extract_strided_slice %116 {offsets = [4, 0, 0], sizes = [1, 24, 8], strides = [1, 1, 1]} : vector<8x24x8xf32> to vector<1x24x8xf32>
    %135 = vector.shape_cast %134 : vector<1x24x8xf32> to vector<24x8xf32>
    %136 = vector.extract_strided_slice %116 {offsets = [5, 0, 0], sizes = [1, 24, 8], strides = [1, 1, 1]} : vector<8x24x8xf32> to vector<1x24x8xf32>
    %137 = vector.shape_cast %136 : vector<1x24x8xf32> to vector<24x8xf32>
    %138 = vector.extract_strided_slice %116 {offsets = [6, 0, 0], sizes = [1, 24, 8], strides = [1, 1, 1]} : vector<8x24x8xf32> to vector<1x24x8xf32>
    %139 = vector.shape_cast %138 : vector<1x24x8xf32> to vector<24x8xf32>
    %140 = vector.extract_strided_slice %116 {offsets = [7, 0, 0], sizes = [1, 24, 8], strides = [1, 1, 1]} : vector<8x24x8xf32> to vector<1x24x8xf32>
    %141 = vector.shape_cast %140 : vector<1x24x8xf32> to vector<24x8xf32>
    %142 = tpu.concatenate %135, %137, %139, %141 in 1 : vector<24x8xf32>, vector<24x8xf32>, vector<24x8xf32>, vector<24x8xf32> -> vector<24x32xf32>
    %143 = tpu.concatenate %129, %142 in 0 : vector<24x32xf32>, vector<24x32xf32> -> vector<48x32xf32>
    %144 = arith.truncf %143 : vector<48x32xf32> to vector<48x32xbf16>
    %c0_41 = arith.constant 0 : index
    %c0_42 = arith.constant 0 : index
    %c0_43 = arith.constant 0 : index
    %145 = vector.load %arg10[%c0_41, %c0_42, %c0_43] : memref<2x32x32xbf16, #tpu.memory_space<vmem>>, vector<1x32x32xbf16>
    %146 = vector.shape_cast %145 : vector<1x32x32xbf16> to vector<32x32xbf16>
    %cst_44 = arith.constant dense<0.000000e+00> : vector<48x32xf32>
    %147 = tpu.matmul %144, %146, %cst_44 {dimension_numbers = #tpu.dot_dimension_numbers<[1], [0], [0], [1], [0, 0, 1, 1], [], []>} : vector<48x32xbf16>, vector<32x32xbf16>, vector<48x32xf32> -> vector<48x32xf32>
    %c0_45 = arith.constant 0 : index
    %c0_46 = arith.constant 0 : index
    %c0_47 = arith.constant 0 : index
    %148 = vector.load %arg11[%c0_45, %c0_46, %c0_47] : memref<2x1x32xf32, #tpu.memory_space<vmem>>, vector<1x1x32xf32>
    %149 = vector.shape_cast %148 : vector<1x1x32xf32> to vector<1x32xf32>
    %150 = vector.broadcast %149 : vector<1x32xf32> to vector<48x32xf32>
    %151 = arith.addf %147, %150 : vector<48x32xf32>
    %152 = arith.addf %14, %151 : vector<48x32xf32>
    %c0_48 = arith.constant 0 : index
    %c0_49 = arith.constant 0 : index
    %c0_50 = arith.constant 0 : index
    %153 = vector.load %arg12[%c0_48, %c0_49, %c0_50] : memref<2x1x32xf32, #tpu.memory_space<vmem>>, vector<1x1x32xf32>
    %154 = vector.shape_cast %153 : vector<1x1x32xf32> to vector<1x32xf32>
    %c0_51 = arith.constant 0 : index
    %c0_52 = arith.constant 0 : index
    %c0_53 = arith.constant 0 : index
    %155 = vector.load %arg13[%c0_51, %c0_52, %c0_53] : memref<2x1x32xf32, #tpu.memory_space<vmem>>, vector<1x1x32xf32>
    %156 = vector.shape_cast %155 : vector<1x1x32xf32> to vector<1x32xf32>
    %cst_54 = arith.constant dense<0.000000e+00> : vector<48xf32>
    %157 = vector.multi_reduction <add>, %152, %cst_54 [1] : vector<48x32xf32> to vector<48xf32>
    %158 = vector.shape_cast %157 : vector<48xf32> to vector<48x1xf32>
    %cst_55 = arith.constant 3.200000e+01 : f32
    %159 = vector.broadcast %cst_55 : f32 to vector<48x1xf32>
    %160 = arith.divf %158, %159 : vector<48x1xf32>
    %161 = vector.broadcast %160 : vector<48x1xf32> to vector<48x32xf32>
    %162 = arith.subf %152, %161 : vector<48x32xf32>
    %163 = arith.mulf %162, %162 : vector<48x32xf32>
    %cst_56 = arith.constant dense<0.000000e+00> : vector<48xf32>
    %164 = vector.multi_reduction <add>, %163, %cst_56 [1] : vector<48x32xf32> to vector<48xf32>
    %165 = vector.shape_cast %164 : vector<48xf32> to vector<48x1xf32>
    %cst_57 = arith.constant 3.200000e+01 : f32
    %166 = vector.broadcast %cst_57 : f32 to vector<48x1xf32>
    %167 = arith.divf %165, %166 : vector<48x1xf32>
    %168 = vector.broadcast %160 : vector<48x1xf32> to vector<48x32xf32>
    %169 = arith.subf %152, %168 : vector<48x32xf32>
    %cst_58 = arith.constant 9.99999997E-7 : f32
    %170 = vector.broadcast %cst_58 : f32 to vector<48x1xf32>
    %171 = arith.addf %167, %170 : vector<48x1xf32>
    %172 = math.rsqrt %171 : vector<48x1xf32>
    %173 = vector.broadcast %172 : vector<48x1xf32> to vector<48x32xf32>
    %174 = arith.mulf %169, %173 : vector<48x32xf32>
    %175 = vector.broadcast %154 : vector<1x32xf32> to vector<48x32xf32>
    %176 = arith.mulf %174, %175 : vector<48x32xf32>
    %177 = vector.broadcast %156 : vector<1x32xf32> to vector<48x32xf32>
    %178 = arith.addf %176, %177 : vector<48x32xf32>
    %179 = arith.truncf %178 : vector<48x32xf32> to vector<48x32xbf16>
    %c0_59 = arith.constant 0 : index
    %c0_60 = arith.constant 0 : index
    %c0_61 = arith.constant 0 : index
    %180 = vector.load %arg14[%c0_59, %c0_60, %c0_61] : memref<2x32x64xbf16, #tpu.memory_space<vmem>>, vector<1x32x64xbf16>
    %181 = vector.shape_cast %180 : vector<1x32x64xbf16> to vector<32x64xbf16>
    %cst_62 = arith.constant dense<0.000000e+00> : vector<48x64xf32>
    %182 = tpu.matmul %179, %181, %cst_62 {dimension_numbers = #tpu.dot_dimension_numbers<[1], [0], [0], [1], [0, 0, 1, 1], [], []>} : vector<48x32xbf16>, vector<32x64xbf16>, vector<48x64xf32> -> vector<48x64xf32>
    %c0_63 = arith.constant 0 : index
    %c0_64 = arith.constant 0 : index
    %c0_65 = arith.constant 0 : index
    %183 = vector.load %arg15[%c0_63, %c0_64, %c0_65] : memref<2x1x64xf32, #tpu.memory_space<vmem>>, vector<1x1x64xf32>
    %184 = vector.shape_cast %183 : vector<1x1x64xf32> to vector<1x64xf32>
    %185 = vector.broadcast %184 : vector<1x64xf32> to vector<48x64xf32>
    %186 = arith.addf %182, %185 : vector<48x64xf32>
    %cst_66 = arith.constant 5.000000e-01 : f32
    %187 = vector.broadcast %cst_66 : f32 to vector<48x64xf32>
    %188 = arith.mulf %187, %186 : vector<48x64xf32>
    %cst_67 = arith.constant 0.707106769 : f32
    %189 = vector.broadcast %cst_67 : f32 to vector<48x64xf32>
    %190 = arith.mulf %186, %189 : vector<48x64xf32>
    %191 = math.absf %190 : vector<48x64xf32>
    %cst_68 = arith.constant 0.327591091 : f32
    %192 = vector.broadcast %cst_68 : f32 to vector<48x64xf32>
    %193 = arith.mulf %192, %191 : vector<48x64xf32>
    %cst_69 = arith.constant 1.000000e+00 : f32
    %194 = vector.broadcast %cst_69 : f32 to vector<48x64xf32>
    %195 = arith.addf %194, %193 : vector<48x64xf32>
    %196 = tpu.reciprocal %195 {approx = true} : vector<48x64xf32> -> vector<48x64xf32>
    %cst_70 = arith.constant 1.06140542 : f32
    %197 = vector.broadcast %cst_70 : f32 to vector<48x64xf32>
    %198 = arith.mulf %196, %197 : vector<48x64xf32>
    %cst_71 = arith.constant -1.45315206 : f32
    %199 = vector.broadcast %cst_71 : f32 to vector<48x64xf32>
    %200 = arith.addf %199, %198 : vector<48x64xf32>
    %201 = arith.mulf %196, %200 : vector<48x64xf32>
    %cst_72 = arith.constant 1.42141378 : f32
    %202 = vector.broadcast %cst_72 : f32 to vector<48x64xf32>
    %203 = arith.addf %202, %201 : vector<48x64xf32>
    %204 = arith.mulf %196, %203 : vector<48x64xf32>
    %cst_73 = arith.constant -0.284496725 : f32
    %205 = vector.broadcast %cst_73 : f32 to vector<48x64xf32>
    %206 = arith.addf %205, %204 : vector<48x64xf32>
    %207 = arith.mulf %196, %206 : vector<48x64xf32>
    %cst_74 = arith.constant 0.254829586 : f32
    %208 = vector.broadcast %cst_74 : f32 to vector<48x64xf32>
    %209 = arith.addf %208, %207 : vector<48x64xf32>
    %210 = arith.mulf %196, %209 : vector<48x64xf32>
    %cst_75 = arith.constant 0.000000e+00 : f32
    %211 = vector.broadcast %cst_75 : f32 to vector<48x64xf32>
    %212 = arith.subf %211, %191 : vector<48x64xf32>
    %213 = arith.mulf %212, %191 : vector<48x64xf32>
    %214 = math.exp %213 : vector<48x64xf32>
    %215 = arith.mulf %210, %214 : vector<48x64xf32>
    %cst_76 = arith.constant 1.000000e+00 : f32
    %216 = vector.broadcast %cst_76 : f32 to vector<48x64xf32>
    %217 = arith.subf %216, %215 : vector<48x64xf32>
    %cst_77 = arith.constant 0.000000e+00 : f32
    %218 = vector.broadcast %cst_77 : f32 to vector<48x64xf32>
    %219 = arith.cmpf oge, %190, %218 : vector<48x64xf32>
    %cst_78 = arith.constant 0.000000e+00 : f32
    %220 = vector.broadcast %cst_78 : f32 to vector<48x64xf32>
    %221 = arith.subf %220, %217 : vector<48x64xf32>
    %222 = arith.select %219, %217, %221 : vector<48x64xi1>, vector<48x64xf32>
    %cst_79 = arith.constant 1.000000e+00 : f32
    %223 = vector.broadcast %cst_79 : f32 to vector<48x64xf32>
    %224 = arith.addf %223, %222 : vector<48x64xf32>
    %225 = arith.mulf %188, %224 : vector<48x64xf32>
    %226 = arith.truncf %225 : vector<48x64xf32> to vector<48x64xbf16>
    %c0_80 = arith.constant 0 : index
    %c0_81 = arith.constant 0 : index
    %c0_82 = arith.constant 0 : index
    %227 = vector.load %arg16[%c0_80, %c0_81, %c0_82] : memref<2x64x32xbf16, #tpu.memory_space<vmem>>, vector<1x64x32xbf16>
    %228 = vector.shape_cast %227 : vector<1x64x32xbf16> to vector<64x32xbf16>
    %cst_83 = arith.constant dense<0.000000e+00> : vector<48x32xf32>
    %229 = tpu.matmul %226, %228, %cst_83 {dimension_numbers = #tpu.dot_dimension_numbers<[1], [0], [0], [1], [0, 0, 1, 1], [], []>} : vector<48x64xbf16>, vector<64x32xbf16>, vector<48x32xf32> -> vector<48x32xf32>
    %230 = arith.addf %152, %229 : vector<48x32xf32>
    %c0_84 = arith.constant 0 : index
    %c0_85 = arith.constant 0 : index
    %c0_86 = arith.constant 0 : index
    %231 = vector.load %arg17[%c0_84, %c0_85, %c0_86] : memref<2x1x32xf32, #tpu.memory_space<vmem>>, vector<1x1x32xf32>
    %232 = vector.shape_cast %231 : vector<1x1x32xf32> to vector<1x32xf32>
    %233 = vector.broadcast %232 : vector<1x32xf32> to vector<48x32xf32>
    %234 = arith.addf %230, %233 : vector<48x32xf32>
    %c1_87 = arith.constant 1 : index
    %c0_88 = arith.constant 0 : index
    %c0_89 = arith.constant 0 : index
    %235 = vector.load %arg6[%c1_87, %c0_88, %c0_89] : memref<2x1x32xf32, #tpu.memory_space<vmem>>, vector<1x1x32xf32>
    %236 = vector.shape_cast %235 : vector<1x1x32xf32> to vector<1x32xf32>
    %c1_90 = arith.constant 1 : index
    %c0_91 = arith.constant 0 : index
    %c0_92 = arith.constant 0 : index
    %237 = vector.load %arg7[%c1_90, %c0_91, %c0_92] : memref<2x1x32xf32, #tpu.memory_space<vmem>>, vector<1x1x32xf32>
    %238 = vector.shape_cast %237 : vector<1x1x32xf32> to vector<1x32xf32>
    %cst_93 = arith.constant dense<0.000000e+00> : vector<48xf32>
    %239 = vector.multi_reduction <add>, %234, %cst_93 [1] : vector<48x32xf32> to vector<48xf32>
    %240 = vector.shape_cast %239 : vector<48xf32> to vector<48x1xf32>
    %cst_94 = arith.constant 3.200000e+01 : f32
    %241 = vector.broadcast %cst_94 : f32 to vector<48x1xf32>
    %242 = arith.divf %240, %241 : vector<48x1xf32>
    %243 = vector.broadcast %242 : vector<48x1xf32> to vector<48x32xf32>
    %244 = arith.subf %234, %243 : vector<48x32xf32>
    %245 = arith.mulf %244, %244 : vector<48x32xf32>
    %cst_95 = arith.constant dense<0.000000e+00> : vector<48xf32>
    %246 = vector.multi_reduction <add>, %245, %cst_95 [1] : vector<48x32xf32> to vector<48xf32>
    %247 = vector.shape_cast %246 : vector<48xf32> to vector<48x1xf32>
    %cst_96 = arith.constant 3.200000e+01 : f32
    %248 = vector.broadcast %cst_96 : f32 to vector<48x1xf32>
    %249 = arith.divf %247, %248 : vector<48x1xf32>
    %250 = vector.broadcast %242 : vector<48x1xf32> to vector<48x32xf32>
    %251 = arith.subf %234, %250 : vector<48x32xf32>
    %cst_97 = arith.constant 9.99999997E-7 : f32
    %252 = vector.broadcast %cst_97 : f32 to vector<48x1xf32>
    %253 = arith.addf %249, %252 : vector<48x1xf32>
    %254 = math.rsqrt %253 : vector<48x1xf32>
    %255 = vector.broadcast %254 : vector<48x1xf32> to vector<48x32xf32>
    %256 = arith.mulf %251, %255 : vector<48x32xf32>
    %257 = vector.broadcast %236 : vector<1x32xf32> to vector<48x32xf32>
    %258 = arith.mulf %256, %257 : vector<48x32xf32>
    %259 = vector.broadcast %238 : vector<1x32xf32> to vector<48x32xf32>
    %260 = arith.addf %258, %259 : vector<48x32xf32>
    %261 = arith.truncf %260 : vector<48x32xf32> to vector<48x32xbf16>
    %c1_98 = arith.constant 1 : index
    %c0_99 = arith.constant 0 : index
    %c0_100 = arith.constant 0 : index
    %262 = vector.load %arg8[%c1_98, %c0_99, %c0_100] : memref<2x32x96xbf16, #tpu.memory_space<vmem>>, vector<1x32x96xbf16>
    %263 = vector.shape_cast %262 : vector<1x32x96xbf16> to vector<32x96xbf16>
    %cst_101 = arith.constant dense<0.000000e+00> : vector<48x96xf32>
    %264 = tpu.matmul %261, %263, %cst_101 {dimension_numbers = #tpu.dot_dimension_numbers<[1], [0], [0], [1], [0, 0, 1, 1], [], []>} : vector<48x32xbf16>, vector<32x96xbf16>, vector<48x96xf32> -> vector<48x96xf32>
    %c1_102 = arith.constant 1 : index
    %c0_103 = arith.constant 0 : index
    %c0_104 = arith.constant 0 : index
    %265 = vector.load %arg9[%c1_102, %c0_103, %c0_104] : memref<2x1x96xf32, #tpu.memory_space<vmem>>, vector<1x1x96xf32>
    %266 = vector.shape_cast %265 : vector<1x1x96xf32> to vector<1x96xf32>
    %267 = vector.broadcast %266 : vector<1x96xf32> to vector<48x96xf32>
    %268 = arith.addf %264, %267 : vector<48x96xf32>
    %269 = arith.truncf %268 : vector<48x96xf32> to vector<48x96xbf16>
    %270 = vector.extract_strided_slice %269 {offsets = [0, 0], sizes = [24, 96], strides = [1, 1]} : vector<48x96xbf16> to vector<24x96xbf16>
    %271 = vector.extract_strided_slice %270 {offsets = [0, 0], sizes = [24, 8], strides = [1, 1]} : vector<24x96xbf16> to vector<24x8xbf16>
    %272 = vector.extract_strided_slice %270 {offsets = [0, 32], sizes = [24, 8], strides = [1, 1]} : vector<24x96xbf16> to vector<24x8xbf16>
    %273 = vector.extract_strided_slice %270 {offsets = [0, 64], sizes = [24, 8], strides = [1, 1]} : vector<24x96xbf16> to vector<24x8xbf16>
    %274 = vector.extract_strided_slice %270 {offsets = [0, 8], sizes = [24, 8], strides = [1, 1]} : vector<24x96xbf16> to vector<24x8xbf16>
    %275 = vector.extract_strided_slice %270 {offsets = [0, 40], sizes = [24, 8], strides = [1, 1]} : vector<24x96xbf16> to vector<24x8xbf16>
    %276 = vector.extract_strided_slice %270 {offsets = [0, 72], sizes = [24, 8], strides = [1, 1]} : vector<24x96xbf16> to vector<24x8xbf16>
    %277 = vector.extract_strided_slice %270 {offsets = [0, 16], sizes = [24, 8], strides = [1, 1]} : vector<24x96xbf16> to vector<24x8xbf16>
    %278 = vector.extract_strided_slice %270 {offsets = [0, 48], sizes = [24, 8], strides = [1, 1]} : vector<24x96xbf16> to vector<24x8xbf16>
    %279 = vector.extract_strided_slice %270 {offsets = [0, 80], sizes = [24, 8], strides = [1, 1]} : vector<24x96xbf16> to vector<24x8xbf16>
    %280 = vector.extract_strided_slice %270 {offsets = [0, 24], sizes = [24, 8], strides = [1, 1]} : vector<24x96xbf16> to vector<24x8xbf16>
    %281 = vector.extract_strided_slice %270 {offsets = [0, 56], sizes = [24, 8], strides = [1, 1]} : vector<24x96xbf16> to vector<24x8xbf16>
    %282 = vector.extract_strided_slice %270 {offsets = [0, 88], sizes = [24, 8], strides = [1, 1]} : vector<24x96xbf16> to vector<24x8xbf16>
    %283 = vector.extract_strided_slice %269 {offsets = [24, 0], sizes = [24, 96], strides = [1, 1]} : vector<48x96xbf16> to vector<24x96xbf16>
    %284 = vector.extract_strided_slice %283 {offsets = [0, 0], sizes = [24, 8], strides = [1, 1]} : vector<24x96xbf16> to vector<24x8xbf16>
    %285 = vector.extract_strided_slice %283 {offsets = [0, 32], sizes = [24, 8], strides = [1, 1]} : vector<24x96xbf16> to vector<24x8xbf16>
    %286 = vector.extract_strided_slice %283 {offsets = [0, 64], sizes = [24, 8], strides = [1, 1]} : vector<24x96xbf16> to vector<24x8xbf16>
    %287 = vector.extract_strided_slice %283 {offsets = [0, 8], sizes = [24, 8], strides = [1, 1]} : vector<24x96xbf16> to vector<24x8xbf16>
    %288 = vector.extract_strided_slice %283 {offsets = [0, 40], sizes = [24, 8], strides = [1, 1]} : vector<24x96xbf16> to vector<24x8xbf16>
    %289 = vector.extract_strided_slice %283 {offsets = [0, 72], sizes = [24, 8], strides = [1, 1]} : vector<24x96xbf16> to vector<24x8xbf16>
    %290 = vector.extract_strided_slice %283 {offsets = [0, 16], sizes = [24, 8], strides = [1, 1]} : vector<24x96xbf16> to vector<24x8xbf16>
    %291 = vector.extract_strided_slice %283 {offsets = [0, 48], sizes = [24, 8], strides = [1, 1]} : vector<24x96xbf16> to vector<24x8xbf16>
    %292 = vector.extract_strided_slice %283 {offsets = [0, 80], sizes = [24, 8], strides = [1, 1]} : vector<24x96xbf16> to vector<24x8xbf16>
    %293 = vector.extract_strided_slice %283 {offsets = [0, 24], sizes = [24, 8], strides = [1, 1]} : vector<24x96xbf16> to vector<24x8xbf16>
    %294 = vector.extract_strided_slice %283 {offsets = [0, 56], sizes = [24, 8], strides = [1, 1]} : vector<24x96xbf16> to vector<24x8xbf16>
    %295 = vector.extract_strided_slice %283 {offsets = [0, 88], sizes = [24, 8], strides = [1, 1]} : vector<24x96xbf16> to vector<24x8xbf16>
    %296 = vector.shape_cast %271 : vector<24x8xbf16> to vector<1x24x8xbf16>
    %297 = vector.shape_cast %274 : vector<24x8xbf16> to vector<1x24x8xbf16>
    %298 = vector.shape_cast %277 : vector<24x8xbf16> to vector<1x24x8xbf16>
    %299 = vector.shape_cast %280 : vector<24x8xbf16> to vector<1x24x8xbf16>
    %300 = vector.shape_cast %284 : vector<24x8xbf16> to vector<1x24x8xbf16>
    %301 = vector.shape_cast %287 : vector<24x8xbf16> to vector<1x24x8xbf16>
    %302 = vector.shape_cast %290 : vector<24x8xbf16> to vector<1x24x8xbf16>
    %303 = vector.shape_cast %293 : vector<24x8xbf16> to vector<1x24x8xbf16>
    %304 = tpu.concatenate %296, %297, %298, %299, %300, %301, %302, %303 in 0 : vector<1x24x8xbf16>, vector<1x24x8xbf16>, vector<1x24x8xbf16>, vector<1x24x8xbf16>, vector<1x24x8xbf16>, vector<1x24x8xbf16>, vector<1x24x8xbf16>, vector<1x24x8xbf16> -> vector<8x24x8xbf16>
    %305 = vector.shape_cast %272 : vector<24x8xbf16> to vector<1x24x8xbf16>
    %306 = vector.shape_cast %275 : vector<24x8xbf16> to vector<1x24x8xbf16>
    %307 = vector.shape_cast %278 : vector<24x8xbf16> to vector<1x24x8xbf16>
    %308 = vector.shape_cast %281 : vector<24x8xbf16> to vector<1x24x8xbf16>
    %309 = vector.shape_cast %285 : vector<24x8xbf16> to vector<1x24x8xbf16>
    %310 = vector.shape_cast %288 : vector<24x8xbf16> to vector<1x24x8xbf16>
    %311 = vector.shape_cast %291 : vector<24x8xbf16> to vector<1x24x8xbf16>
    %312 = vector.shape_cast %294 : vector<24x8xbf16> to vector<1x24x8xbf16>
    %313 = tpu.concatenate %305, %306, %307, %308, %309, %310, %311, %312 in 0 : vector<1x24x8xbf16>, vector<1x24x8xbf16>, vector<1x24x8xbf16>, vector<1x24x8xbf16>, vector<1x24x8xbf16>, vector<1x24x8xbf16>, vector<1x24x8xbf16>, vector<1x24x8xbf16> -> vector<8x24x8xbf16>
    %314 = vector.shape_cast %273 : vector<24x8xbf16> to vector<1x24x8xbf16>
    %315 = vector.shape_cast %276 : vector<24x8xbf16> to vector<1x24x8xbf16>
    %316 = vector.shape_cast %279 : vector<24x8xbf16> to vector<1x24x8xbf16>
    %317 = vector.shape_cast %282 : vector<24x8xbf16> to vector<1x24x8xbf16>
    %318 = vector.shape_cast %286 : vector<24x8xbf16> to vector<1x24x8xbf16>
    %319 = vector.shape_cast %289 : vector<24x8xbf16> to vector<1x24x8xbf16>
    %320 = vector.shape_cast %292 : vector<24x8xbf16> to vector<1x24x8xbf16>
    %321 = vector.shape_cast %295 : vector<24x8xbf16> to vector<1x24x8xbf16>
    %322 = tpu.concatenate %314, %315, %316, %317, %318, %319, %320, %321 in 0 : vector<1x24x8xbf16>, vector<1x24x8xbf16>, vector<1x24x8xbf16>, vector<1x24x8xbf16>, vector<1x24x8xbf16>, vector<1x24x8xbf16>, vector<1x24x8xbf16>, vector<1x24x8xbf16> -> vector<8x24x8xbf16>
    "tpu.trace_start"() <{level = 10 : i32, message = "hqd,hkd->hqk"}> : () -> ()
    %cst_105 = arith.constant dense<0.000000e+00> : vector<8x24x24xf32>
    %323 = tpu.matmul %304, %313, %cst_105 {dimension_numbers = #tpu.dot_dimension_numbers<[2], [2], [1], [1], [0, 0, 0, 1, 1, 1], [0], [0]>} : vector<8x24x8xbf16>, vector<8x24x8xbf16>, vector<8x24x24xf32> -> vector<8x24x24xf32>
    "tpu.trace_stop"() : () -> ()
    %cst_106 = arith.constant 0.353553385 : f32
    %324 = vector.broadcast %cst_106 : f32 to vector<8x24x24xf32>
    %325 = arith.mulf %323, %324 : vector<8x24x24xf32>
    %cst_107 = arith.constant dense<0xFF800000> : vector<8x24xf32>
    %326 = vector.multi_reduction <maximumf>, %325, %cst_107 [2] : vector<8x24x24xf32> to vector<8x24xf32>
    %327 = vector.shape_cast %326 : vector<8x24xf32> to vector<8x24x1xf32>
    %328 = vector.broadcast %327 : vector<8x24x1xf32> to vector<8x24x24xf32>
    %329 = arith.subf %325, %328 : vector<8x24x24xf32>
    %330 = math.exp %329 : vector<8x24x24xf32>
    %cst_108 = arith.constant dense<0.000000e+00> : vector<8x24xf32>
    %331 = vector.multi_reduction <add>, %330, %cst_108 [2] : vector<8x24x24xf32> to vector<8x24xf32>
    %332 = vector.shape_cast %331 : vector<8x24xf32> to vector<8x24x1xf32>
    %333 = vector.broadcast %332 : vector<8x24x1xf32> to vector<8x24x24xf32>
    %334 = arith.divf %330, %333 : vector<8x24x24xf32>
    %335 = arith.truncf %334 : vector<8x24x24xf32> to vector<8x24x24xbf16>
    "tpu.trace_start"() <{level = 10 : i32, message = "hqk,hkd->hqd"}> : () -> ()
    %cst_109 = arith.constant dense<0.000000e+00> : vector<8x24x8xf32>
    %336 = tpu.matmul %335, %322, %cst_109 {dimension_numbers = #tpu.dot_dimension_numbers<[2], [1], [1], [2], [0, 0, 0, 1, 1, 2], [0], [0]>} : vector<8x24x24xbf16>, vector<8x24x8xbf16>, vector<8x24x8xf32> -> vector<8x24x8xf32>
    "tpu.trace_stop"() : () -> ()
    %337 = vector.extract_strided_slice %334 {offsets = [0, 0, 0], sizes = [4, 24, 24], strides = [1, 1, 1]} : vector<8x24x24xf32> to vector<4x24x24xf32>
    %c0_110 = arith.constant 0 : index
    %c1_111 = arith.constant 1 : index
    %c0_112 = arith.constant 0 : index
    %c0_113 = arith.constant 0 : index
    %c0_114 = arith.constant 0 : index
    %338 = vector.load %arg21[%c0_110, %c1_111, %c0_112, %c0_113, %c0_114] : memref<2x2x4x24x24xf32, #tpu.memory_space<vmem>>, vector<1x1x4x24x24xf32>
    %339 = vector.shape_cast %338 : vector<1x1x4x24x24xf32> to vector<4x24x24xf32>
    %340 = vector.shape_cast %337 : vector<4x24x24xf32> to vector<1x1x4x24x24xf32>
    tpu.vector_store %arg21[%c0_110, %c1_111, %c0_112, %c0_113, %c0_114], %340 {strides = array<i32>} : memref<2x2x4x24x24xf32, #tpu.memory_space<vmem>>, vector<1x1x4x24x24xf32>,
    %341 = vector.extract_strided_slice %336 {offsets = [0, 0, 0], sizes = [1, 24, 8], strides = [1, 1, 1]} : vector<8x24x8xf32> to vector<1x24x8xf32>
    %342 = vector.shape_cast %341 : vector<1x24x8xf32> to vector<24x8xf32>
    %343 = vector.extract_strided_slice %336 {offsets = [1, 0, 0], sizes = [1, 24, 8], strides = [1, 1, 1]} : vector<8x24x8xf32> to vector<1x24x8xf32>
    %344 = vector.shape_cast %343 : vector<1x24x8xf32> to vector<24x8xf32>
    %345 = vector.extract_strided_slice %336 {offsets = [2, 0, 0], sizes = [1, 24, 8], strides = [1, 1, 1]} : vector<8x24x8xf32> to vector<1x24x8xf32>
    %346 = vector.shape_cast %345 : vector<1x24x8xf32> to vector<24x8xf32>
    %347 = vector.extract_strided_slice %336 {offsets = [3, 0, 0], sizes = [1, 24, 8], strides = [1, 1, 1]} : vector<8x24x8xf32> to vector<1x24x8xf32>
    %348 = vector.shape_cast %347 : vector<1x24x8xf32> to vector<24x8xf32>
    %349 = tpu.concatenate %342, %344, %346, %348 in 1 : vector<24x8xf32>, vector<24x8xf32>, vector<24x8xf32>, vector<24x8xf32> -> vector<24x32xf32>
    %350 = vector.extract_strided_slice %334 {offsets = [4, 0, 0], sizes = [4, 24, 24], strides = [1, 1, 1]} : vector<8x24x24xf32> to vector<4x24x24xf32>
    %c1_115 = arith.constant 1 : index
    %c1_116 = arith.constant 1 : index
    %c0_117 = arith.constant 0 : index
    %c0_118 = arith.constant 0 : index
    %c0_119 = arith.constant 0 : index
    %351 = vector.load %arg21[%c1_115, %c1_116, %c0_117, %c0_118, %c0_119] : memref<2x2x4x24x24xf32, #tpu.memory_space<vmem>>, vector<1x1x4x24x24xf32>
    %352 = vector.shape_cast %351 : vector<1x1x4x24x24xf32> to vector<4x24x24xf32>
    %353 = vector.shape_cast %350 : vector<4x24x24xf32> to vector<1x1x4x24x24xf32>
    tpu.vector_store %arg21[%c1_115, %c1_116, %c0_117, %c0_118, %c0_119], %353 {strides = array<i32>} : memref<2x2x4x24x24xf32, #tpu.memory_space<vmem>>, vector<1x1x4x24x24xf32>,
    %354 = vector.extract_strided_slice %336 {offsets = [4, 0, 0], sizes = [1, 24, 8], strides = [1, 1, 1]} : vector<8x24x8xf32> to vector<1x24x8xf32>
    %355 = vector.shape_cast %354 : vector<1x24x8xf32> to vector<24x8xf32>
    %356 = vector.extract_strided_slice %336 {offsets = [5, 0, 0], sizes = [1, 24, 8], strides = [1, 1, 1]} : vector<8x24x8xf32> to vector<1x24x8xf32>
    %357 = vector.shape_cast %356 : vector<1x24x8xf32> to vector<24x8xf32>
    %358 = vector.extract_strided_slice %336 {offsets = [6, 0, 0], sizes = [1, 24, 8], strides = [1, 1, 1]} : vector<8x24x8xf32> to vector<1x24x8xf32>
    %359 = vector.shape_cast %358 : vector<1x24x8xf32> to vector<24x8xf32>
    %360 = vector.extract_strided_slice %336 {offsets = [7, 0, 0], sizes = [1, 24, 8], strides = [1, 1, 1]} : vector<8x24x8xf32> to vector<1x24x8xf32>
    %361 = vector.shape_cast %360 : vector<1x24x8xf32> to vector<24x8xf32>
    %362 = tpu.concatenate %355, %357, %359, %361 in 1 : vector<24x8xf32>, vector<24x8xf32>, vector<24x8xf32>, vector<24x8xf32> -> vector<24x32xf32>
    %363 = tpu.concatenate %349, %362 in 0 : vector<24x32xf32>, vector<24x32xf32> -> vector<48x32xf32>
    %364 = arith.truncf %363 : vector<48x32xf32> to vector<48x32xbf16>
    %c1_120 = arith.constant 1 : index
    %c0_121 = arith.constant 0 : index
    %c0_122 = arith.constant 0 : index
    %365 = vector.load %arg10[%c1_120, %c0_121, %c0_122] : memref<2x32x32xbf16, #tpu.memory_space<vmem>>, vector<1x32x32xbf16>
    %366 = vector.shape_cast %365 : vector<1x32x32xbf16> to vector<32x32xbf16>
    %cst_123 = arith.constant dense<0.000000e+00> : vector<48x32xf32>
    %367 = tpu.matmul %364, %366, %cst_123 {dimension_numbers = #tpu.dot_dimension_numbers<[1], [0], [0], [1], [0, 0, 1, 1], [], []>} : vector<48x32xbf16>, vector<32x32xbf16>, vector<48x32xf32> -> vector<48x32xf32>
    %c1_124 = arith.constant 1 : index
    %c0_125 = arith.constant 0 : index
    %c0_126 = arith.constant 0 : index
    %368 = vector.load %arg11[%c1_124, %c0_125, %c0_126] : memref<2x1x32xf32, #tpu.memory_space<vmem>>, vector<1x1x32xf32>
    %369 = vector.shape_cast %368 : vector<1x1x32xf32> to vector<1x32xf32>
    %370 = vector.broadcast %369 : vector<1x32xf32> to vector<48x32xf32>
    %371 = arith.addf %367, %370 : vector<48x32xf32>
    %372 = arith.addf %234, %371 : vector<48x32xf32>
    %c1_127 = arith.constant 1 : index
    %c0_128 = arith.constant 0 : index
    %c0_129 = arith.constant 0 : index
    %373 = vector.load %arg12[%c1_127, %c0_128, %c0_129] : memref<2x1x32xf32, #tpu.memory_space<vmem>>, vector<1x1x32xf32>
    %374 = vector.shape_cast %373 : vector<1x1x32xf32> to vector<1x32xf32>
    %c1_130 = arith.constant 1 : index
    %c0_131 = arith.constant 0 : index
    %c0_132 = arith.constant 0 : index
    %375 = vector.load %arg13[%c1_130, %c0_131, %c0_132] : memref<2x1x32xf32, #tpu.memory_space<vmem>>, vector<1x1x32xf32>
    %376 = vector.shape_cast %375 : vector<1x1x32xf32> to vector<1x32xf32>
    %cst_133 = arith.constant dense<0.000000e+00> : vector<48xf32>
    %377 = vector.multi_reduction <add>, %372, %cst_133 [1] : vector<48x32xf32> to vector<48xf32>
    %378 = vector.shape_cast %377 : vector<48xf32> to vector<48x1xf32>
    %cst_134 = arith.constant 3.200000e+01 : f32
    %379 = vector.broadcast %cst_134 : f32 to vector<48x1xf32>
    %380 = arith.divf %378, %379 : vector<48x1xf32>
    %381 = vector.broadcast %380 : vector<48x1xf32> to vector<48x32xf32>
    %382 = arith.subf %372, %381 : vector<48x32xf32>
    %383 = arith.mulf %382, %382 : vector<48x32xf32>
    %cst_135 = arith.constant dense<0.000000e+00> : vector<48xf32>
    %384 = vector.multi_reduction <add>, %383, %cst_135 [1] : vector<48x32xf32> to vector<48xf32>
    %385 = vector.shape_cast %384 : vector<48xf32> to vector<48x1xf32>
    %cst_136 = arith.constant 3.200000e+01 : f32
    %386 = vector.broadcast %cst_136 : f32 to vector<48x1xf32>
    %387 = arith.divf %385, %386 : vector<48x1xf32>
    %388 = vector.broadcast %380 : vector<48x1xf32> to vector<48x32xf32>
    %389 = arith.subf %372, %388 : vector<48x32xf32>
    %cst_137 = arith.constant 9.99999997E-7 : f32
    %390 = vector.broadcast %cst_137 : f32 to vector<48x1xf32>
    %391 = arith.addf %387, %390 : vector<48x1xf32>
    %392 = math.rsqrt %391 : vector<48x1xf32>
    %393 = vector.broadcast %392 : vector<48x1xf32> to vector<48x32xf32>
    %394 = arith.mulf %389, %393 : vector<48x32xf32>
    %395 = vector.broadcast %374 : vector<1x32xf32> to vector<48x32xf32>
    %396 = arith.mulf %394, %395 : vector<48x32xf32>
    %397 = vector.broadcast %376 : vector<1x32xf32> to vector<48x32xf32>
    %398 = arith.addf %396, %397 : vector<48x32xf32>
    %399 = arith.truncf %398 : vector<48x32xf32> to vector<48x32xbf16>
    %c1_138 = arith.constant 1 : index
    %c0_139 = arith.constant 0 : index
    %c0_140 = arith.constant 0 : index
    %400 = vector.load %arg14[%c1_138, %c0_139, %c0_140] : memref<2x32x64xbf16, #tpu.memory_space<vmem>>, vector<1x32x64xbf16>
    %401 = vector.shape_cast %400 : vector<1x32x64xbf16> to vector<32x64xbf16>
    %cst_141 = arith.constant dense<0.000000e+00> : vector<48x64xf32>
    %402 = tpu.matmul %399, %401, %cst_141 {dimension_numbers = #tpu.dot_dimension_numbers<[1], [0], [0], [1], [0, 0, 1, 1], [], []>} : vector<48x32xbf16>, vector<32x64xbf16>, vector<48x64xf32> -> vector<48x64xf32>
    %c1_142 = arith.constant 1 : index
    %c0_143 = arith.constant 0 : index
    %c0_144 = arith.constant 0 : index
    %403 = vector.load %arg15[%c1_142, %c0_143, %c0_144] : memref<2x1x64xf32, #tpu.memory_space<vmem>>, vector<1x1x64xf32>
    %404 = vector.shape_cast %403 : vector<1x1x64xf32> to vector<1x64xf32>
    %405 = vector.broadcast %404 : vector<1x64xf32> to vector<48x64xf32>
    %406 = arith.addf %402, %405 : vector<48x64xf32>
    %cst_145 = arith.constant 5.000000e-01 : f32
    %407 = vector.broadcast %cst_145 : f32 to vector<48x64xf32>
    %408 = arith.mulf %407, %406 : vector<48x64xf32>
    %cst_146 = arith.constant 0.707106769 : f32
    %409 = vector.broadcast %cst_146 : f32 to vector<48x64xf32>
    %410 = arith.mulf %406, %409 : vector<48x64xf32>
    %411 = math.absf %410 : vector<48x64xf32>
    %cst_147 = arith.constant 0.327591091 : f32
    %412 = vector.broadcast %cst_147 : f32 to vector<48x64xf32>
    %413 = arith.mulf %412, %411 : vector<48x64xf32>
    %cst_148 = arith.constant 1.000000e+00 : f32
    %414 = vector.broadcast %cst_148 : f32 to vector<48x64xf32>
    %415 = arith.addf %414, %413 : vector<48x64xf32>
    %416 = tpu.reciprocal %415 {approx = true} : vector<48x64xf32> -> vector<48x64xf32>
    %cst_149 = arith.constant 1.06140542 : f32
    %417 = vector.broadcast %cst_149 : f32 to vector<48x64xf32>
    %418 = arith.mulf %416, %417 : vector<48x64xf32>
    %cst_150 = arith.constant -1.45315206 : f32
    %419 = vector.broadcast %cst_150 : f32 to vector<48x64xf32>
    %420 = arith.addf %419, %418 : vector<48x64xf32>
    %421 = arith.mulf %416, %420 : vector<48x64xf32>
    %cst_151 = arith.constant 1.42141378 : f32
    %422 = vector.broadcast %cst_151 : f32 to vector<48x64xf32>
    %423 = arith.addf %422, %421 : vector<48x64xf32>
    %424 = arith.mulf %416, %423 : vector<48x64xf32>
    %cst_152 = arith.constant -0.284496725 : f32
    %425 = vector.broadcast %cst_152 : f32 to vector<48x64xf32>
    %426 = arith.addf %425, %424 : vector<48x64xf32>
    %427 = arith.mulf %416, %426 : vector<48x64xf32>
    %cst_153 = arith.constant 0.254829586 : f32
    %428 = vector.broadcast %cst_153 : f32 to vector<48x64xf32>
    %429 = arith.addf %428, %427 : vector<48x64xf32>
    %430 = arith.mulf %416, %429 : vector<48x64xf32>
    %cst_154 = arith.constant 0.000000e+00 : f32
    %431 = vector.broadcast %cst_154 : f32 to vector<48x64xf32>
    %432 = arith.subf %431, %411 : vector<48x64xf32>
    %433 = arith.mulf %432, %411 : vector<48x64xf32>
    %434 = math.exp %433 : vector<48x64xf32>
    %435 = arith.mulf %430, %434 : vector<48x64xf32>
    %cst_155 = arith.constant 1.000000e+00 : f32
    %436 = vector.broadcast %cst_155 : f32 to vector<48x64xf32>
    %437 = arith.subf %436, %435 : vector<48x64xf32>
    %cst_156 = arith.constant 0.000000e+00 : f32
    %438 = vector.broadcast %cst_156 : f32 to vector<48x64xf32>
    %439 = arith.cmpf oge, %410, %438 : vector<48x64xf32>
    %cst_157 = arith.constant 0.000000e+00 : f32
    %440 = vector.broadcast %cst_157 : f32 to vector<48x64xf32>
    %441 = arith.subf %440, %437 : vector<48x64xf32>
    %442 = arith.select %439, %437, %441 : vector<48x64xi1>, vector<48x64xf32>
    %cst_158 = arith.constant 1.000000e+00 : f32
    %443 = vector.broadcast %cst_158 : f32 to vector<48x64xf32>
    %444 = arith.addf %443, %442 : vector<48x64xf32>
    %445 = arith.mulf %408, %444 : vector<48x64xf32>
    %446 = arith.truncf %445 : vector<48x64xf32> to vector<48x64xbf16>
    %c1_159 = arith.constant 1 : index
    %c0_160 = arith.constant 0 : index
    %c0_161 = arith.constant 0 : index
    %447 = vector.load %arg16[%c1_159, %c0_160, %c0_161] : memref<2x64x32xbf16, #tpu.memory_space<vmem>>, vector<1x64x32xbf16>
    %448 = vector.shape_cast %447 : vector<1x64x32xbf16> to vector<64x32xbf16>
    %cst_162 = arith.constant dense<0.000000e+00> : vector<48x32xf32>
    %449 = tpu.matmul %446, %448, %cst_162 {dimension_numbers = #tpu.dot_dimension_numbers<[1], [0], [0], [1], [0, 0, 1, 1], [], []>} : vector<48x64xbf16>, vector<64x32xbf16>, vector<48x32xf32> -> vector<48x32xf32>
    %450 = arith.addf %372, %449 : vector<48x32xf32>
    %c1_163 = arith.constant 1 : index
    %c0_164 = arith.constant 0 : index
    %c0_165 = arith.constant 0 : index
    %451 = vector.load %arg17[%c1_163, %c0_164, %c0_165] : memref<2x1x32xf32, #tpu.memory_space<vmem>>, vector<1x1x32xf32>
    %452 = vector.shape_cast %451 : vector<1x1x32xf32> to vector<1x32xf32>
    %453 = vector.broadcast %452 : vector<1x32xf32> to vector<48x32xf32>
    %454 = arith.addf %450, %453 : vector<48x32xf32>
    %c0_166 = arith.constant 0 : index
    %c0_167 = arith.constant 0 : index
    %455 = vector.load %arg18[%c0_166, %c0_167] : memref<1x32xf32, #tpu.memory_space<vmem>>, vector<1x32xf32>
    %c0_168 = arith.constant 0 : index
    %c0_169 = arith.constant 0 : index
    %456 = vector.load %arg19[%c0_168, %c0_169] : memref<1x32xf32, #tpu.memory_space<vmem>>, vector<1x32xf32>
    %cst_170 = arith.constant dense<0.000000e+00> : vector<48xf32>
    %457 = vector.multi_reduction <add>, %454, %cst_170 [1] : vector<48x32xf32> to vector<48xf32>
    %458 = vector.shape_cast %457 : vector<48xf32> to vector<48x1xf32>
    %cst_171 = arith.constant 3.200000e+01 : f32
    %459 = vector.broadcast %cst_171 : f32 to vector<48x1xf32>
    %460 = arith.divf %458, %459 : vector<48x1xf32>
    %461 = vector.broadcast %460 : vector<48x1xf32> to vector<48x32xf32>
    %462 = arith.subf %454, %461 : vector<48x32xf32>
    %463 = arith.mulf %462, %462 : vector<48x32xf32>
    %cst_172 = arith.constant dense<0.000000e+00> : vector<48xf32>
    %464 = vector.multi_reduction <add>, %463, %cst_172 [1] : vector<48x32xf32> to vector<48xf32>
    %465 = vector.shape_cast %464 : vector<48xf32> to vector<48x1xf32>
    %cst_173 = arith.constant 3.200000e+01 : f32
    %466 = vector.broadcast %cst_173 : f32 to vector<48x1xf32>
    %467 = arith.divf %465, %466 : vector<48x1xf32>
    %468 = vector.broadcast %460 : vector<48x1xf32> to vector<48x32xf32>
    %469 = arith.subf %454, %468 : vector<48x32xf32>
    %cst_174 = arith.constant 9.99999997E-7 : f32
    %470 = vector.broadcast %cst_174 : f32 to vector<48x1xf32>
    %471 = arith.addf %467, %470 : vector<48x1xf32>
    %472 = math.rsqrt %471 : vector<48x1xf32>
    %473 = vector.broadcast %472 : vector<48x1xf32> to vector<48x32xf32>
    %474 = arith.mulf %469, %473 : vector<48x32xf32>
    %475 = vector.broadcast %455 : vector<1x32xf32> to vector<48x32xf32>
    %476 = arith.mulf %474, %475 : vector<48x32xf32>
    %477 = vector.broadcast %456 : vector<1x32xf32> to vector<48x32xf32>
    %478 = arith.addf %476, %477 : vector<48x32xf32>
    %c0_175 = arith.constant 0 : index
    %c0_176 = arith.constant 0 : index
    %479 = vector.load %arg20[%c0_175, %c0_176] : memref<48x32xf32, #tpu.memory_space<vmem>>, vector<48x32xf32>
    tpu.vector_store %arg20[%c0_175, %c0_176], %478 {strides = array<i32>} : memref<48x32xf32, #tpu.memory_space<vmem>>, vector<48x32xf32>,
    return
  }
  func.func @transform_0(%arg0: i32) -> (i32, i32) {
    %c0_i32 = arith.constant 0 : i32
    %c0_i32_0 = arith.constant 0 : i32
    return %arg0, %c0_i32 : i32, i32
  }
  func.func @transform_1(%arg0: i32) -> (i32, i32) {
    %c0_i32 = arith.constant 0 : i32
    %c0_i32_0 = arith.constant 0 : i32
    return %arg0, %c0_i32 : i32, i32
  }
  func.func @transform_2(%arg0: i32) -> (i32, i32) {
    %c0_i32 = arith.constant 0 : i32
    %c0_i32_0 = arith.constant 0 : i32
    %c0_i32_1 = arith.constant 0 : i32
    return %c0_i32, %c0_i32_0 : i32, i32
  }
  func.func @transform_3(%arg0: i32) -> (i32, i32) {
    %c0_i32 = arith.constant 0 : i32
    %c0_i32_0 = arith.constant 0 : i32
    %c0_i32_1 = arith.constant 0 : i32
    return %c0_i32, %c0_i32_0 : i32, i32
  }
  func.func @transform_4(%arg0: i32) -> (i32, i32) {
    %c0_i32 = arith.constant 0 : i32
    %c0_i32_0 = arith.constant 0 : i32
    %c0_i32_1 = arith.constant 0 : i32
    return %c0_i32, %c0_i32_0 : i32, i32
  }
  func.func @transform_5(%arg0: i32) -> (i32, i32, i32) {
    %c0_i32 = arith.constant 0 : i32
    %c0_i32_0 = arith.constant 0 : i32
    %c0_i32_1 = arith.constant 0 : i32
    %c0_i32_2 = arith.constant 0 : i32
    return %c0_i32, %c0_i32_0, %c0_i32_1 : i32, i32, i32
  }
  func.func @transform_6(%arg0: i32) -> (i32, i32, i32) {
    %c0_i32 = arith.constant 0 : i32
    %c0_i32_0 = arith.constant 0 : i32
    %c0_i32_1 = arith.constant 0 : i32
    %c0_i32_2 = arith.constant 0 : i32
    return %c0_i32, %c0_i32_0, %c0_i32_1 : i32, i32, i32
  }
  func.func @transform_7(%arg0: i32) -> (i32, i32, i32) {
    %c0_i32 = arith.constant 0 : i32
    %c0_i32_0 = arith.constant 0 : i32
    %c0_i32_1 = arith.constant 0 : i32
    %c0_i32_2 = arith.constant 0 : i32
    return %c0_i32, %c0_i32_0, %c0_i32_1 : i32, i32, i32
  }
  func.func @transform_8(%arg0: i32) -> (i32, i32, i32) {
    %c0_i32 = arith.constant 0 : i32
    %c0_i32_0 = arith.constant 0 : i32
    %c0_i32_1 = arith.constant 0 : i32
    %c0_i32_2 = arith.constant 0 : i32
    return %c0_i32, %c0_i32_0, %c0_i32_1 : i32, i32, i32
  }
  func.func @transform_9(%arg0: i32) -> (i32, i32, i32) {
    %c0_i32 = arith.constant 0 : i32
    %c0_i32_0 = arith.constant 0 : i32
    %c0_i32_1 = arith.constant 0 : i32
    %c0_i32_2 = arith.constant 0 : i32
    return %c0_i32, %c0_i32_0, %c0_i32_1 : i32, i32, i32
  }
  func.func @transform_10(%arg0: i32) -> (i32, i32, i32) {
    %c0_i32 = arith.constant 0 : i32
    %c0_i32_0 = arith.constant 0 : i32
    %c0_i32_1 = arith.constant 0 : i32
    %c0_i32_2 = arith.constant 0 : i32
    return %c0_i32, %c0_i32_0, %c0_i32_1 : i32, i32, i32
  }
  func.func @transform_11(%arg0: i32) -> (i32, i32, i32) {
    %c0_i32 = arith.constant 0 : i32
    %c0_i32_0 = arith.constant 0 : i32
    %c0_i32_1 = arith.constant 0 : i32
    %c0_i32_2 = arith.constant 0 : i32
    return %c0_i32, %c0_i32_0, %c0_i32_1 : i32, i32, i32
  }
  func.func @transform_12(%arg0: i32) -> (i32, i32, i32) {
    %c0_i32 = arith.constant 0 : i32
    %c0_i32_0 = arith.constant 0 : i32
    %c0_i32_1 = arith.constant 0 : i32
    %c0_i32_2 = arith.constant 0 : i32
    return %c0_i32, %c0_i32_0, %c0_i32_1 : i32, i32, i32
  }
  func.func @transform_13(%arg0: i32) -> (i32, i32, i32) {
    %c0_i32 = arith.constant 0 : i32
    %c0_i32_0 = arith.constant 0 : i32
    %c0_i32_1 = arith.constant 0 : i32
    %c0_i32_2 = arith.constant 0 : i32
    return %c0_i32, %c0_i32_0, %c0_i32_1 : i32, i32, i32
  }
  func.func @transform_14(%arg0: i32) -> (i32, i32, i32) {
    %c0_i32 = arith.constant 0 : i32
    %c0_i32_0 = arith.constant 0 : i32
    %c0_i32_1 = arith.constant 0 : i32
    %c0_i32_2 = arith.constant 0 : i32
    return %c0_i32, %c0_i32_0, %c0_i32_1 : i32, i32, i32
  }
  func.func @transform_15(%arg0: i32) -> (i32, i32, i32) {
    %c0_i32 = arith.constant 0 : i32
    %c0_i32_0 = arith.constant 0 : i32
    %c0_i32_1 = arith.constant 0 : i32
    %c0_i32_2 = arith.constant 0 : i32
    return %c0_i32, %c0_i32_0, %c0_i32_1 : i32, i32, i32
  }
  func.func @transform_16(%arg0: i32) -> (i32, i32, i32) {
    %c0_i32 = arith.constant 0 : i32
    %c0_i32_0 = arith.constant 0 : i32
    %c0_i32_1 = arith.constant 0 : i32
    %c0_i32_2 = arith.constant 0 : i32
    return %c0_i32, %c0_i32_0, %c0_i32_1 : i32, i32, i32
  }
  func.func @transform_17(%arg0: i32) -> (i32, i32) {
    %c0_i32 = arith.constant 0 : i32
    %c0_i32_0 = arith.constant 0 : i32
    %c0_i32_1 = arith.constant 0 : i32
    return %c0_i32, %c0_i32_0 : i32, i32
  }
  func.func @transform_18(%arg0: i32) -> (i32, i32) {
    %c0_i32 = arith.constant 0 : i32
    %c0_i32_0 = arith.constant 0 : i32
    %c0_i32_1 = arith.constant 0 : i32
    return %c0_i32, %c0_i32_0 : i32, i32
  }
  func.func @transform_19(%arg0: i32) -> (i32, i32) {
    %c0_i32 = arith.constant 0 : i32
    %c0_i32_0 = arith.constant 0 : i32
    return %arg0, %c0_i32 : i32, i32
  }
  func.func @transform_20(%arg0: i32) -> (i32, i32, i32, i32, i32) {
    %c0_i32 = arith.constant 0 : i32
    %c0_i32_0 = arith.constant 0 : i32
    %c0_i32_1 = arith.constant 0 : i32
    %c0_i32_2 = arith.constant 0 : i32
    %c0_i32_3 = arith.constant 0 : i32
    return %arg0, %c0_i32, %c0_i32_0, %c0_i32_1, %c0_i32_2 : i32, i32, i32, i32, i32
  }
}

</mosaic_0001>

<llo_original>
// kernel: tpu_custom_call.1
$region0: #{tpu_custom_call.1}
  #allocation0 [shape = 'u32[]', space=smem, size = 0x4, offset = 0x4, fixed_abs, tag = 'smem constant byte address 0x4 - core index']
  #allocation1 [shape = 'u32[144,128]{1,0:T(1,128)}', space=vmem, size = 0x12000, scoped, tag = 'internal scratch']
  %s0 = inlined_call_operand.vmem [shape: f32[32,64], index: 0, kind: input, shape index: {}]
  %s1 = inlined_call_operand.hbm [shape: f32[16,32], index: 1, kind: input, shape index: {}]
  %s2 = inlined_call_operand.vmem [shape: bf16[64,32], index: 2, kind: input, shape index: {}]
  %s3 = inlined_call_operand.hbm [shape: f32[1,32], index: 3, kind: input, shape index: {}]
  %s4 = inlined_call_operand.vmem [shape: f32[32,32], index: 4, kind: input, shape index: {}]
  %s5 = inlined_call_operand.hbm [shape: f32[2,1,32], index: 5, kind: input, shape index: {}]
  %s6 = inlined_call_operand.hbm [shape: f32[2,1,32], index: 6, kind: input, shape index: {}]
  %s7 = inlined_call_operand.vmem [shape: bf16[2,32,96], index: 7, kind: input, shape index: {}]
  %s8 = inlined_call_operand.hbm [shape: f32[2,1,96], index: 8, kind: input, shape index: {}]
  %s9 = inlined_call_operand.vmem [shape: bf16[2,32,32], index: 9, kind: input, shape index: {}]
  %s10 = inlined_call_operand.vmem [shape: f32[2,1,32], index: 10, kind: input, shape index: {}]
  %s11 = inlined_call_operand.vmem [shape: f32[2,1,32], index: 11, kind: input, shape index: {}]
  %s12 = inlined_call_operand.hbm [shape: f32[2,1,32], index: 12, kind: input, shape index: {}]
  %s13 = inlined_call_operand.vmem [shape: bf16[2,32,64], index: 13, kind: input, shape index: {}]
  %s14 = inlined_call_operand.vmem [shape: f32[2,1,64], index: 14, kind: input, shape index: {}]
  %s15 = inlined_call_operand.vmem [shape: bf16[2,64,32], index: 15, kind: input, shape index: {}]
  %s16 = inlined_call_operand.vmem [shape: f32[2,1,32], index: 16, kind: input, shape index: {}]
  %s17 = inlined_call_operand.vmem [shape: f32[1,32], index: 17, kind: input, shape index: {}]
  %s18 = inlined_call_operand.vmem [shape: f32[1,32], index: 18, kind: input, shape index: {}]
  %s19 = inlined_call_operand.vmem [shape: f32[48,32], index: 19, kind: output, shape index: {0}]
  %s20 = inlined_call_operand.hbm [shape: f32[2,2,4,24,24], index: 20, kind: output, shape index: {1}]
  %21 = xla_tuple %s19, %s20
  %s22 = sld [smem:[#allocation0]]
  $region118: #{tpu_custom_call.1} parent=0
    _
  %s24 = ssub.s32 1, %s22
  %s25 = scalar_select 0, %s24, %s22
  $region1: #{tpu_custom_call.1} parent=0
    #allocation2 [shape = 'u8[8192]{0}', space=vmem, size = 0x2000, scoped, tag = 'input window, operand 1, single buffered']
    #allocation3 [shape = 's32[1]{0}', space=sflag, size = 0x4, scoped, tag = 'scoped memory for tpu_custom_call.1']
    #allocation4 [shape = 's32[1]{0}', space=sflag, size = 0x4, scoped, tag = 'scoped memory for tpu_custom_call.1']
    #allocation5 [shape = 'u8[512]{0}', space=vmem, size = 0x400, scoped, tag = 'input window, operand 3, single buffered']
    #allocation6 [shape = 's32[1]{0}', space=sflag, size = 0x4, scoped, tag = 'scoped memory for tpu_custom_call.1']
    #allocation7 [shape = 'u8[1024]{0}', space=vmem, size = 0x400, scoped, tag = 'input window, operand 5, single buffered']
    #allocation8 [shape = 'u8[1024]{0}', space=vmem, size = 0x400, scoped, tag = 'input window, operand 6, single buffered']
    #allocation9 [shape = 's32[1]{0}', space=sflag, size = 0x4, scoped, tag = 'scoped memory for tpu_custom_call.1']
    #allocation10 [shape = 'u8[1024]{0}', space=vmem, size = 0x400, scoped, tag = 'input window, operand 8, single buffered']
    #allocation11 [shape = 'u8[1024]{0}', space=vmem, size = 0x400, scoped, tag = 'input window, operand 12, single buffered']
    #allocation12 [shape = 's32[1]{0}', space=sflag, size = 0x4, scoped, tag = 'scoped memory for tpu_custom_call.1']
    #allocation13 [shape = 'u8[196608]{0}', space=vmem, size = 0x30000, scoped, tag = 'output window, operand 1, single buffered']
    %26 = vsyncpa [#allocation3], 0
    %27 = vsyncpa [#allocation6], 0
    %28 = vsyncpa [#allocation9], 0
    %29 = vsyncpa [#allocation12], 0
    %30 = vsyncpa [#allocation4], 0
    // Predicated region
    $region2: #{tpu_custom_call.1} parent=1 // pred_check
      _
    $region3: #{tpu_custom_call.1} parent=1 // pred_check_branch
      %32 = sbr.rel (0) target = $region5
    $region4: #{tpu_custom_call.1} parent=1 // pred_region
      _
    $region5: #{tpu_custom_call.1} parent=1 // pred_fallthru
      _
    // Predicated region
    $region6: #{tpu_custom_call.1} parent=1 // pred_check
      _
    $region7: #{tpu_custom_call.1} parent=1 // pred_check_branch
      %34 = sbr.rel (0) target = $region9
    $region8: #{tpu_custom_call.1} parent=1 // pred_region
      %s36 = ssub.s32 256, 256
      %37 = vsyncadd [#allocation3], %s36
      %s38 = sshll.u32 [#allocation2], 4
      %s39 = int_to_ptr.vmem [resolvable:$true] %s38
      %44 = dma.hbm_to_vmem [thread:$0]  %s1, 256, %s39, [#allocation3], 128, 128, 8
    $region9: #{tpu_custom_call.1} parent=1 // pred_fallthru
      _
    // Predicated region
    $region10: #{tpu_custom_call.1} parent=1 // pred_check
      _
    $region11: #{tpu_custom_call.1} parent=1 // pred_check_branch
      %46 = sbr.rel (0) target = $region13
    $region12: #{tpu_custom_call.1} parent=1 // pred_region
      _
    $region13: #{tpu_custom_call.1} parent=1 // pred_fallthru
      _
    // Predicated region
    $region14: #{tpu_custom_call.1} parent=1 // pred_check
      _
    $region15: #{tpu_custom_call.1} parent=1 // pred_check_branch
      %48 = sbr.rel (0) target = $region17
    $region16: #{tpu_custom_call.1} parent=1 // pred_region
      %s50 = ssub.s32 16, 16
      %51 = vsyncadd [#allocation6], %s50
      %s53 = sshll.u32 [#allocation5], 4
      %s54 = int_to_ptr.vmem [resolvable:$true] %s53
      %56 = dma.hbm_to_vmem [thread:$0]  %s3, 16, %s54, [#allocation6]
    $region17: #{tpu_custom_call.1} parent=1 // pred_fallthru
      _
    // Predicated region
    $region18: #{tpu_custom_call.1} parent=1 // pred_check
      _
    $region19: #{tpu_custom_call.1} parent=1 // pred_check_branch
      %58 = sbr.rel (0) target = $region21
    $region20: #{tpu_custom_call.1} parent=1 // pred_region
      _
    $region21: #{tpu_custom_call.1} parent=1 // pred_fallthru
      _
    // Predicated region
    $region22: #{tpu_custom_call.1} parent=1 // pred_check
      _
    $region23: #{tpu_custom_call.1} parent=1 // pred_check_branch
      %60 = sbr.rel (0) target = $region25
    $region24: #{tpu_custom_call.1} parent=1 // pred_region
      %s62 = ssub.s32 32, 32
      %63 = vsyncadd [#allocation6], %s62
      %s64 = sshll.u32 [#allocation7], 4
      %s65 = int_to_ptr.vmem [resolvable:$true] %s64
      %70 = dma.hbm_to_vmem [thread:$0]  %s5, 32, %s65, [#allocation6], 16, 16, 1
    $region25: #{tpu_custom_call.1} parent=1 // pred_fallthru
      _
    // Predicated region
    $region26: #{tpu_custom_call.1} parent=1 // pred_check
      _
    $region27: #{tpu_custom_call.1} parent=1 // pred_check_branch
      %72 = sbr.rel (0) target = $region29
    $region28: #{tpu_custom_call.1} parent=1 // pred_region
      %s74 = ssub.s32 32, 32
      %75 = vsyncadd [#allocation9], %s74
      %s76 = sshll.u32 [#allocation8], 4
      %s77 = int_to_ptr.vmem [resolvable:$true] %s76
      %82 = dma.hbm_to_vmem [thread:$0]  %s6, 32, %s77, [#allocation9], 16, 16, 1
    $region29: #{tpu_custom_call.1} parent=1 // pred_fallthru
      _
    // Predicated region
    $region30: #{tpu_custom_call.1} parent=1 // pred_check
      _
    $region31: #{tpu_custom_call.1} parent=1 // pred_check_branch
      %84 = sbr.rel (0) target = $region33
    $region32: #{tpu_custom_call.1} parent=1 // pred_region
      _
    $region33: #{tpu_custom_call.1} parent=1 // pred_fallthru
      _
    // Predicated region
    $region34: #{tpu_custom_call.1} parent=1 // pred_check
      _
    $region35: #{tpu_custom_call.1} parent=1 // pred_check_branch
      %86 = sbr.rel (0) target = $region37
    $region36: #{tpu_custom_call.1} parent=1 // pred_region
      %s88 = ssub.s32 32, 32
      %89 = vsyncadd [#allocation9], %s88
      %s90 = sshll.u32 [#allocation10], 4
      %s91 = int_to_ptr.vmem [resolvable:$true] %s90
      %96 = dma.hbm_to_vmem [thread:$0]  %s8, 32, %s91, [#allocation9], 16, 16, 1
    $region37: #{tpu_custom_call.1} parent=1 // pred_fallthru
      _
    // Predicated region
    $region38: #{tpu_custom_call.1} parent=1 // pred_check
      _
    $region39: #{tpu_custom_call.1} parent=1 // pred_check_branch
      %98 = sbr.rel (0) target = $region41
    $region40: #{tpu_custom_call.1} parent=1 // pred_region
      _
    $region41: #{tpu_custom_call.1} parent=1 // pred_fallthru
      _
    // Predicated region
    $region42: #{tpu_custom_call.1} parent=1 // pred_check
      _
    $region43: #{tpu_custom_call.1} parent=1 // pred_check_branch
      %100 = sbr.rel (0) target = $region45
    $region44: #{tpu_custom_call.1} parent=1 // pred_region
      _
    $region45: #{tpu_custom_call.1} parent=1 // pred_fallthru
      _
    // Predicated region
    $region46: #{tpu_custom_call.1} parent=1 // pred_check
      _
    $region47: #{tpu_custom_call.1} parent=1 // pred_check_branch
      %102 = sbr.rel (0) target = $region49
    $region48: #{tpu_custom_call.1} parent=1 // pred_region
      _
    $region49: #{tpu_custom_call.1} parent=1 // pred_fallthru
      _
    // Predicated region
    $region50: #{tpu_custom_call.1} parent=1 // pred_check
      _
    $region51: #{tpu_custom_call.1} parent=1 // pred_check_branch
      %104 = sbr.rel (0) target = $region53
    $region52: #{tpu_custom_call.1} parent=1 // pred_region
      %s106 = ssub.s32 32, 32
      %107 = vsyncadd [#allocation12], %s106
      %s108 = sshll.u32 [#allocation11], 4
      %s109 = int_to_ptr.vmem [resolvable:$true] %s108
      %114 = dma.hbm_to_vmem [thread:$0]  %s12, 32, %s109, [#allocation12], 16, 16, 1
    $region53: #{tpu_custom_call.1} parent=1 // pred_fallthru
      _
    // Predicated region
    $region54: #{tpu_custom_call.1} parent=1 // pred_check
      _
    $region55: #{tpu_custom_call.1} parent=1 // pred_check_branch
      %116 = sbr.rel (0) target = $region57
    $region56: #{tpu_custom_call.1} parent=1 // pred_region
      _
    $region57: #{tpu_custom_call.1} parent=1 // pred_fallthru
      _
    // Predicated region
    $region58: #{tpu_custom_call.1} parent=1 // pred_check
      _
    $region59: #{tpu_custom_call.1} parent=1 // pred_check_branch
      %118 = sbr.rel (0) target = $region61
    $region60: #{tpu_custom_call.1} parent=1 // pred_region
      _
    $region61: #{tpu_custom_call.1} parent=1 // pred_fallthru
      _
    // Predicated region
    $region62: #{tpu_custom_call.1} parent=1 // pred_check
      _
    $region63: #{tpu_custom_call.1} parent=1 // pred_check_branch
      %120 = sbr.rel (0) target = $region65
    $region64: #{tpu_custom_call.1} parent=1 // pred_region
      _
    $region65: #{tpu_custom_call.1} parent=1 // pred_fallthru
      _
    // Predicated region
    $region66: #{tpu_custom_call.1} parent=1 // pred_check
      _
    $region67: #{tpu_custom_call.1} parent=1 // pred_check_branch
      %122 = sbr.rel (0) target = $region69
    $region68: #{tpu_custom_call.1} parent=1 // pred_region
      _
    $region69: #{tpu_custom_call.1} parent=1 // pred_fallthru
      _
    // Predicated region
    $region70: #{tpu_custom_call.1} parent=1 // pred_check
      _
    $region71: #{tpu_custom_call.1} parent=1 // pred_check_branch
      %124 = sbr.rel (0) target = $region73
    $region72: #{tpu_custom_call.1} parent=1 // pred_region
      _
    $region73: #{tpu_custom_call.1} parent=1 // pred_fallthru
      _
    // Predicated region
    $region74: #{tpu_custom_call.1} parent=1 // pred_check
      _
    $region75: #{tpu_custom_call.1} parent=1 // pred_check_branch
      %126 = sbr.rel (0) target = $region77
    $region76: #{tpu_custom_call.1} parent=1 // pred_region
      _
    $region77: #{tpu_custom_call.1} parent=1 // pred_fallthru
      _
    // Predicated region
    $region78: #{tpu_custom_call.1} parent=1 // pred_check
      _
    $region79: #{tpu_custom_call.1} parent=1 // pred_check_branch
      %128 = sbr.rel (0) target = $region81
    $region80: #{tpu_custom_call.1} parent=1 // pred_region
      %129 = dma.done [#allocation3], 256
    $region81: #{tpu_custom_call.1} parent=1 // pred_fallthru
      _
    // Predicated region
    $region82: #{tpu_custom_call.1} parent=1 // pred_check
      _
    $region83: #{tpu_custom_call.1} parent=1 // pred_check_branch
      %131 = sbr.rel (0) target = $region85
    $region84: #{tpu_custom_call.1} parent=1 // pred_region
      %132 = dma.done [#allocation6], 16
    $region85: #{tpu_custom_call.1} parent=1 // pred_fallthru
      _
    // Predicated region
    $region86: #{tpu_custom_call.1} parent=1 // pred_check
      _
    $region87: #{tpu_custom_call.1} parent=1 // pred_check_branch
      %134 = sbr.rel (0) target = $region89
    $region88: #{tpu_custom_call.1} parent=1 // pred_region
      %135 = dma.done [#allocation6], 32
    $region89: #{tpu_custom_call.1} parent=1 // pred_fallthru
      _
    // Predicated region
    $region90: #{tpu_custom_call.1} parent=1 // pred_check
      _
    $region91: #{tpu_custom_call.1} parent=1 // pred_check_branch
      %137 = sbr.rel (0) target = $region93
    $region92: #{tpu_custom_call.1} parent=1 // pred_region
      %138 = dma.done [#allocation9], 32
    $region93: #{tpu_custom_call.1} parent=1 // pred_fallthru
      _
    // Predicated region
    $region94: #{tpu_custom_call.1} parent=1 // pred_check
      _
    $region95: #{tpu_custom_call.1} parent=1 // pred_check_branch
      %140 = sbr.rel (0) target = $region97
    $region96: #{tpu_custom_call.1} parent=1 // pred_region
      %141 = dma.done [#allocation9], 32
    $region97: #{tpu_custom_call.1} parent=1 // pred_fallthru
      _
    // Predicated region
    $region98: #{tpu_custom_call.1} parent=1 // pred_check
      _
    $region99: #{tpu_custom_call.1} parent=1 // pred_check_branch
      %143 = sbr.rel (0) target = $region101
    $region100: #{tpu_custom_call.1} parent=1 // pred_region
      %144 = dma.done [#allocation12], 32
    $region101: #{tpu_custom_call.1} parent=1 // pred_fallthru
      _
    %v146 = vld [vmem:[%s0] sm:$0xff]
    %v147 = vld [vmem:[%s0 + $0x8] sm:$0xff]
    %v148 = vld [vmem:[%s0 + $0x10] sm:$0xff]
    %v149 = vld [vmem:[%s0 + $0x18] sm:$0xff]
    %v150 = vpack.c.bf16 %v147, %v146
    %v151 = vpack.c.bf16 %v149, %v148
    %v152 = vld [vmem:[%s2] sm:$0xf]
    %v153 = vld [vmem:[%s2 + $0x4] sm:$0xf]
    %v154 = vld [vmem:[%s2 + $0x8] sm:$0xf]
    %v155 = vld [vmem:[%s2 + $0xc] sm:$0xf]
    %v156 = vld [vmem:[%s2 + $0x10] sm:$0xf]
    %v157 = vld [vmem:[%s2 + $0x14] sm:$0xf]
    %v158 = vld [vmem:[%s2 + $0x18] sm:$0xf]
    %v159 = vld [vmem:[%s2 + $0x1c] sm:$0xf]
    %v160 = vld [vmem:[#allocation5] sm:$0x1]
    %v162 = vlaneseq
    %v163 = vshrl.u32 %v162, 7
    %v164 = vsub.s32 0, %v163
    %v165 = vrot.slane %v160, %v164
    %v175 = vunpack.c.l.b16 %v152
    %v176 = vunpack.c.l.b16 %v153
    %v177 = vunpack.c.l.b16 %v154
    %v178 = vunpack.c.l.b16 %v155
    %v179 = vunpack.c.l.b16 %v156
    %v180 = vunpack.c.l.b16 %v157
    %v181 = vunpack.c.l.b16 %v158
    %v182 = vunpack.c.l.b16 %v159
    %v183 = vpack.c.b16 %v176, %v175
    %v184 = vpack.c.b16 %v178, %v177
    %v185 = vpack.c.b16 %v180, %v179
    %v186 = vpack.c.b16 %v182, %v181
    %vm191 = vcmask 523264
    %v193 = vsel %vm191, %v150, 0
    %v196 = vsel %vm191, %v151, 0
    %198 = vmatprep.subr.bf16.mxu0 0
    %199 = vmatpush1.bf16.msra.mxu0 0
    %200 = vmatprep.subr.bf16.mxu0 0
    %201 = vmatpush1.bf16.msra.mxu0 0
    %202 = vmatprep.subr.bf16.mxu0 0
    %203 = vmatpush1.bf16.msra.mxu0 0
    %204 = vmatprep.subr.bf16.mxu0 0
    %205 = vmatpush1.bf16.msra.mxu0 0
    %206 = vmatprep.subr.bf16.mxu0 0
    %207 = vmatpush1.bf16.msra.mxu0 %v186
    %208 = vmatprep.subr.bf16.mxu0 0
    %209 = vmatpush1.bf16.msra.mxu0 %v185
    %210 = vmatprep.subr.bf16.mxu0 0
    %211 = vmatpush1.bf16.msra.mxu0 %v184
    %212 = vmatprep.subr.bf16.mxu0 0
    %213 = vmatpush1.bf16.msra.mxu0 %v183
    %214 = vmatprep.subr.bf16.mxu0 0
    %215 = vmatpush2.bf16.msra.mxu0 0
    %216 = vmatprep.subr.bf16.mxu0 0
    %217 = vmatpush2.bf16.msra.mxu0 0
    %218 = vmatprep.subr.bf16.mxu0 0
    %219 = vmatpush2.bf16.msra.mxu0 0
    %220 = vmatprep.subr.bf16.mxu0 0
    %221 = vmatpush2.bf16.msra.mxu0 0
    %222 = vmatprep.subr.bf16.mxu0 0
    %223 = vmatpush2.bf16.msra.mxu0 0
    %224 = vmatprep.subr.bf16.mxu0 0
    %225 = vmatpush2.bf16.msra.mxu0 0
    %226 = vmatprep.subr.bf16.mxu0 0
    %227 = vmatpush2.bf16.msra.mxu0 0
    %228 = vmatprep.subr.bf16.mxu0 0
    %229 = vmatpush2.bf16.msra.mxu0 0
    %230 = vmatprep.mubr.bf16.mxu0 0
    %231 = vmatmul.mubr.bf16.gmra.mxu0 %v193
    %v232 = vpop.f32.mrf.mxu0
    %v233 = vadd.f32 %v165, %v232
    %v234 = vpop.f32.mrf.mxu0
    %v235 = vpop.f32.mrf.mxu0
    %v236 = vadd.f32 %v165, %v235
    %v237 = vpop.f32.mrf.mxu0
    %238 = vmatprep.mubr.bf16.mxu0 0
    %239 = vmatmul.mubr.bf16.gmra.mxu0 %v196
    %v240 = vpop.f32.mrf.mxu0
    %v241 = vadd.f32 %v165, %v240
    %v242 = vpop.f32.mrf.mxu0
    %v243 = vpop.f32.mrf.mxu0
    %v244 = vadd.f32 %v165, %v243
    %v245 = vpop.f32.mrf.mxu0
    %246 = vdwg.mxu0
    %v247 = vld [vmem:[%s4] sm:$0xff]
    %v248 = vld [vmem:[%s4 + $0x8] sm:$0xff]
    %v249 = vld [vmem:[%s4 + $0x10] sm:$0xff]
    %v250 = vld [vmem:[%s4 + $0x18] sm:$0xff]
    %v251 = vadd.f32 %v233, %v247
    %v252 = vadd.f32 %v236, %v248
    %v253 = vadd.f32 %v241, %v249
    %v254 = vadd.f32 %v244, %v250
    %v255 = vld [vmem:[#allocation2] sm:$0xff]
    %v256 = vld [vmem:[#allocation2 + $0x8] sm:$0xff]
    %v257 = vld [vmem:[#allocation7] sm:$0x1]
    %v258 = vld [vmem:[#allocation8] sm:$0x1]
    %vm259 = vcmask 261120
    %v260 = vsel %vm259, %v251, 0.0
    %261 = vadd.xlane.f32.xlu0 %v260
    %v262 = vpop.xlane.xlu0 %261
    %v263 = vsel %vm259, %v252, 0.0
    %264 = vadd.xlane.f32.xlu0 %v263
    %v265 = vpop.xlane.xlu0 %264
    %v266 = vsel %vm259, %v255, 0.0
    %267 = vadd.xlane.f32.xlu0 %v266
    %v268 = vpop.xlane.xlu0 %267
    %v269 = vsel %vm259, %v253, 0.0
    %270 = vadd.xlane.f32.xlu0 %v269
    %v271 = vpop.xlane.xlu0 %270
    %v272 = vsel %vm259, %v254, 0.0
    %273 = vadd.xlane.f32.xlu0 %v272
    %v274 = vpop.xlane.xlu0 %273
    %v275 = vsel %vm259, %v256, 0.0
    %276 = vadd.xlane.f32.xlu0 %v275
    %v277 = vpop.xlane.xlu0 %276
    %v278 = vrcp.pop 32.0
    %v279 = vmul.f32 %v262, %v278
    %v280 = vmul.f32 %v265, %v278
    %v281 = vmul.f32 %v268, %v278
    %v282 = vmul.f32 %v271, %v278
    %v283 = vmul.f32 %v274, %v278
    %v284 = vmul.f32 %v277, %v278
    %v285 = vsub.f32 %v251, %v279
    %v286 = vsub.f32 %v252, %v280
    %v287 = vsub.f32 %v255, %v281
    %v288 = vsub.f32 %v253, %v282
    %v289 = vsub.f32 %v254, %v283
    %v290 = vsub.f32 %v256, %v284
    %v291 = vmul.f32 %v285, %v285
    %v292 = vmul.f32 %v286, %v286
    %v293 = vmul.f32 %v287, %v287
    %v294 = vmul.f32 %v288, %v288
    %v295 = vmul.f32 %v289, %v289
    %v296 = vmul.f32 %v290, %v290
    %v297 = vsel %vm259, %v291, 0.0
    %298 = vadd.xlane.f32.xlu0 %v297
    %v299 = vpop.xlane.xlu0 %298
    %v300 = vsel %vm259, %v292, 0.0
    %301 = vadd.xlane.f32.xlu0 %v300
    %v302 = vpop.xlane.xlu0 %301
    %v303 = vsel %vm259, %v293, 0.0
    %304 = vadd.xlane.f32.xlu0 %v303
    %v305 = vpop.xlane.xlu0 %304
    %v306 = vsel %vm259, %v294, 0.0
    %307 = vadd.xlane.f32.xlu0 %v306
    %v308 = vpop.xlane.xlu0 %307
    %v309 = vsel %vm259, %v295, 0.0
    %310 = vadd.xlane.f32.xlu0 %v309
    %v311 = vpop.xlane.xlu0 %310
    %v312 = vsel %vm259, %v296, 0.0
    %313 = vadd.xlane.f32.xlu0 %v312
    %v314 = vpop.xlane.xlu0 %313
    %v315 = vmul.f32 %v299, %v278
    %v316 = vmul.f32 %v302, %v278
    %v317 = vmul.f32 %v305, %v278
    %v318 = vmul.f32 %v308, %v278
    %v319 = vmul.f32 %v311, %v278
    %v320 = vmul.f32 %v314, %v278
    %v321 = vadd.f32 %v315, 1e-06
    %v322 = vadd.f32 %v316, 1e-06
    %v323 = vadd.f32 %v317, 1e-06
    %v324 = vadd.f32 %v318, 1e-06
    %v325 = vadd.f32 %v319, 1e-06
    %v326 = vadd.f32 %v320, 1e-06
    %v327 = vrsqrt.pop %v321
    %v328 = vrsqrt.pop %v322
    %v329 = vrsqrt.pop %v323
    %v330 = vrsqrt.pop %v324
    %v331 = vrsqrt.pop %v325
    %v332 = vrsqrt.pop %v326
    %v333 = vmul.f32 %v285, %v327
    %v334 = vmul.f32 %v286, %v328
    %v335 = vmul.f32 %v287, %v329
    %v336 = vmul.f32 %v288, %v330
    %v337 = vmul.f32 %v289, %v331
    %v338 = vmul.f32 %v290, %v332
    %v340 = vlaneseq
    %v341 = vshrl.u32 %v340, 7
    %v342 = vsub.s32 0, %v341
    %v343 = vrot.slane %v257, %v342
    %v345 = vmul.f32 %v333, %v343
    %v346 = vmul.f32 %v334, %v343
    %v347 = vmul.f32 %v335, %v343
    %v348 = vmul.f32 %v336, %v343
    %v349 = vmul.f32 %v337, %v343
    %v350 = vmul.f32 %v338, %v343
    %v352 = vlaneseq
    %v353 = vshrl.u32 %v352, 7
    %v354 = vsub.s32 0, %v353
    %v355 = vrot.slane %v258, %v354
    %v357 = vadd.f32 %v345, %v355
    %v358 = vadd.f32 %v346, %v355
    %v359 = vadd.f32 %v347, %v355
    %v360 = vadd.f32 %v348, %v355
    %v361 = vadd.f32 %v349, %v355
    %v362 = vadd.f32 %v350, %v355
    %v363 = vpack.c.bf16 %v358, %v357
    %v364 = vpack.c.bf16 %v360, %v359
    %v365 = vpack.c.bf16 %v362, %v361
    %v366 = vld [vmem:[%s7] sm:$0xf]
    %v367 = vld [vmem:[%s7 + $0x4] sm:$0xf]
    %v368 = vld [vmem:[%s7 + $0x8] sm:$0xf]
    %v369 = vld [vmem:[%s7 + $0xc] sm:$0xf]
    %v370 = vld [vmem:[#allocation10] sm:$0x1]
    %v372 = vlaneseq
    %v373 = vshrl.u32 %v372, 7
    %v374 = vsub.s32 0, %v373
    %v375 = vrot.slane %v370, %v374
    %v381 = vunpack.c.l.b16 %v366
    %v382 = vunpack.c.l.b16 %v367
    %v383 = vunpack.c.l.b16 %v368
    %v384 = vunpack.c.l.b16 %v369
    %v385 = vpack.c.b16 %v382, %v381
    %v386 = vpack.c.b16 %v384, %v383
    %v390 = vsel %vm259, %v363, 0
    %v393 = vsel %vm259, %v364, 0
    %v396 = vsel %vm259, %v365, 0
    %398 = vmatprep.subr.bf16.mxu0 0
    %399 = vmatpush1.bf16.msra.mxu0 0
    %400 = vmatprep.subr.bf16.mxu0 0
    %401 = vmatpush1.bf16.msra.mxu0 0
    %402 = vmatprep.subr.bf16.mxu0 0
    %403 = vmatpush1.bf16.msra.mxu0 0
    %404 = vmatprep.subr.bf16.mxu0 0
    %405 = vmatpush1.bf16.msra.mxu0 0
    %406 = vmatprep.subr.bf16.mxu0 0
    %407 = vmatpush1.bf16.msra.mxu0 0
    %408 = vmatprep.subr.bf16.mxu0 0
    %409 = vmatpush1.bf16.msra.mxu0 0
    %410 = vmatprep.subr.bf16.mxu0 0
    %411 = vmatpush1.bf16.msra.mxu0 %v386
    %412 = vmatprep.subr.bf16.mxu0 0
    %413 = vmatpush1.bf16.msra.mxu0 %v385
    %414 = vmatprep.subr.bf16.mxu0 0
    %415 = vmatpush2.bf16.msra.mxu0 0
    %416 = vmatprep.subr.bf16.mxu0 0
    %417 = vmatpush2.bf16.msra.mxu0 0
    %418 = vmatprep.subr.bf16.mxu0 0
    %419 = vmatpush2.bf16.msra.mxu0 0
    %420 = vmatprep.subr.bf16.mxu0 0
    %421 = vmatpush2.bf16.msra.mxu0 0
    %422 = vmatprep.subr.bf16.mxu0 0
    %423 = vmatpush2.bf16.msra.mxu0 0
    %424 = vmatprep.subr.bf16.mxu0 0
    %425 = vmatpush2.bf16.msra.mxu0 0
    %426 = vmatprep.subr.bf16.mxu0 0
    %427 = vmatpush2.bf16.msra.mxu0 0
    %428 = vmatprep.subr.bf16.mxu0 0
    %429 = vmatpush2.bf16.msra.mxu0 0
    %430 = vmatprep.mubr.bf16.mxu0 0
    %431 = vmatmul.mubr.bf16.gmra.mxu0 %v390
    %v432 = vpop.f32.mrf.mxu0
    %v433 = vadd.f32 %v375, %v432
    %v434 = vpop.f32.mrf.mxu0
    %v435 = vpop.f32.mrf.mxu0
    %v436 = vadd.f32 %v375, %v435
    %v437 = vpop.f32.mrf.mxu0
    %438 = vmatprep.mubr.bf16.mxu0 0
    %439 = vmatmul.mubr.bf16.gmra.mxu0 %v393
    %v440 = vpop.f32.mrf.mxu0
    %v441 = vadd.f32 %v375, %v440
    %v442 = vpop.f32.mrf.mxu0
    %v443 = vpop.f32.mrf.mxu0
    %v444 = vadd.f32 %v375, %v443
    %v445 = vpop.f32.mrf.mxu0
    %446 = vmatprep.mubr.bf16.mxu0 0
    %447 = vmatmul.mubr.bf16.gmra.mxu0 %v396
    %v448 = vpop.f32.mrf.mxu0
    %v449 = vadd.f32 %v375, %v448
    %v450 = vpop.f32.mrf.mxu0
    %v451 = vpop.f32.mrf.mxu0
    %v452 = vadd.f32 %v375, %v451
    %v453 = vpop.f32.mrf.mxu0
    %454 = vdwg.mxu0
    %v455 = vpack.c.bf16 %v436, %v433
    %v456 = vpack.c.bf16 %v444, %v441
    %v457 = vpack.c.bf16 %v452, %v449
    %460 = vrot.lane.b32.xlu0 %v455, 120
    %v461 = vpop.permute.xlu0 %460
    %462 = vrot.lane.b32.xlu0 %v456, 120
    %v463 = vpop.permute.xlu0 %462
    %464 = vrot.lane.b32.xlu0 %v455, 112
    %v465 = vpop.permute.xlu0 %464
    %466 = vrot.lane.b32.xlu0 %v456, 112
    %v467 = vpop.permute.xlu0 %466
    %468 = vrot.lane.b32.xlu0 %v455, 104
    %v469 = vpop.permute.xlu0 %468
    %470 = vrot.lane.b32.xlu0 %v456, 104
    %v471 = vpop.permute.xlu0 %470
    %vm473 = vcmask 1043456
    %v474 = vrot.slane %v456, 4
    %v475 = vrot.slane %v457, 4
    %v476 = vsel %vm473, %v474, %v475
    %477 = vrot.lane.b32.xlu0 %v476, 120
    %v478 = vpop.permute.xlu0 %477
    %479 = vrot.lane.b32.xlu0 %v475, 120
    %v480 = vpop.permute.xlu0 %479
    %481 = vrot.lane.b32.xlu0 %v476, 112
    %v482 = vpop.permute.xlu0 %481
    %483 = vrot.lane.b32.xlu0 %v475, 112
    %v484 = vpop.permute.xlu0 %483
    %485 = vrot.lane.b32.xlu0 %v476, 104
    %v486 = vpop.permute.xlu0 %485
    %487 = vrot.lane.b32.xlu0 %v475, 104
    %v488 = vpop.permute.xlu0 %487
    %489 = vrot.lane.b32.xlu0 %v455, 96
    %v490 = vpop.permute.xlu0 %489
    %491 = vrot.lane.b32.xlu0 %v456, 96
    %v492 = vpop.permute.xlu0 %491
    %vm493 = vcmask 64512
    %v495 = vsel %vm493, %v455, 0
    %v498 = vsel %vm493, %v456, 0
    %v501 = vsel %vm493, %v490, 0
    %v504 = vsel %vm493, %v492, 0
    %506 = vmatprep.subr.bf16.mxu0 0
    %507 = vmatpush1.bf16.xpose.msra.mxu0 0
    %508 = vmatprep.subr.bf16.mxu0 0
    %509 = vmatpush1.bf16.xpose.msra.mxu0 0
    %510 = vmatprep.subr.bf16.mxu0 0
    %511 = vmatpush1.bf16.xpose.msra.mxu0 0
    %512 = vmatprep.subr.bf16.mxu0 0
    %513 = vmatpush1.bf16.xpose.msra.mxu0 0
    %514 = vmatprep.subr.bf16.mxu0 0
    %515 = vmatpush1.bf16.xpose.msra.mxu0 0
    %516 = vmatprep.subr.bf16.mxu0 0
    %517 = vmatpush1.bf16.xpose.msra.mxu0 0
    %518 = vmatprep.subr.bf16.mxu0 0
    %519 = vmatpush1.bf16.xpose.msra.mxu0 %v504
    %520 = vmatprep.subr.bf16.mxu0 0
    %521 = vmatpush1.bf16.xpose.msra.mxu0 %v501
    %522 = vmatprep.subr.bf16.mxu0 0
    %523 = vmatpush2.bf16.xpose.msra.mxu0 0
    %524 = vmatprep.subr.bf16.mxu0 0
    %525 = vmatpush2.bf16.xpose.msra.mxu0 0
    %526 = vmatprep.subr.bf16.mxu0 0
    %527 = vmatpush2.bf16.xpose.msra.mxu0 0
    %528 = vmatprep.subr.bf16.mxu0 0
    %529 = vmatpush2.bf16.xpose.msra.mxu0 0
    %530 = vmatprep.subr.bf16.mxu0 0
    %531 = vmatpush2.bf16.xpose.msra.mxu0 0
    %532 = vmatprep.subr.bf16.mxu0 0
    %533 = vmatpush2.bf16.xpose.msra.mxu0 0
    %534 = vmatprep.subr.bf16.mxu0 0
    %535 = vmatpush2.bf16.xpose.msra.mxu0 0
    %536 = vmatprep.subr.bf16.mxu0 0
    %537 = vmatpush2.bf16.xpose.msra.mxu0 0
    %538 = vmatprep.mubr.bf16.mxu0 0
    %539 = vmatmul.mubr.bf16.gmra.mxu0 %v495
    %v540 = vpop.f32.mrf.mxu0
    %v541 = vadd.f32 0.0, %v540
    %v542 = vpop.f32.mrf.mxu0
    %v543 = vpop.f32.mrf.mxu0
    %v544 = vadd.f32 0.0, %v543
    %v545 = vpop.f32.mrf.mxu0
    %546 = vmatprep.mubr.bf16.mxu0 0
    %547 = vmatmul.mubr.bf16.gmra.mxu0 %v498
    %v548 = vpop.f32.mrf.mxu0
    %v549 = vadd.f32 0.0, %v548
    %v550 = vpop.f32.mrf.mxu0
    %v551 = vpop.f32.mrf.mxu0
    %v552 = vpop.f32.mrf.mxu0
    %553 = vdwg.mxu0
    %554 = vrot.lane.b32.xlu0 %v461, 96
    %v555 = vpop.permute.xlu0 %554
    %556 = vrot.lane.b32.xlu0 %v463, 96
    %v557 = vpop.permute.xlu0 %556
    %v559 = vsel %vm493, %v461, 0
    %v562 = vsel %vm493, %v463, 0
    %v565 = vsel %vm493, %v555, 0
    %v568 = vsel %vm493, %v557, 0
    %570 = vmatprep.subr.bf16.mxu0 0
    %571 = vmatpush1.bf16.xpose.msra.mxu0 0
    %572 = vmatprep.subr.bf16.mxu0 0
    %573 = vmatpush1.bf16.xpose.msra.mxu0 0
    %574 = vmatprep.subr.bf16.mxu0 0
    %575 = vmatpush1.bf16.xpose.msra.mxu0 0
    %576 = vmatprep.subr.bf16.mxu0 0
    %577 = vmatpush1.bf16.xpose.msra.mxu0 0
    %578 = vmatprep.subr.bf16.mxu0 0
    %579 = vmatpush1.bf16.xpose.msra.mxu0 0
    %580 = vmatprep.subr.bf16.mxu0 0
    %581 = vmatpush1.bf16.xpose.msra.mxu0 0
    %582 = vmatprep.subr.bf16.mxu0 0
    %583 = vmatpush1.bf16.xpose.msra.mxu0 %v568
    %584 = vmatprep.subr.bf16.mxu0 0
    %585 = vmatpush1.bf16.xpose.msra.mxu0 %v565
    %586 = vmatprep.subr.bf16.mxu0 0
    %587 = vmatpush2.bf16.xpose.msra.mxu0 0
    %588 = vmatprep.subr.bf16.mxu0 0
    %589 = vmatpush2.bf16.xpose.msra.mxu0 0
    %590 = vmatprep.subr.bf16.mxu0 0
    %591 = vmatpush2.bf16.xpose.msra.mxu0 0
    %592 = vmatprep.subr.bf16.mxu0 0
    %593 = vmatpush2.bf16.xpose.msra.mxu0 0
    %594 = vmatprep.subr.bf16.mxu0 0
    %595 = vmatpush2.bf16.xpose.msra.mxu0 0
    %596 = vmatprep.subr.bf16.mxu0 0
    %597 = vmatpush2.bf16.xpose.msra.mxu0 0
    %598 = vmatprep.subr.bf16.mxu0 0
    %599 = vmatpush2.bf16.xpose.msra.mxu0 0
    %600 = vmatprep.subr.bf16.mxu0 0
    %601 = vmatpush2.bf16.xpose.msra.mxu0 0
    %602 = vmatprep.mubr.bf16.mxu0 0
    %603 = vmatmul.mubr.bf16.gmra.mxu0 %v559
    %v604 = vpop.f32.mrf.mxu0
    %v605 = vadd.f32 0.0, %v604
    %v606 = vpop.f32.mrf.mxu0
    %v607 = vpop.f32.mrf.mxu0
    %v608 = vadd.f32 0.0, %v607
    %v609 = vpop.f32.mrf.mxu0
    %610 = vmatprep.mubr.bf16.mxu0 0
    %611 = vmatmul.mubr.bf16.gmra.mxu0 %v562
    %v612 = vpop.f32.mrf.mxu0
    %v613 = vadd.f32 0.0, %v612
    %v614 = vpop.f32.mrf.mxu0
    %v615 = vpop.f32.mrf.mxu0
    %v616 = vpop.f32.mrf.mxu0
    %617 = vdwg.mxu0
    %618 = vrot.lane.b32.xlu0 %v465, 96
    %v619 = vpop.permute.xlu0 %618
    %620 = vrot.lane.b32.xlu0 %v467, 96
    %v621 = vpop.permute.xlu0 %620
    %v623 = vsel %vm493, %v465, 0
    %v626 = vsel %vm493, %v467, 0
    %v629 = vsel %vm493, %v619, 0
    %v632 = vsel %vm493, %v621, 0
    %634 = vmatprep.subr.bf16.mxu0 0
    %635 = vmatpush1.bf16.xpose.msra.mxu0 0
    %636 = vmatprep.subr.bf16.mxu0 0
    %637 = vmatpush1.bf16.xpose.msra.mxu0 0
    %638 = vmatprep.subr.bf16.mxu0 0
    %639 = vmatpush1.bf16.xpose.msra.mxu0 0
    %640 = vmatprep.subr.bf16.mxu0 0
    %641 = vmatpush1.bf16.xpose.msra.mxu0 0
    %642 = vmatprep.subr.bf16.mxu0 0
    %643 = vmatpush1.bf16.xpose.msra.mxu0 0
    %644 = vmatprep.subr.bf16.mxu0 0
    %645 = vmatpush1.bf16.xpose.msra.mxu0 0
    %646 = vmatprep.subr.bf16.mxu0 0
    %647 = vmatpush1.bf16.xpose.msra.mxu0 %v632
    %648 = vmatprep.subr.bf16.mxu0 0
    %649 = vmatpush1.bf16.xpose.msra.mxu0 %v629
    %650 = vmatprep.subr.bf16.mxu0 0
    %651 = vmatpush2.bf16.xpose.msra.mxu0 0
    %652 = vmatprep.subr.bf16.mxu0 0
    %653 = vmatpush2.bf16.xpose.msra.mxu0 0
    %654 = vmatprep.subr.bf16.mxu0 0
    %655 = vmatpush2.bf16.xpose.msra.mxu0 0
    %656 = vmatprep.subr.bf16.mxu0 0
    %657 = vmatpush2.bf16.xpose.msra.mxu0 0
    %658 = vmatprep.subr.bf16.mxu0 0
    %659 = vmatpush2.bf16.xpose.msra.mxu0 0
    %660 = vmatprep.subr.bf16.mxu0 0
    %661 = vmatpush2.bf16.xpose.msra.mxu0 0
    %662 = vmatprep.subr.bf16.mxu0 0
    %663 = vmatpush2.bf16.xpose.msra.mxu0 0
    %664 = vmatprep.subr.bf16.mxu0 0
    %665 = vmatpush2.bf16.xpose.msra.mxu0 0
    %666 = vmatprep.mubr.bf16.mxu0 0
    %667 = vmatmul.mubr.bf16.gmra.mxu0 %v623
    %v668 = vpop.f32.mrf.mxu0
    %v669 = vadd.f32 0.0, %v668
    %v670 = vpop.f32.mrf.mxu0
    %v671 = vpop.f32.mrf.mxu0
    %v672 = vadd.f32 0.0, %v671
    %v673 = vpop.f32.mrf.mxu0
    %674 = vmatprep.mubr.bf16.mxu0 0
    %675 = vmatmul.mubr.bf16.gmra.mxu0 %v626
    %v676 = vpop.f32.mrf.mxu0
    %v677 = vadd.f32 0.0, %v676
    %v678 = vpop.f32.mrf.mxu0
    %v679 = vpop.f32.mrf.mxu0
    %v680 = vpop.f32.mrf.mxu0
    %681 = vdwg.mxu0
    %682 = vrot.lane.b32.xlu0 %v469, 96
    %v683 = vpop.permute.xlu0 %682
    %684 = vrot.lane.b32.xlu0 %v471, 96
    %v685 = vpop.permute.xlu0 %684
    %v687 = vsel %vm493, %v469, 0
    %v690 = vsel %vm493, %v471, 0
    %v693 = vsel %vm493, %v683, 0
    %v696 = vsel %vm493, %v685, 0
    %698 = vmatprep.subr.bf16.mxu0 0
    %699 = vmatpush1.bf16.xpose.msra.mxu0 0
    %700 = vmatprep.subr.bf16.mxu0 0
    %701 = vmatpush1.bf16.xpose.msra.mxu0 0
    %702 = vmatprep.subr.bf16.mxu0 0
    %703 = vmatpush1.bf16.xpose.msra.mxu0 0
    %704 = vmatprep.subr.bf16.mxu0 0
    %705 = vmatpush1.bf16.xpose.msra.mxu0 0
    %706 = vmatprep.subr.bf16.mxu0 0
    %707 = vmatpush1.bf16.xpose.msra.mxu0 0
    %708 = vmatprep.subr.bf16.mxu0 0
    %709 = vmatpush1.bf16.xpose.msra.mxu0 0
    %710 = vmatprep.subr.bf16.mxu0 0
    %711 = vmatpush1.bf16.xpose.msra.mxu0 %v696
    %712 = vmatprep.subr.bf16.mxu0 0
    %713 = vmatpush1.bf16.xpose.msra.mxu0 %v693
    %714 = vmatprep.subr.bf16.mxu0 0
    %715 = vmatpush2.bf16.xpose.msra.mxu0 0
    %716 = vmatprep.subr.bf16.mxu0 0
    %717 = vmatpush2.bf16.xpose.msra.mxu0 0
    %718 = vmatprep.subr.bf16.mxu0 0
    %719 = vmatpush2.bf16.xpose.msra.mxu0 0
    %720 = vmatprep.subr.bf16.mxu0 0
    %721 = vmatpush2.bf16.xpose.msra.mxu0 0
    %722 = vmatprep.subr.bf16.mxu0 0
    %723 = vmatpush2.bf16.xpose.msra.mxu0 0
    %724 = vmatprep.subr.bf16.mxu0 0
    %725 = vmatpush2.bf16.xpose.msra.mxu0 0
    %726 = vmatprep.subr.bf16.mxu0 0
    %727 = vmatpush2.bf16.xpose.msra.mxu0 0
    %728 = vmatprep.subr.bf16.mxu0 0
    %729 = vmatpush2.bf16.xpose.msra.mxu0 0
    %730 = vmatprep.mubr.bf16.mxu0 0
    %731 = vmatmul.mubr.bf16.gmra.mxu0 %v687
    %v732 = vpop.f32.mrf.mxu0
    %v733 = vadd.f32 0.0, %v732
    %v734 = vpop.f32.mrf.mxu0
    %v735 = vpop.f32.mrf.mxu0
    %v736 = vadd.f32 0.0, %v735
    %v737 = vpop.f32.mrf.mxu0
    %738 = vmatprep.mubr.bf16.mxu0 0
    %739 = vmatmul.mubr.bf16.gmra.mxu0 %v690
    %v740 = vpop.f32.mrf.mxu0
    %v741 = vadd.f32 0.0, %v740
    %v742 = vpop.f32.mrf.mxu0
    %v743 = vpop.f32.mrf.mxu0
    %v744 = vpop.f32.mrf.mxu0
    %745 = vdwg.mxu0
    %746 = vrot.lane.b32.xlu0 %v476, 96
    %v747 = vpop.permute.xlu0 %746
    %748 = vrot.lane.b32.xlu0 %v475, 96
    %v749 = vpop.permute.xlu0 %748
    %v751 = vsel %vm493, %v476, 0
    %v754 = vsel %vm493, %v475, 0
    %v757 = vsel %vm493, %v747, 0
    %v760 = vsel %vm493, %v749, 0
    %762 = vmatprep.subr.bf16.mxu0 0
    %763 = vmatpush1.bf16.xpose.msra.mxu0 0
    %764 = vmatprep.subr.bf16.mxu0 0
    %765 = vmatpush1.bf16.xpose.msra.mxu0 0
    %766 = vmatprep.subr.bf16.mxu0 0
    %767 = vmatpush1.bf16.xpose.msra.mxu0 0
    %768 = vmatprep.subr.bf16.mxu0 0
    %769 = vmatpush1.bf16.xpose.msra.mxu0 0
    %770 = vmatprep.subr.bf16.mxu0 0
    %771 = vmatpush1.bf16.xpose.msra.mxu0 0
    %772 = vmatprep.subr.bf16.mxu0 0
    %773 = vmatpush1.bf16.xpose.msra.mxu0 0
    %774 = vmatprep.subr.bf16.mxu0 0
    %775 = vmatpush1.bf16.xpose.msra.mxu0 %v760
    %776 = vmatprep.subr.bf16.mxu0 0
    %777 = vmatpush1.bf16.xpose.msra.mxu0 %v757
    %778 = vmatprep.subr.bf16.mxu0 0
    %779 = vmatpush2.bf16.xpose.msra.mxu0 0
    %780 = vmatprep.subr.bf16.mxu0 0
    %781 = vmatpush2.bf16.xpose.msra.mxu0 0
    %782 = vmatprep.subr.bf16.mxu0 0
    %783 = vmatpush2.bf16.xpose.msra.mxu0 0
    %784 = vmatprep.subr.bf16.mxu0 0
    %785 = vmatpush2.bf16.xpose.msra.mxu0 0
    %786 = vmatprep.subr.bf16.mxu0 0
    %787 = vmatpush2.bf16.xpose.msra.mxu0 0
    %788 = vmatprep.subr.bf16.mxu0 0
    %789 = vmatpush2.bf16.xpose.msra.mxu0 0
    %790 = vmatprep.subr.bf16.mxu0 0
    %791 = vmatpush2.bf16.xpose.msra.mxu0 0
    %792 = vmatprep.subr.bf16.mxu0 0
    %793 = vmatpush2.bf16.xpose.msra.mxu0 0
    %794 = vmatprep.mubr.bf16.mxu0 0
    %795 = vmatmul.mubr.bf16.gmra.mxu0 %v751
    %v796 = vpop.f32.mrf.mxu0
    %v797 = vadd.f32 0.0, %v796
    %v798 = vpop.f32.mrf.mxu0
    %v799 = vpop.f32.mrf.mxu0
    %v800 = vadd.f32 0.0, %v799
    %v801 = vpop.f32.mrf.mxu0
    %802 = vmatprep.mubr.bf16.mxu0 0
    %803 = vmatmul.mubr.bf16.gmra.mxu0 %v754
    %v804 = vpop.f32.mrf.mxu0
    %v805 = vadd.f32 0.0, %v804
    %v806 = vpop.f32.mrf.mxu0
    %v807 = vpop.f32.mrf.mxu0
    %v808 = vpop.f32.mrf.mxu0
    %809 = vdwg.mxu0
    %810 = vrot.lane.b32.xlu0 %v478, 96
    %v811 = vpop.permute.xlu0 %810
    %812 = vrot.lane.b32.xlu0 %v480, 96
    %v813 = vpop.permute.xlu0 %812
    %v815 = vsel %vm493, %v478, 0
    %v818 = vsel %vm493, %v480, 0
    %v821 = vsel %vm493, %v811, 0
    %v824 = vsel %vm493, %v813, 0
    %826 = vmatprep.subr.bf16.mxu0 0
    %827 = vmatpush1.bf16.xpose.msra.mxu0 0
    %828 = vmatprep.subr.bf16.mxu0 0
    %829 = vmatpush1.bf16.xpose.msra.mxu0 0
    %830 = vmatprep.subr.bf16.mxu0 0
    %831 = vmatpush1.bf16.xpose.msra.mxu0 0
    %832 = vmatprep.subr.bf16.mxu0 0
    %833 = vmatpush1.bf16.xpose.msra.mxu0 0
    %834 = vmatprep.subr.bf16.mxu0 0
    %835 = vmatpush1.bf16.xpose.msra.mxu0 0
    %836 = vmatprep.subr.bf16.mxu0 0
    %837 = vmatpush1.bf16.xpose.msra.mxu0 0
    %838 = vmatprep.subr.bf16.mxu0 0
    %839 = vmatpush1.bf16.xpose.msra.mxu0 %v824
    %840 = vmatprep.subr.bf16.mxu0 0
    %841 = vmatpush1.bf16.xpose.msra.mxu0 %v821
    %842 = vmatprep.subr.bf16.mxu0 0
    %843 = vmatpush2.bf16.xpose.msra.mxu0 0
    %844 = vmatprep.subr.bf16.mxu0 0
    %845 = vmatpush2.bf16.xpose.msra.mxu0 0
    %846 = vmatprep.subr.bf16.mxu0 0
    %847 = vmatpush2.bf16.xpose.msra.mxu0 0
    %848 = vmatprep.subr.bf16.mxu0 0
    %849 = vmatpush2.bf16.xpose.msra.mxu0 0
    %850 = vmatprep.subr.bf16.mxu0 0
    %851 = vmatpush2.bf16.xpose.msra.mxu0 0
    %852 = vmatprep.subr.bf16.mxu0 0
    %853 = vmatpush2.bf16.xpose.msra.mxu0 0
    %854 = vmatprep.subr.bf16.mxu0 0
    %855 = vmatpush2.bf16.xpose.msra.mxu0 0
    %856 = vmatprep.subr.bf16.mxu0 0
    %857 = vmatpush2.bf16.xpose.msra.mxu0 0
    %858 = vmatprep.mubr.bf16.mxu0 0
    %859 = vmatmul.mubr.bf16.gmra.mxu0 %v815
    %v860 = vpop.f32.mrf.mxu0
    %v861 = vadd.f32 0.0, %v860
    %v862 = vpop.f32.mrf.mxu0
    %v863 = vpop.f32.mrf.mxu0
    %v864 = vadd.f32 0.0, %v863
    %v865 = vpop.f32.mrf.mxu0
    %866 = vmatprep.mubr.bf16.mxu0 0
    %867 = vmatmul.mubr.bf16.gmra.mxu0 %v818
    %v868 = vpop.f32.mrf.mxu0
    %v869 = vadd.f32 0.0, %v868
    %v870 = vpop.f32.mrf.mxu0
    %v871 = vpop.f32.mrf.mxu0
    %v872 = vpop.f32.mrf.mxu0
    %873 = vdwg.mxu0
    %874 = vrot.lane.b32.xlu0 %v482, 96
    %v875 = vpop.permute.xlu0 %874
    %876 = vrot.lane.b32.xlu0 %v484, 96
    %v877 = vpop.permute.xlu0 %876
    %v879 = vsel %vm493, %v482, 0
    %v882 = vsel %vm493, %v484, 0
    %v885 = vsel %vm493, %v875, 0
    %v888 = vsel %vm493, %v877, 0
    %890 = vmatprep.subr.bf16.mxu0 0
    %891 = vmatpush1.bf16.xpose.msra.mxu0 0
    %892 = vmatprep.subr.bf16.mxu0 0
    %893 = vmatpush1.bf16.xpose.msra.mxu0 0
    %894 = vmatprep.subr.bf16.mxu0 0
    %895 = vmatpush1.bf16.xpose.msra.mxu0 0
    %896 = vmatprep.subr.bf16.mxu0 0
    %897 = vmatpush1.bf16.xpose.msra.mxu0 0
    %898 = vmatprep.subr.bf16.mxu0 0
    %899 = vmatpush1.bf16.xpose.msra.mxu0 0
    %900 = vmatprep.subr.bf16.mxu0 0
    %901 = vmatpush1.bf16.xpose.msra.mxu0 0
    %902 = vmatprep.subr.bf16.mxu0 0
    %903 = vmatpush1.bf16.xpose.msra.mxu0 %v888
    %904 = vmatprep.subr.bf16.mxu0 0
    %905 = vmatpush1.bf16.xpose.msra.mxu0 %v885
    %906 = vmatprep.subr.bf16.mxu0 0
    %907 = vmatpush2.bf16.xpose.msra.mxu0 0
    %908 = vmatprep.subr.bf16.mxu0 0
    %909 = vmatpush2.bf16.xpose.msra.mxu0 0
    %910 = vmatprep.subr.bf16.mxu0 0
    %911 = vmatpush2.bf16.xpose.msra.mxu0 0
    %912 = vmatprep.subr.bf16.mxu0 0
    %913 = vmatpush2.bf16.xpose.msra.mxu0 0
    %914 = vmatprep.subr.bf16.mxu0 0
    %915 = vmatpush2.bf16.xpose.msra.mxu0 0
    %916 = vmatprep.subr.bf16.mxu0 0
    %917 = vmatpush2.bf16.xpose.msra.mxu0 0
    %918 = vmatprep.subr.bf16.mxu0 0
    %919 = vmatpush2.bf16.xpose.msra.mxu0 0
    %920 = vmatprep.subr.bf16.mxu0 0
    %921 = vmatpush2.bf16.xpose.msra.mxu0 0
    %922 = vmatprep.mubr.bf16.mxu0 0
    %923 = vmatmul.mubr.bf16.gmra.mxu0 %v879
    %v924 = vpop.f32.mrf.mxu0
    %v925 = vadd.f32 0.0, %v924
    %v926 = vpop.f32.mrf.mxu0
    %v927 = vpop.f32.mrf.mxu0
    %v928 = vadd.f32 0.0, %v927
    %v929 = vpop.f32.mrf.mxu0
    %930 = vmatprep.mubr.bf16.mxu0 0
    %931 = vmatmul.mubr.bf16.gmra.mxu0 %v882
    %v932 = vpop.f32.mrf.mxu0
    %v933 = vadd.f32 0.0, %v932
    %v934 = vpop.f32.mrf.mxu0
    %v935 = vpop.f32.mrf.mxu0
    %v936 = vpop.f32.mrf.mxu0
    %937 = vdwg.mxu0
    %938 = vrot.lane.b32.xlu0 %v486, 96
    %v939 = vpop.permute.xlu0 %938
    %940 = vrot.lane.b32.xlu0 %v488, 96
    %v941 = vpop.permute.xlu0 %940
    %v943 = vsel %vm493, %v486, 0
    %v946 = vsel %vm493, %v488, 0
    %v949 = vsel %vm493, %v939, 0
    %v952 = vsel %vm493, %v941, 0
    %954 = vmatprep.subr.bf16.mxu0 0
    %955 = vmatpush1.bf16.xpose.msra.mxu0 0
    %956 = vmatprep.subr.bf16.mxu0 0
    %957 = vmatpush1.bf16.xpose.msra.mxu0 0
    %958 = vmatprep.subr.bf16.mxu0 0
    %959 = vmatpush1.bf16.xpose.msra.mxu0 0
    %960 = vmatprep.subr.bf16.mxu0 0
    %961 = vmatpush1.bf16.xpose.msra.mxu0 0
    %962 = vmatprep.subr.bf16.mxu0 0
    %963 = vmatpush1.bf16.xpose.msra.mxu0 0
    %964 = vmatprep.subr.bf16.mxu0 0
    %965 = vmatpush1.bf16.xpose.msra.mxu0 0
    %966 = vmatprep.subr.bf16.mxu0 0
    %967 = vmatpush1.bf16.xpose.msra.mxu0 %v952
    %968 = vmatprep.subr.bf16.mxu0 0
    %969 = vmatpush1.bf16.xpose.msra.mxu0 %v949
    %970 = vmatprep.subr.bf16.mxu0 0
    %971 = vmatpush2.bf16.xpose.msra.mxu0 0
    %972 = vmatprep.subr.bf16.mxu0 0
    %973 = vmatpush2.bf16.xpose.msra.mxu0 0
    %974 = vmatprep.subr.bf16.mxu0 0
    %975 = vmatpush2.bf16.xpose.msra.mxu0 0
    %976 = vmatprep.subr.bf16.mxu0 0
    %977 = vmatpush2.bf16.xpose.msra.mxu0 0
    %978 = vmatprep.subr.bf16.mxu0 0
    %979 = vmatpush2.bf16.xpose.msra.mxu0 0
    %980 = vmatprep.subr.bf16.mxu0 0
    %981 = vmatpush2.bf16.xpose.msra.mxu0 0
    %982 = vmatprep.subr.bf16.mxu0 0
    %983 = vmatpush2.bf16.xpose.msra.mxu0 0
    %984 = vmatprep.subr.bf16.mxu0 0
    %985 = vmatpush2.bf16.xpose.msra.mxu0 0
    %986 = vmatprep.mubr.bf16.mxu0 0
    %987 = vmatmul.mubr.bf16.gmra.mxu0 %v943
    %v988 = vpop.f32.mrf.mxu0
    %v989 = vadd.f32 0.0, %v988
    %v990 = vpop.f32.mrf.mxu0
    %v991 = vpop.f32.mrf.mxu0
    %v992 = vadd.f32 0.0, %v991
    %v993 = vpop.f32.mrf.mxu0
    %994 = vmatprep.mubr.bf16.mxu0 0
    %995 = vmatmul.mubr.bf16.gmra.mxu0 %v946
    %v996 = vpop.f32.mrf.mxu0
    %v997 = vadd.f32 0.0, %v996
    %v998 = vpop.f32.mrf.mxu0
    %v999 = vpop.f32.mrf.mxu0
    %v1000 = vpop.f32.mrf.mxu0
    %1001 = vdwg.mxu0
    %v1002 = vmul.f32 %v541, 0.35355338
    %v1003 = vmul.f32 %v544, 0.35355338
    %v1004 = vmul.f32 %v549, 0.35355338
    %v1005 = vmul.f32 %v605, 0.35355338
    %v1006 = vmul.f32 %v608, 0.35355338
    %v1007 = vmul.f32 %v613, 0.35355338
    %v1008 = vmul.f32 %v669, 0.35355338
    %v1009 = vmul.f32 %v672, 0.35355338
    %v1010 = vmul.f32 %v677, 0.35355338
    %v1011 = vmul.f32 %v733, 0.35355338
    %v1012 = vmul.f32 %v736, 0.35355338
    %v1013 = vmul.f32 %v741, 0.35355338
    %v1014 = vmul.f32 %v797, 0.35355338
    %v1015 = vmul.f32 %v800, 0.35355338
    %v1016 = vmul.f32 %v805, 0.35355338
    %v1017 = vmul.f32 %v861, 0.35355338
    %v1018 = vmul.f32 %v864, 0.35355338
    %v1019 = vmul.f32 %v869, 0.35355338
    %v1020 = vmul.f32 %v925, 0.35355338
    %v1021 = vmul.f32 %v928, 0.35355338
    %v1022 = vmul.f32 %v933, 0.35355338
    %v1023 = vmul.f32 %v989, 0.35355338
    %v1024 = vmul.f32 %v992, 0.35355338
    %v1025 = vmul.f32 %v997, 0.35355338
    %vm1026 = vcmask 195584
    %v1027 = vsel %vm1026, %v1002, -inf
    %1028 = vmax.xlane.f32.xlu0 %v1027
    %v1029 = vpop.xlane.xlu0 %1028
    %v1030 = vsel %vm1026, %v1003, -inf
    %1031 = vmax.xlane.f32.xlu0 %v1030
    %v1032 = vpop.xlane.xlu0 %1031
    %v1033 = vsel %vm1026, %v1004, -inf
    %1034 = vmax.xlane.f32.xlu0 %v1033
    %v1035 = vpop.xlane.xlu0 %1034
    %v1036 = vsel %vm1026, %v1005, -inf
    %1037 = vmax.xlane.f32.xlu0 %v1036
    %v1038 = vpop.xlane.xlu0 %1037
    %v1039 = vsel %vm1026, %v1006, -inf
    %1040 = vmax.xlane.f32.xlu0 %v1039
    %v1041 = vpop.xlane.xlu0 %1040
    %v1042 = vsel %vm1026, %v1007, -inf
    %1043 = vmax.xlane.f32.xlu0 %v1042
    %v1044 = vpop.xlane.xlu0 %1043
    %v1045 = vsel %vm1026, %v1008, -inf
    %1046 = vmax.xlane.f32.xlu0 %v1045
    %v1047 = vpop.xlane.xlu0 %1046
    %v1048 = vsel %vm1026, %v1009, -inf
    %1049 = vmax.xlane.f32.xlu0 %v1048
    %v1050 = vpop.xlane.xlu0 %1049
    %v1051 = vsel %vm1026, %v1010, -inf
    %1052 = vmax.xlane.f32.xlu0 %v1051
    %v1053 = vpop.xlane.xlu0 %1052
    %v1054 = vsel %vm1026, %v1011, -inf
    %1055 = vmax.xlane.f32.xlu0 %v1054
    %v1056 = vpop.xlane.xlu0 %1055
    %v1057 = vsel %vm1026, %v1012, -inf
    %1058 = vmax.xlane.f32.xlu0 %v1057
    %v1059 = vpop.xlane.xlu0 %1058
    %v1060 = vsel %vm1026, %v1013, -inf
    %1061 = vmax.xlane.f32.xlu0 %v1060
    %v1062 = vpop.xlane.xlu0 %1061
    %v1063 = vsel %vm1026, %v1014, -inf
    %1064 = vmax.xlane.f32.xlu0 %v1063
    %v1065 = vpop.xlane.xlu0 %1064
    %v1066 = vsel %vm1026, %v1015, -inf
    %1067 = vmax.xlane.f32.xlu0 %v1066
    %v1068 = vpop.xlane.xlu0 %1067
    %v1069 = vsel %vm1026, %v1016, -inf
    %1070 = vmax.xlane.f32.xlu0 %v1069
    %v1071 = vpop.xlane.xlu0 %1070
    %v1072 = vsel %vm1026, %v1017, -inf
    %1073 = vmax.xlane.f32.xlu0 %v1072
    %v1074 = vpop.xlane.xlu0 %1073
    %v1075 = vsel %vm1026, %v1018, -inf
    %1076 = vmax.xlane.f32.xlu0 %v1075
    %v1077 = vpop.xlane.xlu0 %1076
    %v1078 = vsel %vm1026, %v1019, -inf
    %1079 = vmax.xlane.f32.xlu0 %v1078
    %v1080 = vpop.xlane.xlu0 %1079
    %v1081 = vsel %vm1026, %v1020, -inf
    %1082 = vmax.xlane.f32.xlu0 %v1081
    %v1083 = vpop.xlane.xlu0 %1082
    %v1084 = vsel %vm1026, %v1021, -inf
    %1085 = vmax.xlane.f32.xlu0 %v1084
    %v1086 = vpop.xlane.xlu0 %1085
    %v1087 = vsel %vm1026, %v1022, -inf
    %1088 = vmax.xlane.f32.xlu0 %v1087
    %v1089 = vpop.xlane.xlu0 %1088
    %v1090 = vsel %vm1026, %v1023, -inf
    %1091 = vmax.xlane.f32.xlu0 %v1090
    %v1092 = vpop.xlane.xlu0 %1091
    %v1093 = vsel %vm1026, %v1024, -inf
    %1094 = vmax.xlane.f32.xlu0 %v1093
    %v1095 = vpop.xlane.xlu0 %1094
    %v1096 = vsel %vm1026, %v1025, -inf
    %1097 = vmax.xlane.f32.xlu0 %v1096
    %v1098 = vpop.xlane.xlu0 %1097
    %v1099 = vsub.f32 %v1002, %v1029
    %v1100 = vsub.f32 %v1003, %v1032
    %v1101 = vsub.f32 %v1004, %v1035
    %v1102 = vsub.f32 %v1005, %v1038
    %v1103 = vsub.f32 %v1006, %v1041
    %v1104 = vsub.f32 %v1007, %v1044
    %v1105 = vsub.f32 %v1008, %v1047
    %v1106 = vsub.f32 %v1009, %v1050
    %v1107 = vsub.f32 %v1010, %v1053
    %v1108 = vsub.f32 %v1011, %v1056
    %v1109 = vsub.f32 %v1012, %v1059
    %v1110 = vsub.f32 %v1013, %v1062
    %v1111 = vsub.f32 %v1014, %v1065
    %v1112 = vsub.f32 %v1015, %v1068
    %v1113 = vsub.f32 %v1016, %v1071
    %v1114 = vsub.f32 %v1017, %v1074
    %v1115 = vsub.f32 %v1018, %v1077
    %v1116 = vsub.f32 %v1019, %v1080
    %v1117 = vsub.f32 %v1020, %v1083
    %v1118 = vsub.f32 %v1021, %v1086
    %v1119 = vsub.f32 %v1022, %v1089
    %v1120 = vsub.f32 %v1023, %v1092
    %v1121 = vsub.f32 %v1024, %v1095
    %v1122 = vsub.f32 %v1025, %v1098
    %v1123 = vmul.f32 %v1099, 1.442695
    %v1124 = vpow.pop %v1123
    %v1125 = vmul.f32 %v1100, 1.442695
    %v1126 = vpow.pop %v1125
    %v1127 = vmul.f32 %v1101, 1.442695
    %v1128 = vpow.pop %v1127
    %v1129 = vmul.f32 %v1102, 1.442695
    %v1130 = vpow.pop %v1129
    %v1131 = vmul.f32 %v1103, 1.442695
    %v1132 = vpow.pop %v1131
    %v1133 = vmul.f32 %v1104, 1.442695
    %v1134 = vpow.pop %v1133
    %v1135 = vmul.f32 %v1105, 1.442695
    %v1136 = vpow.pop %v1135
    %v1137 = vmul.f32 %v1106, 1.442695
    %v1138 = vpow.pop %v1137
    %v1139 = vmul.f32 %v1107, 1.442695
    %v1140 = vpow.pop %v1139
    %v1141 = vmul.f32 %v1108, 1.442695
    %v1142 = vpow.pop %v1141
    %v1143 = vmul.f32 %v1109, 1.442695
    %v1144 = vpow.pop %v1143
    %v1145 = vmul.f32 %v1110, 1.442695
    %v1146 = vpow.pop %v1145
    %v1147 = vmul.f32 %v1111, 1.442695
    %v1148 = vpow.pop %v1147
    %v1149 = vmul.f32 %v1112, 1.442695
    %v1150 = vpow.pop %v1149
    %v1151 = vmul.f32 %v1113, 1.442695
    %v1152 = vpow.pop %v1151
    %v1153 = vmul.f32 %v1114, 1.442695
    %v1154 = vpow.pop %v1153
    %v1155 = vmul.f32 %v1115, 1.442695
    %v1156 = vpow.pop %v1155
    %v1157 = vmul.f32 %v1116, 1.442695
    %v1158 = vpow.pop %v1157
    %v1159 = vmul.f32 %v1117, 1.442695
    %v1160 = vpow.pop %v1159
    %v1161 = vmul.f32 %v1118, 1.442695
    %v1162 = vpow.pop %v1161
    %v1163 = vmul.f32 %v1119, 1.442695
    %v1164 = vpow.pop %v1163
    %v1165 = vmul.f32 %v1120, 1.442695
    %v1166 = vpow.pop %v1165
    %v1167 = vmul.f32 %v1121, 1.442695
    %v1168 = vpow.pop %v1167
    %v1169 = vmul.f32 %v1122, 1.442695
    %v1170 = vpow.pop %v1169
    %v1171 = vsel %vm1026, %v1124, 0.0
    %1172 = vadd.xlane.f32.xlu0 %v1171
    %v1173 = vpop.xlane.xlu0 %1172
    %v1174 = vsel %vm1026, %v1126, 0.0
    %1175 = vadd.xlane.f32.xlu0 %v1174
    %v1176 = vpop.xlane.xlu0 %1175
    %v1177 = vsel %vm1026, %v1128, 0.0
    %1178 = vadd.xlane.f32.xlu0 %v1177
    %v1179 = vpop.xlane.xlu0 %1178
    %v1180 = vsel %vm1026, %v1130, 0.0
    %1181 = vadd.xlane.f32.xlu0 %v1180
    %v1182 = vpop.xlane.xlu0 %1181
    %v1183 = vsel %vm1026, %v1132, 0.0
    %1184 = vadd.xlane.f32.xlu0 %v1183
    %v1185 = vpop.xlane.xlu0 %1184
    %v1186 = vsel %vm1026, %v1134, 0.0
    %1187 = vadd.xlane.f32.xlu0 %v1186
    %v1188 = vpop.xlane.xlu0 %1187
    %v1189 = vsel %vm1026, %v1136, 0.0
    %1190 = vadd.xlane.f32.xlu0 %v1189
    %v1191 = vpop.xlane.xlu0 %1190
    %v1192 = vsel %vm1026, %v1138, 0.0
    %1193 = vadd.xlane.f32.xlu0 %v1192
    %v1194 = vpop.xlane.xlu0 %1193
    %v1195 = vsel %vm1026, %v1140, 0.0
    %1196 = vadd.xlane.f32.xlu0 %v1195
    %v1197 = vpop.xlane.xlu0 %1196
    %v1198 = vsel %vm1026, %v1142, 0.0
    %1199 = vadd.xlane.f32.xlu0 %v1198
    %v1200 = vpop.xlane.xlu0 %1199
    %v1201 = vsel %vm1026, %v1144, 0.0
    %1202 = vadd.xlane.f32.xlu0 %v1201
    %v1203 = vpop.xlane.xlu0 %1202
    %v1204 = vsel %vm1026, %v1146, 0.0
    %1205 = vadd.xlane.f32.xlu0 %v1204
    %v1206 = vpop.xlane.xlu0 %1205
    %v1207 = vsel %vm1026, %v1148, 0.0
    %1208 = vadd.xlane.f32.xlu0 %v1207
    %v1209 = vpop.xlane.xlu0 %1208
    %v1210 = vsel %vm1026, %v1150, 0.0
    %1211 = vadd.xlane.f32.xlu0 %v1210
    %v1212 = vpop.xlane.xlu0 %1211
    %v1213 = vsel %vm1026, %v1152, 0.0
    %1214 = vadd.xlane.f32.xlu0 %v1213
    %v1215 = vpop.xlane.xlu0 %1214
    %v1216 = vsel %vm1026, %v1154, 0.0
    %1217 = vadd.xlane.f32.xlu0 %v1216
    %v1218 = vpop.xlane.xlu0 %1217
    %v1219 = vsel %vm1026, %v1156, 0.0
    %1220 = vadd.xlane.f32.xlu0 %v1219
    %v1221 = vpop.xlane.xlu0 %1220
    %v1222 = vsel %vm1026, %v1158, 0.0
    %1223 = vadd.xlane.f32.xlu0 %v1222
    %v1224 = vpop.xlane.xlu0 %1223
    %v1225 = vsel %vm1026, %v1160, 0.0
    %1226 = vadd.xlane.f32.xlu0 %v1225
    %v1227 = vpop.xlane.xlu0 %1226
    %v1228 = vsel %vm1026, %v1162, 0.0
    %1229 = vadd.xlane.f32.xlu0 %v1228
    %v1230 = vpop.xlane.xlu0 %1229
    %v1231 = vsel %vm1026, %v1164, 0.0
    %1232 = vadd.xlane.f32.xlu0 %v1231
    %v1233 = vpop.xlane.xlu0 %1232
    %v1234 = vsel %vm1026, %v1166, 0.0
    %1235 = vadd.xlane.f32.xlu0 %v1234
    %v1236 = vpop.xlane.xlu0 %1235
    %v1237 = vsel %vm1026, %v1168, 0.0
    %1238 = vadd.xlane.f32.xlu0 %v1237
    %v1239 = vpop.xlane.xlu0 %1238
    %v1240 = vsel %vm1026, %v1170, 0.0
    %1241 = vadd.xlane.f32.xlu0 %v1240
    %v1242 = vpop.xlane.xlu0 %1241
    %v1243 = vrcp.pop %v1173
    %v1244 = vmul.f32 %v1124, %v1243
    %v1245 = vrcp.pop %v1176
    %v1246 = vmul.f32 %v1126, %v1245
    %v1247 = vrcp.pop %v1179
    %v1248 = vmul.f32 %v1128, %v1247
    %v1249 = vrcp.pop %v1182
    %v1250 = vmul.f32 %v1130, %v1249
    %v1251 = vrcp.pop %v1185
    %v1252 = vmul.f32 %v1132, %v1251
    %v1253 = vrcp.pop %v1188
    %v1254 = vmul.f32 %v1134, %v1253
    %v1255 = vrcp.pop %v1191
    %v1256 = vmul.f32 %v1136, %v1255
    %v1257 = vrcp.pop %v1194
    %v1258 = vmul.f32 %v1138, %v1257
    %v1259 = vrcp.pop %v1197
    %v1260 = vmul.f32 %v1140, %v1259
    %v1261 = vrcp.pop %v1200
    %v1262 = vmul.f32 %v1142, %v1261
    %v1263 = vrcp.pop %v1203
    %v1264 = vmul.f32 %v1144, %v1263
    %v1265 = vrcp.pop %v1206
    %v1266 = vmul.f32 %v1146, %v1265
    %v1267 = vrcp.pop %v1209
    %v1268 = vmul.f32 %v1148, %v1267
    %v1269 = vrcp.pop %v1212
    %v1270 = vmul.f32 %v1150, %v1269
    %v1271 = vrcp.pop %v1215
    %v1272 = vmul.f32 %v1152, %v1271
    %v1273 = vrcp.pop %v1218
    %v1274 = vmul.f32 %v1154, %v1273
    %v1275 = vrcp.pop %v1221
    %v1276 = vmul.f32 %v1156, %v1275
    %v1277 = vrcp.pop %v1224
    %v1278 = vmul.f32 %v1158, %v1277
    %v1279 = vrcp.pop %v1227
    %v1280 = vmul.f32 %v1160, %v1279
    %v1281 = vrcp.pop %v1230
    %v1282 = vmul.f32 %v1162, %v1281
    %v1283 = vrcp.pop %v1233
    %v1284 = vmul.f32 %v1164, %v1283
    %v1285 = vrcp.pop %v1236
    %v1286 = vmul.f32 %v1166, %v1285
    %v1287 = vrcp.pop %v1239
    %v1288 = vmul.f32 %v1168, %v1287
    %v1289 = vrcp.pop %v1242
    %v1290 = vmul.f32 %v1170, %v1289
    %v1291 = vpack.c.bf16 %v1246, %v1244
    %v1292 = vpack.c.bf16 %v1248, %v1248
    %v1293 = vpack.c.bf16 %v1252, %v1250
    %v1294 = vpack.c.bf16 %v1254, %v1254
    %v1295 = vpack.c.bf16 %v1258, %v1256
    %v1296 = vpack.c.bf16 %v1260, %v1260
    %v1297 = vpack.c.bf16 %v1264, %v1262
    %v1298 = vpack.c.bf16 %v1266, %v1266
    %v1299 = vpack.c.bf16 %v1270, %v1268
    %v1300 = vpack.c.bf16 %v1272, %v1272
    %v1301 = vpack.c.bf16 %v1276, %v1274
    %v1302 = vpack.c.bf16 %v1278, %v1278
    %v1303 = vpack.c.bf16 %v1282, %v1280
    %v1304 = vpack.c.bf16 %v1284, %v1284
    %v1305 = vpack.c.bf16 %v1288, %v1286
    %v1306 = vpack.c.bf16 %v1290, %v1290
    %1307 = vrot.lane.b32.xlu0 %v455, 64
    %v1308 = vpop.permute.xlu0 %1307
    %1309 = vrot.lane.b32.xlu0 %v456, 64
    %v1310 = vpop.permute.xlu0 %1309
    %v1313 = vsel %vm1026, %v1291, 0
    %v1316 = vsel %vm1026, %v1292, 0
    %vm1318 = vcmask 1043456
    %v1320 = vsel %vm1318, %v1310, 0
    %1322 = vmatprep.subr.bf16.mxu0 0
    %1323 = vmatpush1.bf16.msra.mxu0 0
    %1324 = vmatprep.subr.bf16.mxu0 0
    %1325 = vmatpush1.bf16.msra.mxu0 0
    %1326 = vmatprep.subr.bf16.mxu0 0
    %1327 = vmatpush1.bf16.msra.mxu0 0
    %1328 = vmatprep.subr.bf16.mxu0 0
    %1329 = vmatpush1.bf16.msra.mxu0 0
    %1330 = vmatprep.subr.bf16.mxu0 0
    %1331 = vmatpush1.bf16.msra.mxu0 0
    %1332 = vmatprep.subr.bf16.mxu0 0
    %1333 = vmatpush1.bf16.msra.mxu0 0
    %1334 = vmatprep.subr.bf16.mxu0 0
    %1335 = vmatpush1.bf16.msra.mxu0 %v1320
    %1336 = vmatprep.subr.bf16.mxu0 0
    %1337 = vmatpush1.bf16.msra.mxu0 %v1308
    %1338 = vmatprep.subr.bf16.mxu0 0
    %1339 = vmatpush2.bf16.msra.mxu0 0
    %1340 = vmatprep.subr.bf16.mxu0 0
    %1341 = vmatpush2.bf16.msra.mxu0 0
    %1342 = vmatprep.subr.bf16.mxu0 0
    %1343 = vmatpush2.bf16.msra.mxu0 0
    %1344 = vmatprep.subr.bf16.mxu0 0
    %1345 = vmatpush2.bf16.msra.mxu0 0
    %1346 = vmatprep.subr.bf16.mxu0 0
    %1347 = vmatpush2.bf16.msra.mxu0 0
    %1348 = vmatprep.subr.bf16.mxu0 0
    %1349 = vmatpush2.bf16.msra.mxu0 0
    %1350 = vmatprep.subr.bf16.mxu0 0
    %1351 = vmatpush2.bf16.msra.mxu0 0
    %1352 = vmatprep.subr.bf16.mxu0 0
    %1353 = vmatpush2.bf16.msra.mxu0 0
    %1354 = vmatprep.mubr.bf16.mxu0 0
    %1355 = vmatmul.mubr.bf16.gmra.mxu0 %v1313
    %v1356 = vpop.f32.mrf.mxu0
    %v1357 = vadd.f32 0.0, %v1356
    %v1358 = vpop.f32.mrf.mxu0
    %v1359 = vpop.f32.mrf.mxu0
    %v1360 = vadd.f32 0.0, %v1359
    %v1361 = vpop.f32.mrf.mxu0
    %1362 = vmatprep.mubr.bf16.mxu0 0
    %1363 = vmatmul.mubr.bf16.gmra.mxu0 %v1316
    %v1364 = vpop.f32.mrf.mxu0
    %v1365 = vadd.f32 0.0, %v1364
    %v1366 = vpop.f32.mrf.mxu0
    %v1367 = vpop.f32.mrf.mxu0
    %v1368 = vpop.f32.mrf.mxu0
    %1369 = vdwg.mxu0
    %1370 = vrot.lane.b32.xlu0 %v461, 64
    %v1371 = vpop.permute.xlu0 %1370
    %1372 = vrot.lane.b32.xlu0 %v463, 64
    %v1373 = vpop.permute.xlu0 %1372
    %v1376 = vsel %vm1026, %v1293, 0
    %v1379 = vsel %vm1026, %v1294, 0
    %v1382 = vsel %vm1318, %v1373, 0
    %1384 = vmatprep.subr.bf16.mxu0 0
    %1385 = vmatpush1.bf16.msra.mxu0 0
    %1386 = vmatprep.subr.bf16.mxu0 0
    %1387 = vmatpush1.bf16.msra.mxu0 0
    %1388 = vmatprep.subr.bf16.mxu0 0
    %1389 = vmatpush1.bf16.msra.mxu0 0
    %1390 = vmatprep.subr.bf16.mxu0 0
    %1391 = vmatpush1.bf16.msra.mxu0 0
    %1392 = vmatprep.subr.bf16.mxu0 0
    %1393 = vmatpush1.bf16.msra.mxu0 0
    %1394 = vmatprep.subr.bf16.mxu0 0
    %1395 = vmatpush1.bf16.msra.mxu0 0
    %1396 = vmatprep.subr.bf16.mxu0 0
    %1397 = vmatpush1.bf16.msra.mxu0 %v1382
    %1398 = vmatprep.subr.bf16.mxu0 0
    %1399 = vmatpush1.bf16.msra.mxu0 %v1371
    %1400 = vmatprep.subr.bf16.mxu0 0
    %1401 = vmatpush2.bf16.msra.mxu0 0
    %1402 = vmatprep.subr.bf16.mxu0 0
    %1403 = vmatpush2.bf16.msra.mxu0 0
    %1404 = vmatprep.subr.bf16.mxu0 0
    %1405 = vmatpush2.bf16.msra.mxu0 0
    %1406 = vmatprep.subr.bf16.mxu0 0
    %1407 = vmatpush2.bf16.msra.mxu0 0
    %1408 = vmatprep.subr.bf16.mxu0 0
    %1409 = vmatpush2.bf16.msra.mxu0 0
    %1410 = vmatprep.subr.bf16.mxu0 0
    %1411 = vmatpush2.bf16.msra.mxu0 0
    %1412 = vmatprep.subr.bf16.mxu0 0
    %1413 = vmatpush2.bf16.msra.mxu0 0
    %1414 = vmatprep.subr.bf16.mxu0 0
    %1415 = vmatpush2.bf16.msra.mxu0 0
    %1416 = vmatprep.mubr.bf16.mxu0 0
    %1417 = vmatmul.mubr.bf16.gmra.mxu0 %v1376
    %v1418 = vpop.f32.mrf.mxu0
    %v1419 = vadd.f32 0.0, %v1418
    %v1420 = vpop.f32.mrf.mxu0
    %v1421 = vpop.f32.mrf.mxu0
    %v1422 = vadd.f32 0.0, %v1421
    %v1423 = vpop.f32.mrf.mxu0
    %1424 = vmatprep.mubr.bf16.mxu0 0
    %1425 = vmatmul.mubr.bf16.gmra.mxu0 %v1379
    %v1426 = vpop.f32.mrf.mxu0
    %v1427 = vadd.f32 0.0, %v1426
    %v1428 = vpop.f32.mrf.mxu0
    %v1429 = vpop.f32.mrf.mxu0
    %v1430 = vpop.f32.mrf.mxu0
    %1431 = vdwg.mxu0
    %1432 = vrot.lane.b32.xlu0 %v465, 64
    %v1433 = vpop.permute.xlu0 %1432
    %1434 = vrot.lane.b32.xlu0 %v467, 64
    %v1435 = vpop.permute.xlu0 %1434
    %v1438 = vsel %vm1026, %v1295, 0
    %v1441 = vsel %vm1026, %v1296, 0
    %v1444 = vsel %vm1318, %v1435, 0
    %1446 = vmatprep.subr.bf16.mxu0 0
    %1447 = vmatpush1.bf16.msra.mxu0 0
    %1448 = vmatprep.subr.bf16.mxu0 0
    %1449 = vmatpush1.bf16.msra.mxu0 0
    %1450 = vmatprep.subr.bf16.mxu0 0
    %1451 = vmatpush1.bf16.msra.mxu0 0
    %1452 = vmatprep.subr.bf16.mxu0 0
    %1453 = vmatpush1.bf16.msra.mxu0 0
    %1454 = vmatprep.subr.bf16.mxu0 0
    %1455 = vmatpush1.bf16.msra.mxu0 0
    %1456 = vmatprep.subr.bf16.mxu0 0
    %1457 = vmatpush1.bf16.msra.mxu0 0
    %1458 = vmatprep.subr.bf16.mxu0 0
    %1459 = vmatpush1.bf16.msra.mxu0 %v1444
    %1460 = vmatprep.subr.bf16.mxu0 0
    %1461 = vmatpush1.bf16.msra.mxu0 %v1433
    %1462 = vmatprep.subr.bf16.mxu0 0
    %1463 = vmatpush2.bf16.msra.mxu0 0
    %1464 = vmatprep.subr.bf16.mxu0 0
    %1465 = vmatpush2.bf16.msra.mxu0 0
    %1466 = vmatprep.subr.bf16.mxu0 0
    %1467 = vmatpush2.bf16.msra.mxu0 0
    %1468 = vmatprep.subr.bf16.mxu0 0
    %1469 = vmatpush2.bf16.msra.mxu0 0
    %1470 = vmatprep.subr.bf16.mxu0 0
    %1471 = vmatpush2.bf16.msra.mxu0 0
    %1472 = vmatprep.subr.bf16.mxu0 0
    %1473 = vmatpush2.bf16.msra.mxu0 0
    %1474 = vmatprep.subr.bf16.mxu0 0
    %1475 = vmatpush2.bf16.msra.mxu0 0
    %1476 = vmatprep.subr.bf16.mxu0 0
    %1477 = vmatpush2.bf16.msra.mxu0 0
    %1478 = vmatprep.mubr.bf16.mxu0 0
    %1479 = vmatmul.mubr.bf16.gmra.mxu0 %v1438
    %v1480 = vpop.f32.mrf.mxu0
    %v1481 = vadd.f32 0.0, %v1480
    %v1482 = vpop.f32.mrf.mxu0
    %v1483 = vpop.f32.mrf.mxu0
    %v1484 = vadd.f32 0.0, %v1483
    %v1485 = vpop.f32.mrf.mxu0
    %1486 = vmatprep.mubr.bf16.mxu0 0
    %1487 = vmatmul.mubr.bf16.gmra.mxu0 %v1441
    %v1488 = vpop.f32.mrf.mxu0
    %v1489 = vadd.f32 0.0, %v1488
    %v1490 = vpop.f32.mrf.mxu0
    %v1491 = vpop.f32.mrf.mxu0
    %v1492 = vpop.f32.mrf.mxu0
    %1493 = vdwg.mxu0
    %1494 = vrot.lane.b32.xlu0 %v469, 64
    %v1495 = vpop.permute.xlu0 %1494
    %1496 = vrot.lane.b32.xlu0 %v471, 64
    %v1497 = vpop.permute.xlu0 %1496
    %v1500 = vsel %vm1026, %v1297, 0
    %v1503 = vsel %vm1026, %v1298, 0
    %v1506 = vsel %vm1318, %v1497, 0
    %1508 = vmatprep.subr.bf16.mxu0 0
    %1509 = vmatpush1.bf16.msra.mxu0 0
    %1510 = vmatprep.subr.bf16.mxu0 0
    %1511 = vmatpush1.bf16.msra.mxu0 0
    %1512 = vmatprep.subr.bf16.mxu0 0
    %1513 = vmatpush1.bf16.msra.mxu0 0
    %1514 = vmatprep.subr.bf16.mxu0 0
    %1515 = vmatpush1.bf16.msra.mxu0 0
    %1516 = vmatprep.subr.bf16.mxu0 0
    %1517 = vmatpush1.bf16.msra.mxu0 0
    %1518 = vmatprep.subr.bf16.mxu0 0
    %1519 = vmatpush1.bf16.msra.mxu0 0
    %1520 = vmatprep.subr.bf16.mxu0 0
    %1521 = vmatpush1.bf16.msra.mxu0 %v1506
    %1522 = vmatprep.subr.bf16.mxu0 0
    %1523 = vmatpush1.bf16.msra.mxu0 %v1495
    %1524 = vmatprep.subr.bf16.mxu0 0
    %1525 = vmatpush2.bf16.msra.mxu0 0
    %1526 = vmatprep.subr.bf16.mxu0 0
    %1527 = vmatpush2.bf16.msra.mxu0 0
    %1528 = vmatprep.subr.bf16.mxu0 0
    %1529 = vmatpush2.bf16.msra.mxu0 0
    %1530 = vmatprep.subr.bf16.mxu0 0
    %1531 = vmatpush2.bf16.msra.mxu0 0
    %1532 = vmatprep.subr.bf16.mxu0 0
    %1533 = vmatpush2.bf16.msra.mxu0 0
    %1534 = vmatprep.subr.bf16.mxu0 0
    %1535 = vmatpush2.bf16.msra.mxu0 0
    %1536 = vmatprep.subr.bf16.mxu0 0
    %1537 = vmatpush2.bf16.msra.mxu0 0
    %1538 = vmatprep.subr.bf16.mxu0 0
    %1539 = vmatpush2.bf16.msra.mxu0 0
    %1540 = vmatprep.mubr.bf16.mxu0 0
    %1541 = vmatmul.mubr.bf16.gmra.mxu0 %v1500
    %v1542 = vpop.f32.mrf.mxu0
    %v1543 = vadd.f32 0.0, %v1542
    %v1544 = vpop.f32.mrf.mxu0
    %v1545 = vpop.f32.mrf.mxu0
    %v1546 = vadd.f32 0.0, %v1545
    %v1547 = vpop.f32.mrf.mxu0
    %1548 = vmatprep.mubr.bf16.mxu0 0
    %1549 = vmatmul.mubr.bf16.gmra.mxu0 %v1503
    %v1550 = vpop.f32.mrf.mxu0
    %v1551 = vadd.f32 0.0, %v1550
    %v1552 = vpop.f32.mrf.mxu0
    %v1553 = vpop.f32.mrf.mxu0
    %v1554 = vpop.f32.mrf.mxu0
    %1555 = vdwg.mxu0
    %1556 = vrot.lane.b32.xlu0 %v476, 64
    %v1557 = vpop.permute.xlu0 %1556
    %1558 = vrot.lane.b32.xlu0 %v475, 64
    %v1559 = vpop.permute.xlu0 %1558
    %v1562 = vsel %vm1026, %v1299, 0
    %v1565 = vsel %vm1026, %v1300, 0
    %v1568 = vsel %vm1318, %v1559, 0
    %1570 = vmatprep.subr.bf16.mxu0 0
    %1571 = vmatpush1.bf16.msra.mxu0 0
    %1572 = vmatprep.subr.bf16.mxu0 0
    %1573 = vmatpush1.bf16.msra.mxu0 0
    %1574 = vmatprep.subr.bf16.mxu0 0
    %1575 = vmatpush1.bf16.msra.mxu0 0
    %1576 = vmatprep.subr.bf16.mxu0 0
    %1577 = vmatpush1.bf16.msra.mxu0 0
    %1578 = vmatprep.subr.bf16.mxu0 0
    %1579 = vmatpush1.bf16.msra.mxu0 0
    %1580 = vmatprep.subr.bf16.mxu0 0
    %1581 = vmatpush1.bf16.msra.mxu0 0
    %1582 = vmatprep.subr.bf16.mxu0 0
    %1583 = vmatpush1.bf16.msra.mxu0 %v1568
    %1584 = vmatprep.subr.bf16.mxu0 0
    %1585 = vmatpush1.bf16.msra.mxu0 %v1557
    %1586 = vmatprep.subr.bf16.mxu0 0
    %1587 = vmatpush2.bf16.msra.mxu0 0
    %1588 = vmatprep.subr.bf16.mxu0 0
    %1589 = vmatpush2.bf16.msra.mxu0 0
    %1590 = vmatprep.subr.bf16.mxu0 0
    %1591 = vmatpush2.bf16.msra.mxu0 0
    %1592 = vmatprep.subr.bf16.mxu0 0
    %1593 = vmatpush2.bf16.msra.mxu0 0
    %1594 = vmatprep.subr.bf16.mxu0 0
    %1595 = vmatpush2.bf16.msra.mxu0 0
    %1596 = vmatprep.subr.bf16.mxu0 0
    %1597 = vmatpush2.bf16.msra.mxu0 0
    %1598 = vmatprep.subr.bf16.mxu0 0
    %1599 = vmatpush2.bf16.msra.mxu0 0
    %1600 = vmatprep.subr.bf16.mxu0 0
    %1601 = vmatpush2.bf16.msra.mxu0 0
    %1602 = vmatprep.mubr.bf16.mxu0 0
    %1603 = vmatmul.mubr.bf16.gmra.mxu0 %v1562
    %v1604 = vpop.f32.mrf.mxu0
    %v1605 = vadd.f32 0.0, %v1604
    %v1606 = vpop.f32.mrf.mxu0
    %v1607 = vpop.f32.mrf.mxu0
    %v1608 = vadd.f32 0.0, %v1607
    %v1609 = vpop.f32.mrf.mxu0
    %1610 = vmatprep.mubr.bf16.mxu0 0
    %1611 = vmatmul.mubr.bf16.gmra.mxu0 %v1565
    %v1612 = vpop.f32.mrf.mxu0
    %v1613 = vadd.f32 0.0, %v1612
    %v1614 = vpop.f32.mrf.mxu0
    %v1615 = vpop.f32.mrf.mxu0
    %v1616 = vpop.f32.mrf.mxu0
    %1617 = vdwg.mxu0
    %1618 = vrot.lane.b32.xlu0 %v478, 64
    %v1619 = vpop.permute.xlu0 %1618
    %1620 = vrot.lane.b32.xlu0 %v480, 64
    %v1621 = vpop.permute.xlu0 %1620
    %v1624 = vsel %vm1026, %v1301, 0
    %v1627 = vsel %vm1026, %v1302, 0
    %v1630 = vsel %vm1318, %v1621, 0
    %1632 = vmatprep.subr.bf16.mxu0 0
    %1633 = vmatpush1.bf16.msra.mxu0 0
    %1634 = vmatprep.subr.bf16.mxu0 0
    %1635 = vmatpush1.bf16.msra.mxu0 0
    %1636 = vmatprep.subr.bf16.mxu0 0
    %1637 = vmatpush1.bf16.msra.mxu0 0
    %1638 = vmatprep.subr.bf16.mxu0 0
    %1639 = vmatpush1.bf16.msra.mxu0 0
    %1640 = vmatprep.subr.bf16.mxu0 0
    %1641 = vmatpush1.bf16.msra.mxu0 0
    %1642 = vmatprep.subr.bf16.mxu0 0
    %1643 = vmatpush1.bf16.msra.mxu0 0
    %1644 = vmatprep.subr.bf16.mxu0 0
    %1645 = vmatpush1.bf16.msra.mxu0 %v1630
    %1646 = vmatprep.subr.bf16.mxu0 0
    %1647 = vmatpush1.bf16.msra.mxu0 %v1619
    %1648 = vmatprep.subr.bf16.mxu0 0
    %1649 = vmatpush2.bf16.msra.mxu0 0
    %1650 = vmatprep.subr.bf16.mxu0 0
    %1651 = vmatpush2.bf16.msra.mxu0 0
    %1652 = vmatprep.subr.bf16.mxu0 0
    %1653 = vmatpush2.bf16.msra.mxu0 0
    %1654 = vmatprep.subr.bf16.mxu0 0
    %1655 = vmatpush2.bf16.msra.mxu0 0
    %1656 = vmatprep.subr.bf16.mxu0 0
    %1657 = vmatpush2.bf16.msra.mxu0 0
    %1658 = vmatprep.subr.bf16.mxu0 0
    %1659 = vmatpush2.bf16.msra.mxu0 0
    %1660 = vmatprep.subr.bf16.mxu0 0
    %1661 = vmatpush2.bf16.msra.mxu0 0
    %1662 = vmatprep.subr.bf16.mxu0 0
    %1663 = vmatpush2.bf16.msra.mxu0 0
    %1664 = vmatprep.mubr.bf16.mxu0 0
    %1665 = vmatmul.mubr.bf16.gmra.mxu0 %v1624
    %v1666 = vpop.f32.mrf.mxu0
    %v1667 = vadd.f32 0.0, %v1666
    %v1668 = vpop.f32.mrf.mxu0
    %v1669 = vpop.f32.mrf.mxu0
    %v1670 = vadd.f32 0.0, %v1669
    %v1671 = vpop.f32.mrf.mxu0
    %1672 = vmatprep.mubr.bf16.mxu0 0
    %1673 = vmatmul.mubr.bf16.gmra.mxu0 %v1627
    %v1674 = vpop.f32.mrf.mxu0
    %v1675 = vadd.f32 0.0, %v1674
    %v1676 = vpop.f32.mrf.mxu0
    %v1677 = vpop.f32.mrf.mxu0
    %v1678 = vpop.f32.mrf.mxu0
    %1679 = vdwg.mxu0
    %1680 = vrot.lane.b32.xlu0 %v482, 64
    %v1681 = vpop.permute.xlu0 %1680
    %1682 = vrot.lane.b32.xlu0 %v484, 64
    %v1683 = vpop.permute.xlu0 %1682
    %v1686 = vsel %vm1026, %v1303, 0
    %v1689 = vsel %vm1026, %v1304, 0
    %v1692 = vsel %vm1318, %v1683, 0
    %1694 = vmatprep.subr.bf16.mxu0 0
    %1695 = vmatpush1.bf16.msra.mxu0 0
    %1696 = vmatprep.subr.bf16.mxu0 0
    %1697 = vmatpush1.bf16.msra.mxu0 0
    %1698 = vmatprep.subr.bf16.mxu0 0
    %1699 = vmatpush1.bf16.msra.mxu0 0
    %1700 = vmatprep.subr.bf16.mxu0 0
    %1701 = vmatpush1.bf16.msra.mxu0 0
    %1702 = vmatprep.subr.bf16.mxu0 0
    %1703 = vmatpush1.bf16.msra.mxu0 0
    %1704 = vmatprep.subr.bf16.mxu0 0
    %1705 = vmatpush1.bf16.msra.mxu0 0
    %1706 = vmatprep.subr.bf16.mxu0 0
    %1707 = vmatpush1.bf16.msra.mxu0 %v1692
    %1708 = vmatprep.subr.bf16.mxu0 0
    %1709 = vmatpush1.bf16.msra.mxu0 %v1681
    %1710 = vmatprep.subr.bf16.mxu0 0
    %1711 = vmatpush2.bf16.msra.mxu0 0
    %1712 = vmatprep.subr.bf16.mxu0 0
    %1713 = vmatpush2.bf16.msra.mxu0 0
    %1714 = vmatprep.subr.bf16.mxu0 0
    %1715 = vmatpush2.bf16.msra.mxu0 0
    %1716 = vmatprep.subr.bf16.mxu0 0
    %1717 = vmatpush2.bf16.msra.mxu0 0
    %1718 = vmatprep.subr.bf16.mxu0 0
    %1719 = vmatpush2.bf16.msra.mxu0 0
    %1720 = vmatprep.subr.bf16.mxu0 0
    %1721 = vmatpush2.bf16.msra.mxu0 0
    %1722 = vmatprep.subr.bf16.mxu0 0
    %1723 = vmatpush2.bf16.msra.mxu0 0
    %1724 = vmatprep.subr.bf16.mxu0 0
    %1725 = vmatpush2.bf16.msra.mxu0 0
    %1726 = vmatprep.mubr.bf16.mxu0 0
    %1727 = vmatmul.mubr.bf16.gmra.mxu0 %v1686
    %v1728 = vpop.f32.mrf.mxu0
    %v1729 = vadd.f32 0.0, %v1728
    %v1730 = vpop.f32.mrf.mxu0
    %v1731 = vpop.f32.mrf.mxu0
    %v1732 = vadd.f32 0.0, %v1731
    %v1733 = vpop.f32.mrf.mxu0
    %1734 = vmatprep.mubr.bf16.mxu0 0
    %1735 = vmatmul.mubr.bf16.gmra.mxu0 %v1689
    %v1736 = vpop.f32.mrf.mxu0
    %v1737 = vadd.f32 0.0, %v1736
    %v1738 = vpop.f32.mrf.mxu0
    %v1739 = vpop.f32.mrf.mxu0
    %v1740 = vpop.f32.mrf.mxu0
    %1741 = vdwg.mxu0
    %1742 = vrot.lane.b32.xlu0 %v486, 64
    %v1743 = vpop.permute.xlu0 %1742
    %1744 = vrot.lane.b32.xlu0 %v488, 64
    %v1745 = vpop.permute.xlu0 %1744
    %v1748 = vsel %vm1026, %v1305, 0
    %v1751 = vsel %vm1026, %v1306, 0
    %v1754 = vsel %vm1318, %v1745, 0
    %1756 = vmatprep.subr.bf16.mxu0 0
    %1757 = vmatpush1.bf16.msra.mxu0 0
    %1758 = vmatprep.subr.bf16.mxu0 0
    %1759 = vmatpush1.bf16.msra.mxu0 0
    %1760 = vmatprep.subr.bf16.mxu0 0
    %1761 = vmatpush1.bf16.msra.mxu0 0
    %1762 = vmatprep.subr.bf16.mxu0 0
    %1763 = vmatpush1.bf16.msra.mxu0 0
    %1764 = vmatprep.subr.bf16.mxu0 0
    %1765 = vmatpush1.bf16.msra.mxu0 0
    %1766 = vmatprep.subr.bf16.mxu0 0
    %1767 = vmatpush1.bf16.msra.mxu0 0
    %1768 = vmatprep.subr.bf16.mxu0 0
    %1769 = vmatpush1.bf16.msra.mxu0 %v1754
    %1770 = vmatprep.subr.bf16.mxu0 0
    %1771 = vmatpush1.bf16.msra.mxu0 %v1743
    %1772 = vmatprep.subr.bf16.mxu0 0
    %1773 = vmatpush2.bf16.msra.mxu0 0
    %1774 = vmatprep.subr.bf16.mxu0 0
    %1775 = vmatpush2.bf16.msra.mxu0 0
    %1776 = vmatprep.subr.bf16.mxu0 0
    %1777 = vmatpush2.bf16.msra.mxu0 0
    %1778 = vmatprep.subr.bf16.mxu0 0
    %1779 = vmatpush2.bf16.msra.mxu0 0
    %1780 = vmatprep.subr.bf16.mxu0 0
    %1781 = vmatpush2.bf16.msra.mxu0 0
    %1782 = vmatprep.subr.bf16.mxu0 0
    %1783 = vmatpush2.bf16.msra.mxu0 0
    %1784 = vmatprep.subr.bf16.mxu0 0
    %1785 = vmatpush2.bf16.msra.mxu0 0
    %1786 = vmatprep.subr.bf16.mxu0 0
    %1787 = vmatpush2.bf16.msra.mxu0 0
    %1788 = vmatprep.mubr.bf16.mxu0 0
    %1789 = vmatmul.mubr.bf16.gmra.mxu0 %v1748
    %v1790 = vpop.f32.mrf.mxu0
    %v1791 = vadd.f32 0.0, %v1790
    %v1792 = vpop.f32.mrf.mxu0
    %v1793 = vpop.f32.mrf.mxu0
    %v1794 = vadd.f32 0.0, %v1793
    %v1795 = vpop.f32.mrf.mxu0
    %1796 = vmatprep.mubr.bf16.mxu0 0
    %1797 = vmatmul.mubr.bf16.gmra.mxu0 %v1751
    %v1798 = vpop.f32.mrf.mxu0
    %v1799 = vadd.f32 0.0, %v1798
    %v1800 = vpop.f32.mrf.mxu0
    %v1801 = vpop.f32.mrf.mxu0
    %v1802 = vpop.f32.mrf.mxu0
    %1803 = vdwg.mxu0
    %1804 = vst.msk [vmem:[#allocation13] sm:$0xff] %vm1026, %v1244
    %1805 = vst.msk [vmem:[#allocation13 + $0x8] sm:$0xff] %vm1026, %v1246
    %1806 = vst.msk [vmem:[#allocation13 + $0x10] sm:$0xff] %vm1026, %v1248
    %1807 = vst.msk [vmem:[#allocation13 + $0x18] sm:$0xff] %vm1026, %v1250
    %1808 = vst.msk [vmem:[#allocation13 + $0x20] sm:$0xff] %vm1026, %v1252
    %1809 = vst.msk [vmem:[#allocation13 + $0x28] sm:$0xff] %vm1026, %v1254
    %1810 = vst.msk [vmem:[#allocation13 + $0x30] sm:$0xff] %vm1026, %v1256
    %1811 = vst.msk [vmem:[#allocation13 + $0x38] sm:$0xff] %vm1026, %v1258
    %1812 = vst.msk [vmem:[#allocation13 + $0x40] sm:$0xff] %vm1026, %v1260
    %1813 = vst.msk [vmem:[#allocation13 + $0x48] sm:$0xff] %vm1026, %v1262
    %1814 = vst.msk [vmem:[#allocation13 + $0x50] sm:$0xff] %vm1026, %v1264
    %1815 = vst.msk [vmem:[#allocation13 + $0x58] sm:$0xff] %vm1026, %v1266
    %1819 = vrot.lane.b32.xlu0 %v1419, 8
    %v1820 = vpop.permute.xlu0 %1819
    %1821 = vrot.lane.b32.xlu0 %v1422, 8
    %v1822 = vpop.permute.xlu0 %1821
    %1823 = vrot.lane.b32.xlu0 %v1427, 8
    %v1824 = vpop.permute.xlu0 %1823
    %1831 = vrot.lane.b32.xlu0 %v1481, 16
    %v1832 = vpop.permute.xlu0 %1831
    %1833 = vrot.lane.b32.xlu0 %v1484, 16
    %v1834 = vpop.permute.xlu0 %1833
    %1835 = vrot.lane.b32.xlu0 %v1489, 16
    %v1836 = vpop.permute.xlu0 %1835
    %1843 = vrot.lane.b32.xlu0 %v1543, 24
    %v1844 = vpop.permute.xlu0 %1843
    %1845 = vrot.lane.b32.xlu0 %v1546, 24
    %v1846 = vpop.permute.xlu0 %1845
    %1847 = vrot.lane.b32.xlu0 %v1551, 24
    %v1848 = vpop.permute.xlu0 %1847
    %v1852 = vsel %vm493, %v1357, %v1820
    %v1853 = vsel %vm493, %v1360, %v1822
    %v1854 = vsel %vm493, %v1365, %v1824
    %vm1855 = vcmask 130048
    %v1856 = vsel %vm1855, %v1852, %v1832
    %v1857 = vsel %vm1855, %v1853, %v1834
    %v1858 = vsel %vm1855, %v1854, %v1836
    %v1859 = vsel %vm1026, %v1856, %v1844
    %v1860 = vsel %vm1026, %v1857, %v1846
    %v1861 = vsel %vm1026, %v1858, %v1848
    %s1862 = scalar_lea.vmem [#allocation13], 192
    %1863 = vst.msk [vmem:[%s1862] sm:$0xff] %vm1026, %v1268
    %1864 = vst.msk [vmem:[%s1862 + $0x8] sm:$0xff] %vm1026, %v1270
    %1865 = vst.msk [vmem:[%s1862 + $0x10] sm:$0xff] %vm1026, %v1272
    %1866 = vst.msk [vmem:[%s1862 + $0x18] sm:$0xff] %vm1026, %v1274
    %1867 = vst.msk [vmem:[%s1862 + $0x20] sm:$0xff] %vm1026, %v1276
    %1868 = vst.msk [vmem:[%s1862 + $0x28] sm:$0xff] %vm1026, %v1278
    %1869 = vst.msk [vmem:[%s1862 + $0x30] sm:$0xff] %vm1026, %v1280
    %1870 = vst.msk [vmem:[%s1862 + $0x38] sm:$0xff] %vm1026, %v1282
    %1871 = vst.msk [vmem:[%s1862 + $0x40] sm:$0xff] %vm1026, %v1284
    %1872 = vst.msk [vmem:[%s1862 + $0x48] sm:$0xff] %vm1026, %v1286
    %1873 = vst.msk [vmem:[%s1862 + $0x50] sm:$0xff] %vm1026, %v1288
    %1874 = vst.msk [vmem:[%s1862 + $0x58] sm:$0xff] %vm1026, %v1290
    %1878 = vrot.lane.b32.xlu0 %v1667, 8
    %v1879 = vpop.permute.xlu0 %1878
    %1880 = vrot.lane.b32.xlu0 %v1670, 8
    %v1881 = vpop.permute.xlu0 %1880
    %1882 = vrot.lane.b32.xlu0 %v1675, 8
    %v1883 = vpop.permute.xlu0 %1882
    %1890 = vrot.lane.b32.xlu0 %v1729, 16
    %v1891 = vpop.permute.xlu0 %1890
    %1892 = vrot.lane.b32.xlu0 %v1732, 16
    %v1893 = vpop.permute.xlu0 %1892
    %1894 = vrot.lane.b32.xlu0 %v1737, 16
    %v1895 = vpop.permute.xlu0 %1894
    %1902 = vrot.lane.b32.xlu0 %v1791, 24
    %v1903 = vpop.permute.xlu0 %1902
    %1904 = vrot.lane.b32.xlu0 %v1794, 24
    %v1905 = vpop.permute.xlu0 %1904
    %1906 = vrot.lane.b32.xlu0 %v1799, 24
    %v1907 = vpop.permute.xlu0 %1906
    %v1911 = vsel %vm493, %v1605, %v1879
    %v1912 = vsel %vm493, %v1608, %v1881
    %v1913 = vsel %vm493, %v1613, %v1883
    %v1914 = vsel %vm1855, %v1911, %v1891
    %v1915 = vsel %vm1855, %v1912, %v1893
    %v1916 = vsel %vm1855, %v1913, %v1895
    %v1917 = vsel %vm1026, %v1914, %v1903
    %v1918 = vsel %vm1026, %v1915, %v1905
    %v1919 = vsel %vm1026, %v1916, %v1907
    %v1920 = vpack.c.bf16 %v1860, %v1859
    %v1921 = vpack.c.bf16 %v1917, %v1861
    %v1922 = vpack.c.bf16 %v1919, %v1918
    %v1923 = vld [vmem:[%s9] sm:$0xf]
    %v1924 = vld [vmem:[%s9 + $0x4] sm:$0xf]
    %v1925 = vld [vmem:[%s9 + $0x8] sm:$0xf]
    %v1926 = vld [vmem:[%s9 + $0xc] sm:$0xf]
    %v1927 = vld [vmem:[%s10] sm:$0x1]
    %v1929 = vlaneseq
    %v1930 = vshrl.u32 %v1929, 7
    %v1931 = vsub.s32 0, %v1930
    %v1932 = vrot.slane %v1927, %v1931
    %v1938 = vunpack.c.l.b16 %v1923
    %v1939 = vunpack.c.l.b16 %v1924
    %v1940 = vunpack.c.l.b16 %v1925
    %v1941 = vunpack.c.l.b16 %v1926
    %v1942 = vpack.c.b16 %v1939, %v1938
    %v1943 = vpack.c.b16 %v1941, %v1940
    %v1947 = vsel %vm259, %v1920, 0
    %v1950 = vsel %vm259, %v1921, 0
    %v1953 = vsel %vm259, %v1922, 0
    %1955 = vmatprep.subr.bf16.mxu0 0
    %1956 = vmatpush1.bf16.msra.mxu0 0
    %1957 = vmatprep.subr.bf16.mxu0 0
    %1958 = vmatpush1.bf16.msra.mxu0 0
    %1959 = vmatprep.subr.bf16.mxu0 0
    %1960 = vmatpush1.bf16.msra.mxu0 0
    %1961 = vmatprep.subr.bf16.mxu0 0
    %1962 = vmatpush1.bf16.msra.mxu0 0
    %1963 = vmatprep.subr.bf16.mxu0 0
    %1964 = vmatpush1.bf16.msra.mxu0 0
    %1965 = vmatprep.subr.bf16.mxu0 0
    %1966 = vmatpush1.bf16.msra.mxu0 0
    %1967 = vmatprep.subr.bf16.mxu0 0
    %1968 = vmatpush1.bf16.msra.mxu0 %v1943
    %1969 = vmatprep.subr.bf16.mxu0 0
    %1970 = vmatpush1.bf16.msra.mxu0 %v1942
    %1971 = vmatprep.subr.bf16.mxu0 0
    %1972 = vmatpush2.bf16.msra.mxu0 0
    %1973 = vmatprep.subr.bf16.mxu0 0
    %1974 = vmatpush2.bf16.msra.mxu0 0
    %1975 = vmatprep.subr.bf16.mxu0 0
    %1976 = vmatpush2.bf16.msra.mxu0 0
    %1977 = vmatprep.subr.bf16.mxu0 0
    %1978 = vmatpush2.bf16.msra.mxu0 0
    %1979 = vmatprep.subr.bf16.mxu0 0
    %1980 = vmatpush2.bf16.msra.mxu0 0
    %1981 = vmatprep.subr.bf16.mxu0 0
    %1982 = vmatpush2.bf16.msra.mxu0 0
    %1983 = vmatprep.subr.bf16.mxu0 0
    %1984 = vmatpush2.bf16.msra.mxu0 0
    %1985 = vmatprep.subr.bf16.mxu0 0
    %1986 = vmatpush2.bf16.msra.mxu0 0
    %1987 = vmatprep.mubr.bf16.mxu0 0
    %1988 = vmatmul.mubr.bf16.gmra.mxu0 %v1947
    %v1989 = vpop.f32.mrf.mxu0
    %v1990 = vadd.f32 %v1932, %v1989
    %v1991 = vpop.f32.mrf.mxu0
    %v1992 = vpop.f32.mrf.mxu0
    %v1993 = vadd.f32 %v1932, %v1992
    %v1994 = vpop.f32.mrf.mxu0
    %1995 = vmatprep.mubr.bf16.mxu0 0
    %1996 = vmatmul.mubr.bf16.gmra.mxu0 %v1950
    %v1997 = vpop.f32.mrf.mxu0
    %v1998 = vadd.f32 %v1932, %v1997
    %v1999 = vpop.f32.mrf.mxu0
    %v2000 = vpop.f32.mrf.mxu0
    %v2001 = vadd.f32 %v1932, %v2000
    %v2002 = vpop.f32.mrf.mxu0
    %2003 = vmatprep.mubr.bf16.mxu0 0
    %2004 = vmatmul.mubr.bf16.gmra.mxu0 %v1953
    %v2005 = vpop.f32.mrf.mxu0
    %v2006 = vadd.f32 %v1932, %v2005
    %v2007 = vpop.f32.mrf.mxu0
    %v2008 = vpop.f32.mrf.mxu0
    %v2009 = vadd.f32 %v1932, %v2008
    %v2010 = vpop.f32.mrf.mxu0
    %2011 = vdwg.mxu0
    %v2012 = vadd.f32 %v251, %v1990
    %v2013 = vadd.f32 %v252, %v1993
    %v2014 = vadd.f32 %v255, %v1998
    %v2015 = vadd.f32 %v253, %v2001
    %v2016 = vadd.f32 %v254, %v2006
    %v2017 = vadd.f32 %v256, %v2009
    %v2018 = vld [vmem:[%s11] sm:$0x1]
    %v2019 = vld [vmem:[#allocation11] sm:$0x1]
    %v2020 = vsel %vm259, %v2012, 0.0
    %2021 = vadd.xlane.f32.xlu0 %v2020
    %v2022 = vpop.xlane.xlu0 %2021
    %v2023 = vsel %vm259, %v2013, 0.0
    %2024 = vadd.xlane.f32.xlu0 %v2023
    %v2025 = vpop.xlane.xlu0 %2024
    %v2026 = vsel %vm259, %v2014, 0.0
    %2027 = vadd.xlane.f32.xlu0 %v2026
    %v2028 = vpop.xlane.xlu0 %2027
    %v2029 = vsel %vm259, %v2015, 0.0
    %2030 = vadd.xlane.f32.xlu0 %v2029
    %v2031 = vpop.xlane.xlu0 %2030
    %v2032 = vsel %vm259, %v2016, 0.0
    %2033 = vadd.xlane.f32.xlu0 %v2032
    %v2034 = vpop.xlane.xlu0 %2033
    %v2035 = vsel %vm259, %v2017, 0.0
    %2036 = vadd.xlane.f32.xlu0 %v2035
    %v2037 = vpop.xlane.xlu0 %2036
    %v2038 = vmul.f32 %v2022, %v278
    %v2039 = vmul.f32 %v2025, %v278
    %v2040 = vmul.f32 %v2028, %v278
    %v2041 = vmul.f32 %v2031, %v278
    %v2042 = vmul.f32 %v2034, %v278
    %v2043 = vmul.f32 %v2037, %v278
    %v2044 = vsub.f32 %v2012, %v2038
    %v2045 = vsub.f32 %v2013, %v2039
    %v2046 = vsub.f32 %v2014, %v2040
    %v2047 = vsub.f32 %v2015, %v2041
    %v2048 = vsub.f32 %v2016, %v2042
    %v2049 = vsub.f32 %v2017, %v2043
    %v2050 = vmul.f32 %v2044, %v2044
    %v2051 = vmul.f32 %v2045, %v2045
    %v2052 = vmul.f32 %v2046, %v2046
    %v2053 = vmul.f32 %v2047, %v2047
    %v2054 = vmul.f32 %v2048, %v2048
    %v2055 = vmul.f32 %v2049, %v2049
    %v2056 = vsel %vm259, %v2050, 0.0
    %2057 = vadd.xlane.f32.xlu0 %v2056
    %v2058 = vpop.xlane.xlu0 %2057
    %v2059 = vsel %vm259, %v2051, 0.0
    %2060 = vadd.xlane.f32.xlu0 %v2059
    %v2061 = vpop.xlane.xlu0 %2060
    %v2062 = vsel %vm259, %v2052, 0.0
    %2063 = vadd.xlane.f32.xlu0 %v2062
    %v2064 = vpop.xlane.xlu0 %2063
    %v2065 = vsel %vm259, %v2053, 0.0
    %2066 = vadd.xlane.f32.xlu0 %v2065
    %v2067 = vpop.xlane.xlu0 %2066
    %v2068 = vsel %vm259, %v2054, 0.0
    %2069 = vadd.xlane.f32.xlu0 %v2068
    %v2070 = vpop.xlane.xlu0 %2069
    %v2071 = vsel %vm259, %v2055, 0.0
    %2072 = vadd.xlane.f32.xlu0 %v2071
    %v2073 = vpop.xlane.xlu0 %2072
    %v2074 = vmul.f32 %v2058, %v278
    %v2075 = vmul.f32 %v2061, %v278
    %v2076 = vmul.f32 %v2064, %v278
    %v2077 = vmul.f32 %v2067, %v278
    %v2078 = vmul.f32 %v2070, %v278
    %v2079 = vmul.f32 %v2073, %v278
    %v2080 = vadd.f32 %v2074, 1e-06
    %v2081 = vadd.f32 %v2075, 1e-06
    %v2082 = vadd.f32 %v2076, 1e-06
    %v2083 = vadd.f32 %v2077, 1e-06
    %v2084 = vadd.f32 %v2078, 1e-06
    %v2085 = vadd.f32 %v2079, 1e-06
    %v2086 = vrsqrt.pop %v2080
    %v2087 = vrsqrt.pop %v2081
    %v2088 = vrsqrt.pop %v2082
    %v2089 = vrsqrt.pop %v2083
    %v2090 = vrsqrt.pop %v2084
    %v2091 = vrsqrt.pop %v2085
    %v2092 = vmul.f32 %v2044, %v2086
    %v2093 = vmul.f32 %v2045, %v2087
    %v2094 = vmul.f32 %v2046, %v2088
    %v2095 = vmul.f32 %v2047, %v2089
    %v2096 = vmul.f32 %v2048, %v2090
    %v2097 = vmul.f32 %v2049, %v2091
    %v2099 = vlaneseq
    %v2100 = vshrl.u32 %v2099, 7
    %v2101 = vsub.s32 0, %v2100
    %v2102 = vrot.slane %v2018, %v2101
    %v2104 = vmul.f32 %v2092, %v2102
    %v2105 = vmul.f32 %v2093, %v2102
    %v2106 = vmul.f32 %v2094, %v2102
    %v2107 = vmul.f32 %v2095, %v2102
    %v2108 = vmul.f32 %v2096, %v2102
    %v2109 = vmul.f32 %v2097, %v2102
    %v2111 = vlaneseq
    %v2112 = vshrl.u32 %v2111, 7
    %v2113 = vsub.s32 0, %v2112
    %v2114 = vrot.slane %v2019, %v2113
    %v2116 = vadd.f32 %v2104, %v2114
    %v2117 = vadd.f32 %v2105, %v2114
    %v2118 = vadd.f32 %v2106, %v2114
    %v2119 = vadd.f32 %v2107, %v2114
    %v2120 = vadd.f32 %v2108, %v2114
    %v2121 = vadd.f32 %v2109, %v2114
    %v2122 = vpack.c.bf16 %v2117, %v2116
    %v2123 = vpack.c.bf16 %v2119, %v2118
    %v2124 = vpack.c.bf16 %v2121, %v2120
    %v2125 = vld [vmem:[%s13] sm:$0xf]
    %v2126 = vld [vmem:[%s13 + $0x4] sm:$0xf]
    %v2127 = vld [vmem:[%s13 + $0x8] sm:$0xf]
    %v2128 = vld [vmem:[%s13 + $0xc] sm:$0xf]
    %v2129 = vld [vmem:[%s14] sm:$0x1]
    %v2131 = vlaneseq
    %v2132 = vshrl.u32 %v2131, 7
    %v2133 = vsub.s32 0, %v2132
    %v2134 = vrot.slane %v2129, %v2133
    %v2140 = vunpack.c.l.b16 %v2125
    %v2141 = vunpack.c.l.b16 %v2126
    %v2142 = vunpack.c.l.b16 %v2127
    %v2143 = vunpack.c.l.b16 %v2128
    %v2144 = vpack.c.b16 %v2141, %v2140
    %v2145 = vpack.c.b16 %v2143, %v2142
    %v2149 = vsel %vm259, %v2122, 0
    %v2152 = vsel %vm259, %v2123, 0
    %v2155 = vsel %vm259, %v2124, 0
    %2157 = vmatprep.subr.bf16.mxu0 0
    %2158 = vmatpush1.bf16.msra.mxu0 0
    %2159 = vmatprep.subr.bf16.mxu0 0
    %2160 = vmatpush1.bf16.msra.mxu0 0
    %2161 = vmatprep.subr.bf16.mxu0 0
    %2162 = vmatpush1.bf16.msra.mxu0 0
    %2163 = vmatprep.subr.bf16.mxu0 0
    %2164 = vmatpush1.bf16.msra.mxu0 0
    %2165 = vmatprep.subr.bf16.mxu0 0
    %2166 = vmatpush1.bf16.msra.mxu0 0
    %2167 = vmatprep.subr.bf16.mxu0 0
    %2168 = vmatpush1.bf16.msra.mxu0 0
    %2169 = vmatprep.subr.bf16.mxu0 0
    %2170 = vmatpush1.bf16.msra.mxu0 %v2145
    %2171 = vmatprep.subr.bf16.mxu0 0
    %2172 = vmatpush1.bf16.msra.mxu0 %v2144
    %2173 = vmatprep.subr.bf16.mxu0 0
    %2174 = vmatpush2.bf16.msra.mxu0 0
    %2175 = vmatprep.subr.bf16.mxu0 0
    %2176 = vmatpush2.bf16.msra.mxu0 0
    %2177 = vmatprep.subr.bf16.mxu0 0
    %2178 = vmatpush2.bf16.msra.mxu0 0
    %2179 = vmatprep.subr.bf16.mxu0 0
    %2180 = vmatpush2.bf16.msra.mxu0 0
    %2181 = vmatprep.subr.bf16.mxu0 0
    %2182 = vmatpush2.bf16.msra.mxu0 0
    %2183 = vmatprep.subr.bf16.mxu0 0
    %2184 = vmatpush2.bf16.msra.mxu0 0
    %2185 = vmatprep.subr.bf16.mxu0 0
    %2186 = vmatpush2.bf16.msra.mxu0 0
    %2187 = vmatprep.subr.bf16.mxu0 0
    %2188 = vmatpush2.bf16.msra.mxu0 0
    %2189 = vmatprep.mubr.bf16.mxu0 0
    %2190 = vmatmul.mubr.bf16.gmra.mxu0 %v2149
    %v2191 = vpop.f32.mrf.mxu0
    %v2192 = vadd.f32 %v2134, %v2191
    %v2193 = vpop.f32.mrf.mxu0
    %v2194 = vpop.f32.mrf.mxu0
    %v2195 = vadd.f32 %v2134, %v2194
    %v2196 = vpop.f32.mrf.mxu0
    %2197 = vmatprep.mubr.bf16.mxu0 0
    %2198 = vmatmul.mubr.bf16.gmra.mxu0 %v2152
    %v2199 = vpop.f32.mrf.mxu0
    %v2200 = vadd.f32 %v2134, %v2199
    %v2201 = vpop.f32.mrf.mxu0
    %v2202 = vpop.f32.mrf.mxu0
    %v2203 = vadd.f32 %v2134, %v2202
    %v2204 = vpop.f32.mrf.mxu0
    %2205 = vmatprep.mubr.bf16.mxu0 0
    %2206 = vmatmul.mubr.bf16.gmra.mxu0 %v2155
    %v2207 = vpop.f32.mrf.mxu0
    %v2208 = vadd.f32 %v2134, %v2207
    %v2209 = vpop.f32.mrf.mxu0
    %v2210 = vpop.f32.mrf.mxu0
    %v2211 = vadd.f32 %v2134, %v2210
    %v2212 = vpop.f32.mrf.mxu0
    %2213 = vdwg.mxu0
    %v2214 = vmul.f32 %v2192, 0.5
    %v2215 = vmul.f32 %v2195, 0.5
    %v2216 = vmul.f32 %v2200, 0.5
    %v2217 = vmul.f32 %v2203, 0.5
    %v2218 = vmul.f32 %v2208, 0.5
    %v2219 = vmul.f32 %v2211, 0.5
    %v2220 = vmul.f32 %v2192, 0.70710677
    %v2221 = vmul.f32 %v2195, 0.70710677
    %v2222 = vmul.f32 %v2200, 0.70710677
    %v2223 = vmul.f32 %v2203, 0.70710677
    %v2224 = vmul.f32 %v2208, 0.70710677
    %v2225 = vmul.f32 %v2211, 0.70710677
    %v2226 = vand.u32 2147483647, %v2220
    %v2227 = vand.u32 2147483647, %v2221
    %v2228 = vand.u32 2147483647, %v2222
    %v2229 = vand.u32 2147483647, %v2223
    %v2230 = vand.u32 2147483647, %v2224
    %v2231 = vand.u32 2147483647, %v2225
    %v2232 = vmul.f32 %v2226, 0.3275911
    %v2233 = vmul.f32 %v2227, 0.3275911
    %v2234 = vmul.f32 %v2228, 0.3275911
    %v2235 = vmul.f32 %v2229, 0.3275911
    %v2236 = vmul.f32 %v2230, 0.3275911
    %v2237 = vmul.f32 %v2231, 0.3275911
    %v2238 = vadd.f32 %v2232, 1.0
    %v2239 = vadd.f32 %v2233, 1.0
    %v2240 = vadd.f32 %v2234, 1.0
    %v2241 = vadd.f32 %v2235, 1.0
    %v2242 = vadd.f32 %v2236, 1.0
    %v2243 = vadd.f32 %v2237, 1.0
    %v2244 = vrcp.pop %v2238
    %v2245 = vrcp.pop %v2239
    %v2246 = vrcp.pop %v2240
    %v2247 = vrcp.pop %v2241
    %v2248 = vrcp.pop %v2242
    %v2249 = vrcp.pop %v2243
    %v2250 = vmul.f32 %v2244, 1.0614054
    %v2251 = vmul.f32 %v2245, 1.0614054
    %v2252 = vmul.f32 %v2246, 1.0614054
    %v2253 = vmul.f32 %v2247, 1.0614054
    %v2254 = vmul.f32 %v2248, 1.0614054
    %v2255 = vmul.f32 %v2249, 1.0614054
    %v2256 = vadd.f32 %v2250, -1.4531521
    %v2257 = vadd.f32 %v2251, -1.4531521
    %v2258 = vadd.f32 %v2252, -1.4531521
    %v2259 = vadd.f32 %v2253, -1.4531521
    %v2260 = vadd.f32 %v2254, -1.4531521
    %v2261 = vadd.f32 %v2255, -1.4531521
    %v2262 = vmul.f32 %v2244, %v2256
    %v2263 = vmul.f32 %v2245, %v2257
    %v2264 = vmul.f32 %v2246, %v2258
    %v2265 = vmul.f32 %v2247, %v2259
    %v2266 = vmul.f32 %v2248, %v2260
    %v2267 = vmul.f32 %v2249, %v2261
    %v2268 = vadd.f32 %v2262, 1.4214138
    %v2269 = vadd.f32 %v2263, 1.4214138
    %v2270 = vadd.f32 %v2264, 1.4214138
    %v2271 = vadd.f32 %v2265, 1.4214138
    %v2272 = vadd.f32 %v2266, 1.4214138
    %v2273 = vadd.f32 %v2267, 1.4214138
    %v2274 = vmul.f32 %v2244, %v2268
    %v2275 = vmul.f32 %v2245, %v2269
    %v2276 = vmul.f32 %v2246, %v2270
    %v2277 = vmul.f32 %v2247, %v2271
    %v2278 = vmul.f32 %v2248, %v2272
    %v2279 = vmul.f32 %v2249, %v2273
    %v2280 = vadd.f32 %v2274, -0.28449672
    %v2281 = vadd.f32 %v2275, -0.28449672
    %v2282 = vadd.f32 %v2276, -0.28449672
    %v2283 = vadd.f32 %v2277, -0.28449672
    %v2284 = vadd.f32 %v2278, -0.28449672
    %v2285 = vadd.f32 %v2279, -0.28449672
    %v2286 = vmul.f32 %v2244, %v2280
    %v2287 = vmul.f32 %v2245, %v2281
    %v2288 = vmul.f32 %v2246, %v2282
    %v2289 = vmul.f32 %v2247, %v2283
    %v2290 = vmul.f32 %v2248, %v2284
    %v2291 = vmul.f32 %v2249, %v2285
    %v2292 = vadd.f32 %v2286, 0.2548296
    %v2293 = vadd.f32 %v2287, 0.2548296
    %v2294 = vadd.f32 %v2288, 0.2548296
    %v2295 = vadd.f32 %v2289, 0.2548296
    %v2296 = vadd.f32 %v2290, 0.2548296
    %v2297 = vadd.f32 %v2291, 0.2548296
    %v2298 = vmul.f32 %v2244, %v2292
    %v2299 = vmul.f32 %v2245, %v2293
    %v2300 = vmul.f32 %v2246, %v2294
    %v2301 = vmul.f32 %v2247, %v2295
    %v2302 = vmul.f32 %v2248, %v2296
    %v2303 = vmul.f32 %v2249, %v2297
    %v2304 = vsub.f32 0.0, %v2226
    %v2305 = vsub.f32 0.0, %v2227
    %v2306 = vsub.f32 0.0, %v2228
    %v2307 = vsub.f32 0.0, %v2229
    %v2308 = vsub.f32 0.0, %v2230
    %v2309 = vsub.f32 0.0, %v2231
    %v2310 = vmul.f32 %v2304, %v2226
    %v2311 = vmul.f32 %v2305, %v2227
    %v2312 = vmul.f32 %v2306, %v2228
    %v2313 = vmul.f32 %v2307, %v2229
    %v2314 = vmul.f32 %v2308, %v2230
    %v2315 = vmul.f32 %v2309, %v2231
    %v2316 = vmul.f32 %v2310, 1.442695
    %v2317 = vpow.pop %v2316
    %v2318 = vmul.f32 %v2311, 1.442695
    %v2319 = vpow.pop %v2318
    %v2320 = vmul.f32 %v2312, 1.442695
    %v2321 = vpow.pop %v2320
    %v2322 = vmul.f32 %v2313, 1.442695
    %v2323 = vpow.pop %v2322
    %v2324 = vmul.f32 %v2314, 1.442695
    %v2325 = vpow.pop %v2324
    %v2326 = vmul.f32 %v2315, 1.442695
    %v2327 = vpow.pop %v2326
    %v2328 = vmul.f32 %v2298, %v2317
    %v2329 = vmul.f32 %v2299, %v2319
    %v2330 = vmul.f32 %v2300, %v2321
    %v2331 = vmul.f32 %v2301, %v2323
    %v2332 = vmul.f32 %v2302, %v2325
    %v2333 = vmul.f32 %v2303, %v2327
    %v2334 = vsub.f32 1.0, %v2328
    %v2335 = vsub.f32 1.0, %v2329
    %v2336 = vsub.f32 1.0, %v2330
    %v2337 = vsub.f32 1.0, %v2331
    %v2338 = vsub.f32 1.0, %v2332
    %v2339 = vsub.f32 1.0, %v2333
    %vm2340 = vcmp.ge.f32.partialorder %v2220, 0.0
    %vm2341 = vcmp.ge.f32.partialorder %v2221, 0.0
    %vm2342 = vcmp.ge.f32.partialorder %v2222, 0.0
    %vm2343 = vcmp.ge.f32.partialorder %v2223, 0.0
    %vm2344 = vcmp.ge.f32.partialorder %v2224, 0.0
    %vm2345 = vcmp.ge.f32.partialorder %v2225, 0.0
    %v2346 = vsub.f32 0.0, %v2334
    %v2347 = vsub.f32 0.0, %v2335
    %v2348 = vsub.f32 0.0, %v2336
    %v2349 = vsub.f32 0.0, %v2337
    %v2350 = vsub.f32 0.0, %v2338
    %v2351 = vsub.f32 0.0, %v2339
    %v2352 = vsel %vm2340, %v2334, %v2346
    %v2353 = vsel %vm2341, %v2335, %v2347
    %v2354 = vsel %vm2342, %v2336, %v2348
    %v2355 = vsel %vm2343, %v2337, %v2349
    %v2356 = vsel %vm2344, %v2338, %v2350
    %v2357 = vsel %vm2345, %v2339, %v2351
    %v2358 = vadd.f32 %v2352, 1.0
    %v2359 = vadd.f32 %v2353, 1.0
    %v2360 = vadd.f32 %v2354, 1.0
    %v2361 = vadd.f32 %v2355, 1.0
    %v2362 = vadd.f32 %v2356, 1.0
    %v2363 = vadd.f32 %v2357, 1.0
    %v2364 = vmul.f32 %v2214, %v2358
    %v2365 = vmul.f32 %v2215, %v2359
    %v2366 = vmul.f32 %v2216, %v2360
    %v2367 = vmul.f32 %v2217, %v2361
    %v2368 = vmul.f32 %v2218, %v2362
    %v2369 = vmul.f32 %v2219, %v2363
    %v2370 = vpack.c.bf16 %v2365, %v2364
    %v2371 = vpack.c.bf16 %v2367, %v2366
    %v2372 = vpack.c.bf16 %v2369, %v2368
    %v2373 = vld [vmem:[%s15] sm:$0xf]
    %v2374 = vld [vmem:[%s15 + $0x4] sm:$0xf]
    %v2375 = vld [vmem:[%s15 + $0x8] sm:$0xf]
    %v2376 = vld [vmem:[%s15 + $0xc] sm:$0xf]
    %v2377 = vld [vmem:[%s15 + $0x10] sm:$0xf]
    %v2378 = vld [vmem:[%s15 + $0x14] sm:$0xf]
    %v2379 = vld [vmem:[%s15 + $0x18] sm:$0xf]
    %v2380 = vld [vmem:[%s15 + $0x1c] sm:$0xf]
    %v2389 = vunpack.c.l.b16 %v2373
    %v2390 = vunpack.c.l.b16 %v2374
    %v2391 = vunpack.c.l.b16 %v2375
    %v2392 = vunpack.c.l.b16 %v2376
    %v2393 = vunpack.c.l.b16 %v2377
    %v2394 = vunpack.c.l.b16 %v2378
    %v2395 = vunpack.c.l.b16 %v2379
    %v2396 = vunpack.c.l.b16 %v2380
    %v2397 = vpack.c.b16 %v2390, %v2389
    %v2398 = vpack.c.b16 %v2392, %v2391
    %v2399 = vpack.c.b16 %v2394, %v2393
    %v2400 = vpack.c.b16 %v2396, %v2395
    %v2406 = vsel %vm191, %v2370, 0
    %v2409 = vsel %vm191, %v2371, 0
    %v2412 = vsel %vm191, %v2372, 0
    %2414 = vmatprep.subr.bf16.mxu0 0
    %2415 = vmatpush1.bf16.msra.mxu0 0
    %2416 = vmatprep.subr.bf16.mxu0 0
    %2417 = vmatpush1.bf16.msra.mxu0 0
    %2418 = vmatprep.subr.bf16.mxu0 0
    %2419 = vmatpush1.bf16.msra.mxu0 0
    %2420 = vmatprep.subr.bf16.mxu0 0
    %2421 = vmatpush1.bf16.msra.mxu0 0
    %2422 = vmatprep.subr.bf16.mxu0 0
    %2423 = vmatpush1.bf16.msra.mxu0 %v2400
    %2424 = vmatprep.subr.bf16.mxu0 0
    %2425 = vmatpush1.bf16.msra.mxu0 %v2399
    %2426 = vmatprep.subr.bf16.mxu0 0
    %2427 = vmatpush1.bf16.msra.mxu0 %v2398
    %2428 = vmatprep.subr.bf16.mxu0 0
    %2429 = vmatpush1.bf16.msra.mxu0 %v2397
    %2430 = vmatprep.subr.bf16.mxu0 0
    %2431 = vmatpush2.bf16.msra.mxu0 0
    %2432 = vmatprep.subr.bf16.mxu0 0
    %2433 = vmatpush2.bf16.msra.mxu0 0
    %2434 = vmatprep.subr.bf16.mxu0 0
    %2435 = vmatpush2.bf16.msra.mxu0 0
    %2436 = vmatprep.subr.bf16.mxu0 0
    %2437 = vmatpush2.bf16.msra.mxu0 0
    %2438 = vmatprep.subr.bf16.mxu0 0
    %2439 = vmatpush2.bf16.msra.mxu0 0
    %2440 = vmatprep.subr.bf16.mxu0 0
    %2441 = vmatpush2.bf16.msra.mxu0 0
    %2442 = vmatprep.subr.bf16.mxu0 0
    %2443 = vmatpush2.bf16.msra.mxu0 0
    %2444 = vmatprep.subr.bf16.mxu0 0
    %2445 = vmatpush2.bf16.msra.mxu0 0
    %2446 = vmatprep.mubr.bf16.mxu0 0
    %2447 = vmatmul.mubr.bf16.gmra.mxu0 %v2406
    %v2448 = vpop.f32.mrf.mxu0
    %v2449 = vadd.f32 0.0, %v2448
    %v2450 = vpop.f32.mrf.mxu0
    %v2451 = vpop.f32.mrf.mxu0
    %v2452 = vadd.f32 0.0, %v2451
    %v2453 = vpop.f32.mrf.mxu0
    %2454 = vmatprep.mubr.bf16.mxu0 0
    %2455 = vmatmul.mubr.bf16.gmra.mxu0 %v2409
    %v2456 = vpop.f32.mrf.mxu0
    %v2457 = vadd.f32 0.0, %v2456
    %v2458 = vpop.f32.mrf.mxu0
    %v2459 = vpop.f32.mrf.mxu0
    %v2460 = vadd.f32 0.0, %v2459
    %v2461 = vpop.f32.mrf.mxu0
    %2462 = vmatprep.mubr.bf16.mxu0 0
    %2463 = vmatmul.mubr.bf16.gmra.mxu0 %v2412
    %v2464 = vpop.f32.mrf.mxu0
    %v2465 = vadd.f32 0.0, %v2464
    %v2466 = vpop.f32.mrf.mxu0
    %v2467 = vpop.f32.mrf.mxu0
    %v2468 = vadd.f32 0.0, %v2467
    %v2469 = vpop.f32.mrf.mxu0
    %2470 = vdwg.mxu0
    %v2471 = vadd.f32 %v2012, %v2449
    %v2472 = vadd.f32 %v2013, %v2452
    %v2473 = vadd.f32 %v2014, %v2457
    %v2474 = vadd.f32 %v2015, %v2460
    %v2475 = vadd.f32 %v2016, %v2465
    %v2476 = vadd.f32 %v2017, %v2468
    %v2477 = vld [vmem:[%s16] sm:$0x1]
    %v2479 = vlaneseq
    %v2480 = vshrl.u32 %v2479, 7
    %v2481 = vsub.s32 0, %v2480
    %v2482 = vrot.slane %v2477, %v2481
    %v2484 = vadd.f32 %v2471, %v2482
    %v2485 = vadd.f32 %v2472, %v2482
    %v2486 = vadd.f32 %v2473, %v2482
    %v2487 = vadd.f32 %v2474, %v2482
    %v2488 = vadd.f32 %v2475, %v2482
    %v2489 = vadd.f32 %v2476, %v2482
    %s2490 = scalar_lea.vmem [#allocation7], 1
    %v2491 = vld [vmem:[%s2490] sm:$0x1]
    %s2492 = scalar_lea.vmem [#allocation8], 1
    %v2493 = vld [vmem:[%s2492] sm:$0x1]
    %v2494 = vsel %vm259, %v2484, 0.0
    %2495 = vadd.xlane.f32.xlu0 %v2494
    %v2496 = vpop.xlane.xlu0 %2495
    %v2497 = vsel %vm259, %v2485, 0.0
    %2498 = vadd.xlane.f32.xlu0 %v2497
    %v2499 = vpop.xlane.xlu0 %2498
    %v2500 = vsel %vm259, %v2486, 0.0
    %2501 = vadd.xlane.f32.xlu0 %v2500
    %v2502 = vpop.xlane.xlu0 %2501
    %v2503 = vsel %vm259, %v2487, 0.0
    %2504 = vadd.xlane.f32.xlu0 %v2503
    %v2505 = vpop.xlane.xlu0 %2504
    %v2506 = vsel %vm259, %v2488, 0.0
    %2507 = vadd.xlane.f32.xlu0 %v2506
    %v2508 = vpop.xlane.xlu0 %2507
    %v2509 = vsel %vm259, %v2489, 0.0
    %2510 = vadd.xlane.f32.xlu0 %v2509
    %v2511 = vpop.xlane.xlu0 %2510
    %v2512 = vmul.f32 %v2496, %v278
    %v2513 = vmul.f32 %v2499, %v278
    %v2514 = vmul.f32 %v2502, %v278
    %v2515 = vmul.f32 %v2505, %v278
    %v2516 = vmul.f32 %v2508, %v278
    %v2517 = vmul.f32 %v2511, %v278
    %v2518 = vsub.f32 %v2484, %v2512
    %v2519 = vsub.f32 %v2485, %v2513
    %v2520 = vsub.f32 %v2486, %v2514
    %v2521 = vsub.f32 %v2487, %v2515
    %v2522 = vsub.f32 %v2488, %v2516
    %v2523 = vsub.f32 %v2489, %v2517
    %v2524 = vmul.f32 %v2518, %v2518
    %v2525 = vmul.f32 %v2519, %v2519
    %v2526 = vmul.f32 %v2520, %v2520
    %v2527 = vmul.f32 %v2521, %v2521
    %v2528 = vmul.f32 %v2522, %v2522
    %v2529 = vmul.f32 %v2523, %v2523
    %v2530 = vsel %vm259, %v2524, 0.0
    %2531 = vadd.xlane.f32.xlu0 %v2530
    %v2532 = vpop.xlane.xlu0 %2531
    %v2533 = vsel %vm259, %v2525, 0.0
    %2534 = vadd.xlane.f32.xlu0 %v2533
    %v2535 = vpop.xlane.xlu0 %2534
    %v2536 = vsel %vm259, %v2526, 0.0
    %2537 = vadd.xlane.f32.xlu0 %v2536
    %v2538 = vpop.xlane.xlu0 %2537
    %v2539 = vsel %vm259, %v2527, 0.0
    %2540 = vadd.xlane.f32.xlu0 %v2539
    %v2541 = vpop.xlane.xlu0 %2540
    %v2542 = vsel %vm259, %v2528, 0.0
    %2543 = vadd.xlane.f32.xlu0 %v2542
    %v2544 = vpop.xlane.xlu0 %2543
    %v2545 = vsel %vm259, %v2529, 0.0
    %2546 = vadd.xlane.f32.xlu0 %v2545
    %v2547 = vpop.xlane.xlu0 %2546
    %v2548 = vmul.f32 %v2532, %v278
    %v2549 = vmul.f32 %v2535, %v278
    %v2550 = vmul.f32 %v2538, %v278
    %v2551 = vmul.f32 %v2541, %v278
    %v2552 = vmul.f32 %v2544, %v278
    %v2553 = vmul.f32 %v2547, %v278
    %v2554 = vadd.f32 %v2548, 1e-06
    %v2555 = vadd.f32 %v2549, 1e-06
    %v2556 = vadd.f32 %v2550, 1e-06
    %v2557 = vadd.f32 %v2551, 1e-06
    %v2558 = vadd.f32 %v2552, 1e-06
    %v2559 = vadd.f32 %v2553, 1e-06
    %v2560 = vrsqrt.pop %v2554
    %v2561 = vrsqrt.pop %v2555
    %v2562 = vrsqrt.pop %v2556
    %v2563 = vrsqrt.pop %v2557
    %v2564 = vrsqrt.pop %v2558
    %v2565 = vrsqrt.pop %v2559
    %v2566 = vmul.f32 %v2518, %v2560
    %v2567 = vmul.f32 %v2519, %v2561
    %v2568 = vmul.f32 %v2520, %v2562
    %v2569 = vmul.f32 %v2521, %v2563
    %v2570 = vmul.f32 %v2522, %v2564
    %v2571 = vmul.f32 %v2523, %v2565
    %v2573 = vlaneseq
    %v2574 = vshrl.u32 %v2573, 7
    %v2575 = vsub.s32 0, %v2574
    %v2576 = vrot.slane %v2491, %v2575
    %v2578 = vmul.f32 %v2566, %v2576
    %v2579 = vmul.f32 %v2567, %v2576
    %v2580 = vmul.f32 %v2568, %v2576
    %v2581 = vmul.f32 %v2569, %v2576
    %v2582 = vmul.f32 %v2570, %v2576
    %v2583 = vmul.f32 %v2571, %v2576
    %v2585 = vlaneseq
    %v2586 = vshrl.u32 %v2585, 7
    %v2587 = vsub.s32 0, %v2586
    %v2588 = vrot.slane %v2493, %v2587
    %v2590 = vadd.f32 %v2578, %v2588
    %v2591 = vadd.f32 %v2579, %v2588
    %v2592 = vadd.f32 %v2580, %v2588
    %v2593 = vadd.f32 %v2581, %v2588
    %v2594 = vadd.f32 %v2582, %v2588
    %v2595 = vadd.f32 %v2583, %v2588
    %v2596 = vpack.c.bf16 %v2591, %v2590
    %v2597 = vpack.c.bf16 %v2593, %v2592
    %v2598 = vpack.c.bf16 %v2595, %v2594
    %s2599 = scalar_lea.vmem %s7, 16
    %v2600 = vld [vmem:[%s2599] sm:$0xf]
    %v2601 = vld [vmem:[%s2599 + $0x4] sm:$0xf]
    %v2602 = vld [vmem:[%s2599 + $0x8] sm:$0xf]
    %v2603 = vld [vmem:[%s2599 + $0xc] sm:$0xf]
    %s2604 = scalar_lea.vmem [#allocation10], 1
    %v2605 = vld [vmem:[%s2604] sm:$0x1]
    %v2607 = vlaneseq
    %v2608 = vshrl.u32 %v2607, 7
    %v2609 = vsub.s32 0, %v2608
    %v2610 = vrot.slane %v2605, %v2609
    %v2616 = vunpack.c.l.b16 %v2600
    %v2617 = vunpack.c.l.b16 %v2601
    %v2618 = vunpack.c.l.b16 %v2602
    %v2619 = vunpack.c.l.b16 %v2603
    %v2620 = vpack.c.b16 %v2617, %v2616
    %v2621 = vpack.c.b16 %v2619, %v2618
    %v2625 = vsel %vm259, %v2596, 0
    %v2628 = vsel %vm259, %v2597, 0
    %v2631 = vsel %vm259, %v2598, 0
    %2633 = vmatprep.subr.bf16.mxu0 0
    %2634 = vmatpush1.bf16.msra.mxu0 0
    %2635 = vmatprep.subr.bf16.mxu0 0
    %2636 = vmatpush1.bf16.msra.mxu0 0
    %2637 = vmatprep.subr.bf16.mxu0 0
    %2638 = vmatpush1.bf16.msra.mxu0 0
    %2639 = vmatprep.subr.bf16.mxu0 0
    %2640 = vmatpush1.bf16.msra.mxu0 0
    %2641 = vmatprep.subr.bf16.mxu0 0
    %2642 = vmatpush1.bf16.msra.mxu0 0
    %2643 = vmatprep.subr.bf16.mxu0 0
    %2644 = vmatpush1.bf16.msra.mxu0 0
    %2645 = vmatprep.subr.bf16.mxu0 0
    %2646 = vmatpush1.bf16.msra.mxu0 %v2621
    %2647 = vmatprep.subr.bf16.mxu0 0
    %2648 = vmatpush1.bf16.msra.mxu0 %v2620
    %2649 = vmatprep.subr.bf16.mxu0 0
    %2650 = vmatpush2.bf16.msra.mxu0 0
    %2651 = vmatprep.subr.bf16.mxu0 0
    %2652 = vmatpush2.bf16.msra.mxu0 0
    %2653 = vmatprep.subr.bf16.mxu0 0
    %2654 = vmatpush2.bf16.msra.mxu0 0
    %2655 = vmatprep.subr.bf16.mxu0 0
    %2656 = vmatpush2.bf16.msra.mxu0 0
    %2657 = vmatprep.subr.bf16.mxu0 0
    %2658 = vmatpush2.bf16.msra.mxu0 0
    %2659 = vmatprep.subr.bf16.mxu0 0
    %2660 = vmatpush2.bf16.msra.mxu0 0
    %2661 = vmatprep.subr.bf16.mxu0 0
    %2662 = vmatpush2.bf16.msra.mxu0 0
    %2663 = vmatprep.subr.bf16.mxu0 0
    %2664 = vmatpush2.bf16.msra.mxu0 0
    %2665 = vmatprep.mubr.bf16.mxu0 0
    %2666 = vmatmul.mubr.bf16.gmra.mxu0 %v2625
    %v2667 = vpop.f32.mrf.mxu0
    %v2668 = vadd.f32 %v2610, %v2667
    %v2669 = vpop.f32.mrf.mxu0
    %v2670 = vpop.f32.mrf.mxu0
    %v2671 = vadd.f32 %v2610, %v2670
    %v2672 = vpop.f32.mrf.mxu0
    %2673 = vmatprep.mubr.bf16.mxu0 0
    %2674 = vmatmul.mubr.bf16.gmra.mxu0 %v2628
    %v2675 = vpop.f32.mrf.mxu0
    %v2676 = vadd.f32 %v2610, %v2675
    %v2677 = vpop.f32.mrf.mxu0
    %v2678 = vpop.f32.mrf.mxu0
    %v2679 = vadd.f32 %v2610, %v2678
    %v2680 = vpop.f32.mrf.mxu0
    %2681 = vmatprep.mubr.bf16.mxu0 0
    %2682 = vmatmul.mubr.bf16.gmra.mxu0 %v2631
    %v2683 = vpop.f32.mrf.mxu0
    %v2684 = vadd.f32 %v2610, %v2683
    %v2685 = vpop.f32.mrf.mxu0
    %v2686 = vpop.f32.mrf.mxu0
    %v2687 = vadd.f32 %v2610, %v2686
    %v2688 = vpop.f32.mrf.mxu0
    %2689 = vdwg.mxu0
    %v2690 = vpack.c.bf16 %v2671, %v2668
    %v2691 = vpack.c.bf16 %v2679, %v2676
    %v2692 = vpack.c.bf16 %v2687, %v2684
    %2695 = vrot.lane.b32.xlu0 %v2690, 120
    %v2696 = vpop.permute.xlu0 %2695
    %2697 = vrot.lane.b32.xlu0 %v2691, 120
    %v2698 = vpop.permute.xlu0 %2697
    %2699 = vrot.lane.b32.xlu0 %v2690, 112
    %v2700 = vpop.permute.xlu0 %2699
    %2701 = vrot.lane.b32.xlu0 %v2691, 112
    %v2702 = vpop.permute.xlu0 %2701
    %2703 = vrot.lane.b32.xlu0 %v2690, 104
    %v2704 = vpop.permute.xlu0 %2703
    %2705 = vrot.lane.b32.xlu0 %v2691, 104
    %v2706 = vpop.permute.xlu0 %2705
    %v2708 = vrot.slane %v2691, 4
    %v2709 = vrot.slane %v2692, 4
    %v2710 = vsel %vm473, %v2708, %v2709
    %2711 = vrot.lane.b32.xlu0 %v2710, 120
    %v2712 = vpop.permute.xlu0 %2711
    %2713 = vrot.lane.b32.xlu0 %v2709, 120
    %v2714 = vpop.permute.xlu0 %2713
    %2715 = vrot.lane.b32.xlu0 %v2710, 112
    %v2716 = vpop.permute.xlu0 %2715
    %2717 = vrot.lane.b32.xlu0 %v2709, 112
    %v2718 = vpop.permute.xlu0 %2717
    %2719 = vrot.lane.b32.xlu0 %v2710, 104
    %v2720 = vpop.permute.xlu0 %2719
    %2721 = vrot.lane.b32.xlu0 %v2709, 104
    %v2722 = vpop.permute.xlu0 %2721
    %2723 = vrot.lane.b32.xlu0 %v2690, 96
    %v2724 = vpop.permute.xlu0 %2723
    %2725 = vrot.lane.b32.xlu0 %v2691, 96
    %v2726 = vpop.permute.xlu0 %2725
    %v2728 = vsel %vm493, %v2690, 0
    %v2731 = vsel %vm493, %v2691, 0
    %v2734 = vsel %vm493, %v2724, 0
    %v2737 = vsel %vm493, %v2726, 0
    %2739 = vmatprep.subr.bf16.mxu0 0
    %2740 = vmatpush1.bf16.xpose.msra.mxu0 0
    %2741 = vmatprep.subr.bf16.mxu0 0
    %2742 = vmatpush1.bf16.xpose.msra.mxu0 0
    %2743 = vmatprep.subr.bf16.mxu0 0
    %2744 = vmatpush1.bf16.xpose.msra.mxu0 0
    %2745 = vmatprep.subr.bf16.mxu0 0
    %2746 = vmatpush1.bf16.xpose.msra.mxu0 0
    %2747 = vmatprep.subr.bf16.mxu0 0
    %2748 = vmatpush1.bf16.xpose.msra.mxu0 0
    %2749 = vmatprep.subr.bf16.mxu0 0
    %2750 = vmatpush1.bf16.xpose.msra.mxu0 0
    %2751 = vmatprep.subr.bf16.mxu0 0
    %2752 = vmatpush1.bf16.xpose.msra.mxu0 %v2737
    %2753 = vmatprep.subr.bf16.mxu0 0
    %2754 = vmatpush1.bf16.xpose.msra.mxu0 %v2734
    %2755 = vmatprep.subr.bf16.mxu0 0
    %2756 = vmatpush2.bf16.xpose.msra.mxu0 0
    %2757 = vmatprep.subr.bf16.mxu0 0
    %2758 = vmatpush2.bf16.xpose.msra.mxu0 0
    %2759 = vmatprep.subr.bf16.mxu0 0
    %2760 = vmatpush2.bf16.xpose.msra.mxu0 0
    %2761 = vmatprep.subr.bf16.mxu0 0
    %2762 = vmatpush2.bf16.xpose.msra.mxu0 0
    %2763 = vmatprep.subr.bf16.mxu0 0
    %2764 = vmatpush2.bf16.xpose.msra.mxu0 0
    %2765 = vmatprep.subr.bf16.mxu0 0
    %2766 = vmatpush2.bf16.xpose.msra.mxu0 0
    %2767 = vmatprep.subr.bf16.mxu0 0
    %2768 = vmatpush2.bf16.xpose.msra.mxu0 0
    %2769 = vmatprep.subr.bf16.mxu0 0
    %2770 = vmatpush2.bf16.xpose.msra.mxu0 0
    %2771 = vmatprep.mubr.bf16.mxu0 0
    %2772 = vmatmul.mubr.bf16.gmra.mxu0 %v2728
    %v2773 = vpop.f32.mrf.mxu0
    %v2774 = vadd.f32 0.0, %v2773
    %v2775 = vpop.f32.mrf.mxu0
    %v2776 = vpop.f32.mrf.mxu0
    %v2777 = vadd.f32 0.0, %v2776
    %v2778 = vpop.f32.mrf.mxu0
    %2779 = vmatprep.mubr.bf16.mxu0 0
    %2780 = vmatmul.mubr.bf16.gmra.mxu0 %v2731
    %v2781 = vpop.f32.mrf.mxu0
    %v2782 = vadd.f32 0.0, %v2781
    %v2783 = vpop.f32.mrf.mxu0
    %v2784 = vpop.f32.mrf.mxu0
    %v2785 = vpop.f32.mrf.mxu0
    %2786 = vdwg.mxu0
    %2787 = vrot.lane.b32.xlu0 %v2696, 96
    %v2788 = vpop.permute.xlu0 %2787
    %2789 = vrot.lane.b32.xlu0 %v2698, 96
    %v2790 = vpop.permute.xlu0 %2789
    %v2792 = vsel %vm493, %v2696, 0
    %v2795 = vsel %vm493, %v2698, 0
    %v2798 = vsel %vm493, %v2788, 0
    %v2801 = vsel %vm493, %v2790, 0
    %2803 = vmatprep.subr.bf16.mxu0 0
    %2804 = vmatpush1.bf16.xpose.msra.mxu0 0
    %2805 = vmatprep.subr.bf16.mxu0 0
    %2806 = vmatpush1.bf16.xpose.msra.mxu0 0
    %2807 = vmatprep.subr.bf16.mxu0 0
    %2808 = vmatpush1.bf16.xpose.msra.mxu0 0
    %2809 = vmatprep.subr.bf16.mxu0 0
    %2810 = vmatpush1.bf16.xpose.msra.mxu0 0
    %2811 = vmatprep.subr.bf16.mxu0 0
    %2812 = vmatpush1.bf16.xpose.msra.mxu0 0
    %2813 = vmatprep.subr.bf16.mxu0 0
    %2814 = vmatpush1.bf16.xpose.msra.mxu0 0
    %2815 = vmatprep.subr.bf16.mxu0 0
    %2816 = vmatpush1.bf16.xpose.msra.mxu0 %v2801
    %2817 = vmatprep.subr.bf16.mxu0 0
    %2818 = vmatpush1.bf16.xpose.msra.mxu0 %v2798
    %2819 = vmatprep.subr.bf16.mxu0 0
    %2820 = vmatpush2.bf16.xpose.msra.mxu0 0
    %2821 = vmatprep.subr.bf16.mxu0 0
    %2822 = vmatpush2.bf16.xpose.msra.mxu0 0
    %2823 = vmatprep.subr.bf16.mxu0 0
    %2824 = vmatpush2.bf16.xpose.msra.mxu0 0
    %2825 = vmatprep.subr.bf16.mxu0 0
    %2826 = vmatpush2.bf16.xpose.msra.mxu0 0
    %2827 = vmatprep.subr.bf16.mxu0 0
    %2828 = vmatpush2.bf16.xpose.msra.mxu0 0
    %2829 = vmatprep.subr.bf16.mxu0 0
    %2830 = vmatpush2.bf16.xpose.msra.mxu0 0
    %2831 = vmatprep.subr.bf16.mxu0 0
    %2832 = vmatpush2.bf16.xpose.msra.mxu0 0
    %2833 = vmatprep.subr.bf16.mxu0 0
    %2834 = vmatpush2.bf16.xpose.msra.mxu0 0
    %2835 = vmatprep.mubr.bf16.mxu0 0
    %2836 = vmatmul.mubr.bf16.gmra.mxu0 %v2792
    %v2837 = vpop.f32.mrf.mxu0
    %v2838 = vadd.f32 0.0, %v2837
    %v2839 = vpop.f32.mrf.mxu0
    %v2840 = vpop.f32.mrf.mxu0
    %v2841 = vadd.f32 0.0, %v2840
    %v2842 = vpop.f32.mrf.mxu0
    %2843 = vmatprep.mubr.bf16.mxu0 0
    %2844 = vmatmul.mubr.bf16.gmra.mxu0 %v2795
    %v2845 = vpop.f32.mrf.mxu0
    %v2846 = vadd.f32 0.0, %v2845
    %v2847 = vpop.f32.mrf.mxu0
    %v2848 = vpop.f32.mrf.mxu0
    %v2849 = vpop.f32.mrf.mxu0
    %2850 = vdwg.mxu0
    %2851 = vrot.lane.b32.xlu0 %v2700, 96
    %v2852 = vpop.permute.xlu0 %2851
    %2853 = vrot.lane.b32.xlu0 %v2702, 96
    %v2854 = vpop.permute.xlu0 %2853
    %v2856 = vsel %vm493, %v2700, 0
    %v2859 = vsel %vm493, %v2702, 0
    %v2862 = vsel %vm493, %v2852, 0
    %v2865 = vsel %vm493, %v2854, 0
    %2867 = vmatprep.subr.bf16.mxu0 0
    %2868 = vmatpush1.bf16.xpose.msra.mxu0 0
    %2869 = vmatprep.subr.bf16.mxu0 0
    %2870 = vmatpush1.bf16.xpose.msra.mxu0 0
    %2871 = vmatprep.subr.bf16.mxu0 0
    %2872 = vmatpush1.bf16.xpose.msra.mxu0 0
    %2873 = vmatprep.subr.bf16.mxu0 0
    %2874 = vmatpush1.bf16.xpose.msra.mxu0 0
    %2875 = vmatprep.subr.bf16.mxu0 0
    %2876 = vmatpush1.bf16.xpose.msra.mxu0 0
    %2877 = vmatprep.subr.bf16.mxu0 0
    %2878 = vmatpush1.bf16.xpose.msra.mxu0 0
    %2879 = vmatprep.subr.bf16.mxu0 0
    %2880 = vmatpush1.bf16.xpose.msra.mxu0 %v2865
    %2881 = vmatprep.subr.bf16.mxu0 0
    %2882 = vmatpush1.bf16.xpose.msra.mxu0 %v2862
    %2883 = vmatprep.subr.bf16.mxu0 0
    %2884 = vmatpush2.bf16.xpose.msra.mxu0 0
    %2885 = vmatprep.subr.bf16.mxu0 0
    %2886 = vmatpush2.bf16.xpose.msra.mxu0 0
    %2887 = vmatprep.subr.bf16.mxu0 0
    %2888 = vmatpush2.bf16.xpose.msra.mxu0 0
    %2889 = vmatprep.subr.bf16.mxu0 0
    %2890 = vmatpush2.bf16.xpose.msra.mxu0 0
    %2891 = vmatprep.subr.bf16.mxu0 0
    %2892 = vmatpush2.bf16.xpose.msra.mxu0 0
    %2893 = vmatprep.subr.bf16.mxu0 0
    %2894 = vmatpush2.bf16.xpose.msra.mxu0 0
    %2895 = vmatprep.subr.bf16.mxu0 0
    %2896 = vmatpush2.bf16.xpose.msra.mxu0 0
    %2897 = vmatprep.subr.bf16.mxu0 0
    %2898 = vmatpush2.bf16.xpose.msra.mxu0 0
    %2899 = vmatprep.mubr.bf16.mxu0 0
    %2900 = vmatmul.mubr.bf16.gmra.mxu0 %v2856
    %v2901 = vpop.f32.mrf.mxu0
    %v2902 = vadd.f32 0.0, %v2901
    %v2903 = vpop.f32.mrf.mxu0
    %v2904 = vpop.f32.mrf.mxu0
    %v2905 = vadd.f32 0.0, %v2904
    %v2906 = vpop.f32.mrf.mxu0
    %2907 = vmatprep.mubr.bf16.mxu0 0
    %2908 = vmatmul.mubr.bf16.gmra.mxu0 %v2859
    %v2909 = vpop.f32.mrf.mxu0
    %v2910 = vadd.f32 0.0, %v2909
    %v2911 = vpop.f32.mrf.mxu0
    %v2912 = vpop.f32.mrf.mxu0
    %v2913 = vpop.f32.mrf.mxu0
    %2914 = vdwg.mxu0
    %2915 = vrot.lane.b32.xlu0 %v2704, 96
    %v2916 = vpop.permute.xlu0 %2915
    %2917 = vrot.lane.b32.xlu0 %v2706, 96
    %v2918 = vpop.permute.xlu0 %2917
    %v2920 = vsel %vm493, %v2704, 0
    %v2923 = vsel %vm493, %v2706, 0
    %v2926 = vsel %vm493, %v2916, 0
    %v2929 = vsel %vm493, %v2918, 0
    %2931 = vmatprep.subr.bf16.mxu0 0
    %2932 = vmatpush1.bf16.xpose.msra.mxu0 0
    %2933 = vmatprep.subr.bf16.mxu0 0
    %2934 = vmatpush1.bf16.xpose.msra.mxu0 0
    %2935 = vmatprep.subr.bf16.mxu0 0
    %2936 = vmatpush1.bf16.xpose.msra.mxu0 0
    %2937 = vmatprep.subr.bf16.mxu0 0
    %2938 = vmatpush1.bf16.xpose.msra.mxu0 0
    %2939 = vmatprep.subr.bf16.mxu0 0
    %2940 = vmatpush1.bf16.xpose.msra.mxu0 0
    %2941 = vmatprep.subr.bf16.mxu0 0
    %2942 = vmatpush1.bf16.xpose.msra.mxu0 0
    %2943 = vmatprep.subr.bf16.mxu0 0
    %2944 = vmatpush1.bf16.xpose.msra.mxu0 %v2929
    %2945 = vmatprep.subr.bf16.mxu0 0
    %2946 = vmatpush1.bf16.xpose.msra.mxu0 %v2926
    %2947 = vmatprep.subr.bf16.mxu0 0
    %2948 = vmatpush2.bf16.xpose.msra.mxu0 0
    %2949 = vmatprep.subr.bf16.mxu0 0
    %2950 = vmatpush2.bf16.xpose.msra.mxu0 0
    %2951 = vmatprep.subr.bf16.mxu0 0
    %2952 = vmatpush2.bf16.xpose.msra.mxu0 0
    %2953 = vmatprep.subr.bf16.mxu0 0
    %2954 = vmatpush2.bf16.xpose.msra.mxu0 0
    %2955 = vmatprep.subr.bf16.mxu0 0
    %2956 = vmatpush2.bf16.xpose.msra.mxu0 0
    %2957 = vmatprep.subr.bf16.mxu0 0
    %2958 = vmatpush2.bf16.xpose.msra.mxu0 0
    %2959 = vmatprep.subr.bf16.mxu0 0
    %2960 = vmatpush2.bf16.xpose.msra.mxu0 0
    %2961 = vmatprep.subr.bf16.mxu0 0
    %2962 = vmatpush2.bf16.xpose.msra.mxu0 0
    %2963 = vmatprep.mubr.bf16.mxu0 0
    %2964 = vmatmul.mubr.bf16.gmra.mxu0 %v2920
    %v2965 = vpop.f32.mrf.mxu0
    %v2966 = vadd.f32 0.0, %v2965
    %v2967 = vpop.f32.mrf.mxu0
    %v2968 = vpop.f32.mrf.mxu0
    %v2969 = vadd.f32 0.0, %v2968
    %v2970 = vpop.f32.mrf.mxu0
    %2971 = vmatprep.mubr.bf16.mxu0 0
    %2972 = vmatmul.mubr.bf16.gmra.mxu0 %v2923
    %v2973 = vpop.f32.mrf.mxu0
    %v2974 = vadd.f32 0.0, %v2973
    %v2975 = vpop.f32.mrf.mxu0
    %v2976 = vpop.f32.mrf.mxu0
    %v2977 = vpop.f32.mrf.mxu0
    %2978 = vdwg.mxu0
    %2979 = vrot.lane.b32.xlu0 %v2710, 96
    %v2980 = vpop.permute.xlu0 %2979
    %2981 = vrot.lane.b32.xlu0 %v2709, 96
    %v2982 = vpop.permute.xlu0 %2981
    %v2984 = vsel %vm493, %v2710, 0
    %v2987 = vsel %vm493, %v2709, 0
    %v2990 = vsel %vm493, %v2980, 0
    %v2993 = vsel %vm493, %v2982, 0
    %2995 = vmatprep.subr.bf16.mxu0 0
    %2996 = vmatpush1.bf16.xpose.msra.mxu0 0
    %2997 = vmatprep.subr.bf16.mxu0 0
    %2998 = vmatpush1.bf16.xpose.msra.mxu0 0
    %2999 = vmatprep.subr.bf16.mxu0 0
    %3000 = vmatpush1.bf16.xpose.msra.mxu0 0
    %3001 = vmatprep.subr.bf16.mxu0 0
    %3002 = vmatpush1.bf16.xpose.msra.mxu0 0
    %3003 = vmatprep.subr.bf16.mxu0 0
    %3004 = vmatpush1.bf16.xpose.msra.mxu0 0
    %3005 = vmatprep.subr.bf16.mxu0 0
    %3006 = vmatpush1.bf16.xpose.msra.mxu0 0
    %3007 = vmatprep.subr.bf16.mxu0 0
    %3008 = vmatpush1.bf16.xpose.msra.mxu0 %v2993
    %3009 = vmatprep.subr.bf16.mxu0 0
    %3010 = vmatpush1.bf16.xpose.msra.mxu0 %v2990
    %3011 = vmatprep.subr.bf16.mxu0 0
    %3012 = vmatpush2.bf16.xpose.msra.mxu0 0
    %3013 = vmatprep.subr.bf16.mxu0 0
    %3014 = vmatpush2.bf16.xpose.msra.mxu0 0
    %3015 = vmatprep.subr.bf16.mxu0 0
    %3016 = vmatpush2.bf16.xpose.msra.mxu0 0
    %3017 = vmatprep.subr.bf16.mxu0 0
    %3018 = vmatpush2.bf16.xpose.msra.mxu0 0
    %3019 = vmatprep.subr.bf16.mxu0 0
    %3020 = vmatpush2.bf16.xpose.msra.mxu0 0
    %3021 = vmatprep.subr.bf16.mxu0 0
    %3022 = vmatpush2.bf16.xpose.msra.mxu0 0
    %3023 = vmatprep.subr.bf16.mxu0 0
    %3024 = vmatpush2.bf16.xpose.msra.mxu0 0
    %3025 = vmatprep.subr.bf16.mxu0 0
    %3026 = vmatpush2.bf16.xpose.msra.mxu0 0
    %3027 = vmatprep.mubr.bf16.mxu0 0
    %3028 = vmatmul.mubr.bf16.gmra.mxu0 %v2984
    %v3029 = vpop.f32.mrf.mxu0
    %v3030 = vadd.f32 0.0, %v3029
    %v3031 = vpop.f32.mrf.mxu0
    %v3032 = vpop.f32.mrf.mxu0
    %v3033 = vadd.f32 0.0, %v3032
    %v3034 = vpop.f32.mrf.mxu0
    %3035 = vmatprep.mubr.bf16.mxu0 0
    %3036 = vmatmul.mubr.bf16.gmra.mxu0 %v2987
    %v3037 = vpop.f32.mrf.mxu0
    %v3038 = vadd.f32 0.0, %v3037
    %v3039 = vpop.f32.mrf.mxu0
    %v3040 = vpop.f32.mrf.mxu0
    %v3041 = vpop.f32.mrf.mxu0
    %3042 = vdwg.mxu0
    %3043 = vrot.lane.b32.xlu0 %v2712, 96
    %v3044 = vpop.permute.xlu0 %3043
    %3045 = vrot.lane.b32.xlu0 %v2714, 96
    %v3046 = vpop.permute.xlu0 %3045
    %v3048 = vsel %vm493, %v2712, 0
    %v3051 = vsel %vm493, %v2714, 0
    %v3054 = vsel %vm493, %v3044, 0
    %v3057 = vsel %vm493, %v3046, 0
    %3059 = vmatprep.subr.bf16.mxu0 0
    %3060 = vmatpush1.bf16.xpose.msra.mxu0 0
    %3061 = vmatprep.subr.bf16.mxu0 0
    %3062 = vmatpush1.bf16.xpose.msra.mxu0 0
    %3063 = vmatprep.subr.bf16.mxu0 0
    %3064 = vmatpush1.bf16.xpose.msra.mxu0 0
    %3065 = vmatprep.subr.bf16.mxu0 0
    %3066 = vmatpush1.bf16.xpose.msra.mxu0 0
    %3067 = vmatprep.subr.bf16.mxu0 0
    %3068 = vmatpush1.bf16.xpose.msra.mxu0 0
    %3069 = vmatprep.subr.bf16.mxu0 0
    %3070 = vmatpush1.bf16.xpose.msra.mxu0 0
    %3071 = vmatprep.subr.bf16.mxu0 0
    %3072 = vmatpush1.bf16.xpose.msra.mxu0 %v3057
    %3073 = vmatprep.subr.bf16.mxu0 0
    %3074 = vmatpush1.bf16.xpose.msra.mxu0 %v3054
    %3075 = vmatprep.subr.bf16.mxu0 0
    %3076 = vmatpush2.bf16.xpose.msra.mxu0 0
    %3077 = vmatprep.subr.bf16.mxu0 0
    %3078 = vmatpush2.bf16.xpose.msra.mxu0 0
    %3079 = vmatprep.subr.bf16.mxu0 0
    %3080 = vmatpush2.bf16.xpose.msra.mxu0 0
    %3081 = vmatprep.subr.bf16.mxu0 0
    %3082 = vmatpush2.bf16.xpose.msra.mxu0 0
    %3083 = vmatprep.subr.bf16.mxu0 0
    %3084 = vmatpush2.bf16.xpose.msra.mxu0 0
    %3085 = vmatprep.subr.bf16.mxu0 0
    %3086 = vmatpush2.bf16.xpose.msra.mxu0 0
    %3087 = vmatprep.subr.bf16.mxu0 0
    %3088 = vmatpush2.bf16.xpose.msra.mxu0 0
    %3089 = vmatprep.subr.bf16.mxu0 0
    %3090 = vmatpush2.bf16.xpose.msra.mxu0 0
    %3091 = vmatprep.mubr.bf16.mxu0 0
    %3092 = vmatmul.mubr.bf16.gmra.mxu0 %v3048
    %v3093 = vpop.f32.mrf.mxu0
    %v3094 = vadd.f32 0.0, %v3093
    %v3095 = vpop.f32.mrf.mxu0
    %v3096 = vpop.f32.mrf.mxu0
    %v3097 = vadd.f32 0.0, %v3096
    %v3098 = vpop.f32.mrf.mxu0
    %3099 = vmatprep.mubr.bf16.mxu0 0
    %3100 = vmatmul.mubr.bf16.gmra.mxu0 %v3051
    %v3101 = vpop.f32.mrf.mxu0
    %v3102 = vadd.f32 0.0, %v3101
    %v3103 = vpop.f32.mrf.mxu0
    %v3104 = vpop.f32.mrf.mxu0
    %v3105 = vpop.f32.mrf.mxu0
    %3106 = vdwg.mxu0
    %3107 = vrot.lane.b32.xlu0 %v2716, 96
    %v3108 = vpop.permute.xlu0 %3107
    %3109 = vrot.lane.b32.xlu0 %v2718, 96
    %v3110 = vpop.permute.xlu0 %3109
    %v3112 = vsel %vm493, %v2716, 0
    %v3115 = vsel %vm493, %v2718, 0
    %v3118 = vsel %vm493, %v3108, 0
    %v3121 = vsel %vm493, %v3110, 0
    %3123 = vmatprep.subr.bf16.mxu0 0
    %3124 = vmatpush1.bf16.xpose.msra.mxu0 0
    %3125 = vmatprep.subr.bf16.mxu0 0
    %3126 = vmatpush1.bf16.xpose.msra.mxu0 0
    %3127 = vmatprep.subr.bf16.mxu0 0
    %3128 = vmatpush1.bf16.xpose.msra.mxu0 0
    %3129 = vmatprep.subr.bf16.mxu0 0
    %3130 = vmatpush1.bf16.xpose.msra.mxu0 0
    %3131 = vmatprep.subr.bf16.mxu0 0
    %3132 = vmatpush1.bf16.xpose.msra.mxu0 0
    %3133 = vmatprep.subr.bf16.mxu0 0
    %3134 = vmatpush1.bf16.xpose.msra.mxu0 0
    %3135 = vmatprep.subr.bf16.mxu0 0
    %3136 = vmatpush1.bf16.xpose.msra.mxu0 %v3121
    %3137 = vmatprep.subr.bf16.mxu0 0
    %3138 = vmatpush1.bf16.xpose.msra.mxu0 %v3118
    %3139 = vmatprep.subr.bf16.mxu0 0
    %3140 = vmatpush2.bf16.xpose.msra.mxu0 0
    %3141 = vmatprep.subr.bf16.mxu0 0
    %3142 = vmatpush2.bf16.xpose.msra.mxu0 0
    %3143 = vmatprep.subr.bf16.mxu0 0
    %3144 = vmatpush2.bf16.xpose.msra.mxu0 0
    %3145 = vmatprep.subr.bf16.mxu0 0
    %3146 = vmatpush2.bf16.xpose.msra.mxu0 0
    %3147 = vmatprep.subr.bf16.mxu0 0
    %3148 = vmatpush2.bf16.xpose.msra.mxu0 0
    %3149 = vmatprep.subr.bf16.mxu0 0
    %3150 = vmatpush2.bf16.xpose.msra.mxu0 0
    %3151 = vmatprep.subr.bf16.mxu0 0
    %3152 = vmatpush2.bf16.xpose.msra.mxu0 0
    %3153 = vmatprep.subr.bf16.mxu0 0
    %3154 = vmatpush2.bf16.xpose.msra.mxu0 0
    %3155 = vmatprep.mubr.bf16.mxu0 0
    %3156 = vmatmul.mubr.bf16.gmra.mxu0 %v3112
    %v3157 = vpop.f32.mrf.mxu0
    %v3158 = vadd.f32 0.0, %v3157
    %v3159 = vpop.f32.mrf.mxu0
    %v3160 = vpop.f32.mrf.mxu0
    %v3161 = vadd.f32 0.0, %v3160
    %v3162 = vpop.f32.mrf.mxu0
    %3163 = vmatprep.mubr.bf16.mxu0 0
    %3164 = vmatmul.mubr.bf16.gmra.mxu0 %v3115
    %v3165 = vpop.f32.mrf.mxu0
    %v3166 = vadd.f32 0.0, %v3165
    %v3167 = vpop.f32.mrf.mxu0
    %v3168 = vpop.f32.mrf.mxu0
    %v3169 = vpop.f32.mrf.mxu0
    %3170 = vdwg.mxu0
    %3171 = vrot.lane.b32.xlu0 %v2720, 96
    %v3172 = vpop.permute.xlu0 %3171
    %3173 = vrot.lane.b32.xlu0 %v2722, 96
    %v3174 = vpop.permute.xlu0 %3173
    %v3176 = vsel %vm493, %v2720, 0
    %v3179 = vsel %vm493, %v2722, 0
    %v3182 = vsel %vm493, %v3172, 0
    %v3185 = vsel %vm493, %v3174, 0
    %3187 = vmatprep.subr.bf16.mxu0 0
    %3188 = vmatpush1.bf16.xpose.msra.mxu0 0
    %3189 = vmatprep.subr.bf16.mxu0 0
    %3190 = vmatpush1.bf16.xpose.msra.mxu0 0
    %3191 = vmatprep.subr.bf16.mxu0 0
    %3192 = vmatpush1.bf16.xpose.msra.mxu0 0
    %3193 = vmatprep.subr.bf16.mxu0 0
    %3194 = vmatpush1.bf16.xpose.msra.mxu0 0
    %3195 = vmatprep.subr.bf16.mxu0 0
    %3196 = vmatpush1.bf16.xpose.msra.mxu0 0
    %3197 = vmatprep.subr.bf16.mxu0 0
    %3198 = vmatpush1.bf16.xpose.msra.mxu0 0
    %3199 = vmatprep.subr.bf16.mxu0 0
    %3200 = vmatpush1.bf16.xpose.msra.mxu0 %v3185
    %3201 = vmatprep.subr.bf16.mxu0 0
    %3202 = vmatpush1.bf16.xpose.msra.mxu0 %v3182
    %3203 = vmatprep.subr.bf16.mxu0 0
    %3204 = vmatpush2.bf16.xpose.msra.mxu0 0
    %3205 = vmatprep.subr.bf16.mxu0 0
    %3206 = vmatpush2.bf16.xpose.msra.mxu0 0
    %3207 = vmatprep.subr.bf16.mxu0 0
    %3208 = vmatpush2.bf16.xpose.msra.mxu0 0
    %3209 = vmatprep.subr.bf16.mxu0 0
    %3210 = vmatpush2.bf16.xpose.msra.mxu0 0
    %3211 = vmatprep.subr.bf16.mxu0 0
    %3212 = vmatpush2.bf16.xpose.msra.mxu0 0
    %3213 = vmatprep.subr.bf16.mxu0 0
    %3214 = vmatpush2.bf16.xpose.msra.mxu0 0
    %3215 = vmatprep.subr.bf16.mxu0 0
    %3216 = vmatpush2.bf16.xpose.msra.mxu0 0
    %3217 = vmatprep.subr.bf16.mxu0 0
    %3218 = vmatpush2.bf16.xpose.msra.mxu0 0
    %3219 = vmatprep.mubr.bf16.mxu0 0
    %3220 = vmatmul.mubr.bf16.gmra.mxu0 %v3176
    %v3221 = vpop.f32.mrf.mxu0
    %v3222 = vadd.f32 0.0, %v3221
    %v3223 = vpop.f32.mrf.mxu0
    %v3224 = vpop.f32.mrf.mxu0
    %v3225 = vadd.f32 0.0, %v3224
    %v3226 = vpop.f32.mrf.mxu0
    %3227 = vmatprep.mubr.bf16.mxu0 0
    %3228 = vmatmul.mubr.bf16.gmra.mxu0 %v3179
    %v3229 = vpop.f32.mrf.mxu0
    %v3230 = vadd.f32 0.0, %v3229
    %v3231 = vpop.f32.mrf.mxu0
    %v3232 = vpop.f32.mrf.mxu0
    %v3233 = vpop.f32.mrf.mxu0
    %3234 = vdwg.mxu0
    %v3235 = vmul.f32 %v2774, 0.35355338
    %v3236 = vmul.f32 %v2777, 0.35355338
    %v3237 = vmul.f32 %v2782, 0.35355338
    %v3238 = vmul.f32 %v2838, 0.35355338
    %v3239 = vmul.f32 %v2841, 0.35355338
    %v3240 = vmul.f32 %v2846, 0.35355338
    %v3241 = vmul.f32 %v2902, 0.35355338
    %v3242 = vmul.f32 %v2905, 0.35355338
    %v3243 = vmul.f32 %v2910, 0.35355338
    %v3244 = vmul.f32 %v2966, 0.35355338
    %v3245 = vmul.f32 %v2969, 0.35355338
    %v3246 = vmul.f32 %v2974, 0.35355338
    %v3247 = vmul.f32 %v3030, 0.35355338
    %v3248 = vmul.f32 %v3033, 0.35355338
    %v3249 = vmul.f32 %v3038, 0.35355338
    %v3250 = vmul.f32 %v3094, 0.35355338
    %v3251 = vmul.f32 %v3097, 0.35355338
    %v3252 = vmul.f32 %v3102, 0.35355338
    %v3253 = vmul.f32 %v3158, 0.35355338
    %v3254 = vmul.f32 %v3161, 0.35355338
    %v3255 = vmul.f32 %v3166, 0.35355338
    %v3256 = vmul.f32 %v3222, 0.35355338
    %v3257 = vmul.f32 %v3225, 0.35355338
    %v3258 = vmul.f32 %v3230, 0.35355338
    %v3259 = vsel %vm1026, %v3235, -inf
    %3260 = vmax.xlane.f32.xlu0 %v3259
    %v3261 = vpop.xlane.xlu0 %3260
    %v3262 = vsel %vm1026, %v3236, -inf
    %3263 = vmax.xlane.f32.xlu0 %v3262
    %v3264 = vpop.xlane.xlu0 %3263
    %v3265 = vsel %vm1026, %v3237, -inf
    %3266 = vmax.xlane.f32.xlu0 %v3265
    %v3267 = vpop.xlane.xlu0 %3266
    %v3268 = vsel %vm1026, %v3238, -inf
    %3269 = vmax.xlane.f32.xlu0 %v3268
    %v3270 = vpop.xlane.xlu0 %3269
    %v3271 = vsel %vm1026, %v3239, -inf
    %3272 = vmax.xlane.f32.xlu0 %v3271
    %v3273 = vpop.xlane.xlu0 %3272
    %v3274 = vsel %vm1026, %v3240, -inf
    %3275 = vmax.xlane.f32.xlu0 %v3274
    %v3276 = vpop.xlane.xlu0 %3275
    %v3277 = vsel %vm1026, %v3241, -inf
    %3278 = vmax.xlane.f32.xlu0 %v3277
    %v3279 = vpop.xlane.xlu0 %3278
    %v3280 = vsel %vm1026, %v3242, -inf
    %3281 = vmax.xlane.f32.xlu0 %v3280
    %v3282 = vpop.xlane.xlu0 %3281
    %v3283 = vsel %vm1026, %v3243, -inf
    %3284 = vmax.xlane.f32.xlu0 %v3283
    %v3285 = vpop.xlane.xlu0 %3284
    %v3286 = vsel %vm1026, %v3244, -inf
    %3287 = vmax.xlane.f32.xlu0 %v3286
    %v3288 = vpop.xlane.xlu0 %3287
    %v3289 = vsel %vm1026, %v3245, -inf
    %3290 = vmax.xlane.f32.xlu0 %v3289
    %v3291 = vpop.xlane.xlu0 %3290
    %v3292 = vsel %vm1026, %v3246, -inf
    %3293 = vmax.xlane.f32.xlu0 %v3292
    %v3294 = vpop.xlane.xlu0 %3293
    %v3295 = vsel %vm1026, %v3247, -inf
    %3296 = vmax.xlane.f32.xlu0 %v3295
    %v3297 = vpop.xlane.xlu0 %3296
    %v3298 = vsel %vm1026, %v3248, -inf
    %3299 = vmax.xlane.f32.xlu0 %v3298
    %v3300 = vpop.xlane.xlu0 %3299
    %v3301 = vsel %vm1026, %v3249, -inf
    %3302 = vmax.xlane.f32.xlu0 %v3301
    %v3303 = vpop.xlane.xlu0 %3302
    %v3304 = vsel %vm1026, %v3250, -inf
    %3305 = vmax.xlane.f32.xlu0 %v3304
    %v3306 = vpop.xlane.xlu0 %3305
    %v3307 = vsel %vm1026, %v3251, -inf
    %3308 = vmax.xlane.f32.xlu0 %v3307
    %v3309 = vpop.xlane.xlu0 %3308
    %v3310 = vsel %vm1026, %v3252, -inf
    %3311 = vmax.xlane.f32.xlu0 %v3310
    %v3312 = vpop.xlane.xlu0 %3311
    %v3313 = vsel %vm1026, %v3253, -inf
    %3314 = vmax.xlane.f32.xlu0 %v3313
    %v3315 = vpop.xlane.xlu0 %3314
    %v3316 = vsel %vm1026, %v3254, -inf
    %3317 = vmax.xlane.f32.xlu0 %v3316
    %v3318 = vpop.xlane.xlu0 %3317
    %v3319 = vsel %vm1026, %v3255, -inf
    %3320 = vmax.xlane.f32.xlu0 %v3319
    %v3321 = vpop.xlane.xlu0 %3320
    %v3322 = vsel %vm1026, %v3256, -inf
    %3323 = vmax.xlane.f32.xlu0 %v3322
    %v3324 = vpop.xlane.xlu0 %3323
    %v3325 = vsel %vm1026, %v3257, -inf
    %3326 = vmax.xlane.f32.xlu0 %v3325
    %v3327 = vpop.xlane.xlu0 %3326
    %v3328 = vsel %vm1026, %v3258, -inf
    %3329 = vmax.xlane.f32.xlu0 %v3328
    %v3330 = vpop.xlane.xlu0 %3329
    %v3331 = vsub.f32 %v3235, %v3261
    %v3332 = vsub.f32 %v3236, %v3264
    %v3333 = vsub.f32 %v3237, %v3267
    %v3334 = vsub.f32 %v3238, %v3270
    %v3335 = vsub.f32 %v3239, %v3273
    %v3336 = vsub.f32 %v3240, %v3276
    %v3337 = vsub.f32 %v3241, %v3279
    %v3338 = vsub.f32 %v3242, %v3282
    %v3339 = vsub.f32 %v3243, %v3285
    %v3340 = vsub.f32 %v3244, %v3288
    %v3341 = vsub.f32 %v3245, %v3291
    %v3342 = vsub.f32 %v3246, %v3294
    %v3343 = vsub.f32 %v3247, %v3297
    %v3344 = vsub.f32 %v3248, %v3300
    %v3345 = vsub.f32 %v3249, %v3303
    %v3346 = vsub.f32 %v3250, %v3306
    %v3347 = vsub.f32 %v3251, %v3309
    %v3348 = vsub.f32 %v3252, %v3312
    %v3349 = vsub.f32 %v3253, %v3315
    %v3350 = vsub.f32 %v3254, %v3318
    %v3351 = vsub.f32 %v3255, %v3321
    %v3352 = vsub.f32 %v3256, %v3324
    %v3353 = vsub.f32 %v3257, %v3327
    %v3354 = vsub.f32 %v3258, %v3330
    %v3355 = vmul.f32 %v3331, 1.442695
    %v3356 = vpow.pop %v3355
    %v3357 = vmul.f32 %v3332, 1.442695
    %v3358 = vpow.pop %v3357
    %v3359 = vmul.f32 %v3333, 1.442695
    %v3360 = vpow.pop %v3359
    %v3361 = vmul.f32 %v3334, 1.442695
    %v3362 = vpow.pop %v3361
    %v3363 = vmul.f32 %v3335, 1.442695
    %v3364 = vpow.pop %v3363
    %v3365 = vmul.f32 %v3336, 1.442695
    %v3366 = vpow.pop %v3365
    %v3367 = vmul.f32 %v3337, 1.442695
    %v3368 = vpow.pop %v3367
    %v3369 = vmul.f32 %v3338, 1.442695
    %v3370 = vpow.pop %v3369
    %v3371 = vmul.f32 %v3339, 1.442695
    %v3372 = vpow.pop %v3371
    %v3373 = vmul.f32 %v3340, 1.442695
    %v3374 = vpow.pop %v3373
    %v3375 = vmul.f32 %v3341, 1.442695
    %v3376 = vpow.pop %v3375
    %v3377 = vmul.f32 %v3342, 1.442695
    %v3378 = vpow.pop %v3377
    %v3379 = vmul.f32 %v3343, 1.442695
    %v3380 = vpow.pop %v3379
    %v3381 = vmul.f32 %v3344, 1.442695
    %v3382 = vpow.pop %v3381
    %v3383 = vmul.f32 %v3345, 1.442695
    %v3384 = vpow.pop %v3383
    %v3385 = vmul.f32 %v3346, 1.442695
    %v3386 = vpow.pop %v3385
    %v3387 = vmul.f32 %v3347, 1.442695
    %v3388 = vpow.pop %v3387
    %v3389 = vmul.f32 %v3348, 1.442695
    %v3390 = vpow.pop %v3389
    %v3391 = vmul.f32 %v3349, 1.442695
    %v3392 = vpow.pop %v3391
    %v3393 = vmul.f32 %v3350, 1.442695
    %v3394 = vpow.pop %v3393
    %v3395 = vmul.f32 %v3351, 1.442695
    %v3396 = vpow.pop %v3395
    %v3397 = vmul.f32 %v3352, 1.442695
    %v3398 = vpow.pop %v3397
    %v3399 = vmul.f32 %v3353, 1.442695
    %v3400 = vpow.pop %v3399
    %v3401 = vmul.f32 %v3354, 1.442695
    %v3402 = vpow.pop %v3401
    %v3403 = vsel %vm1026, %v3356, 0.0
    %3404 = vadd.xlane.f32.xlu0 %v3403
    %v3405 = vpop.xlane.xlu0 %3404
    %v3406 = vsel %vm1026, %v3358, 0.0
    %3407 = vadd.xlane.f32.xlu0 %v3406
    %v3408 = vpop.xlane.xlu0 %3407
    %v3409 = vsel %vm1026, %v3360, 0.0
    %3410 = vadd.xlane.f32.xlu0 %v3409
    %v3411 = vpop.xlane.xlu0 %3410
    %v3412 = vsel %vm1026, %v3362, 0.0
    %3413 = vadd.xlane.f32.xlu0 %v3412
    %v3414 = vpop.xlane.xlu0 %3413
    %v3415 = vsel %vm1026, %v3364, 0.0
    %3416 = vadd.xlane.f32.xlu0 %v3415
    %v3417 = vpop.xlane.xlu0 %3416
    %v3418 = vsel %vm1026, %v3366, 0.0
    %3419 = vadd.xlane.f32.xlu0 %v3418
    %v3420 = vpop.xlane.xlu0 %3419
    %v3421 = vsel %vm1026, %v3368, 0.0
    %3422 = vadd.xlane.f32.xlu0 %v3421
    %v3423 = vpop.xlane.xlu0 %3422
    %v3424 = vsel %vm1026, %v3370, 0.0
    %3425 = vadd.xlane.f32.xlu0 %v3424
    %v3426 = vpop.xlane.xlu0 %3425
    %v3427 = vsel %vm1026, %v3372, 0.0
    %3428 = vadd.xlane.f32.xlu0 %v3427
    %v3429 = vpop.xlane.xlu0 %3428
    %v3430 = vsel %vm1026, %v3374, 0.0
    %3431 = vadd.xlane.f32.xlu0 %v3430
    %v3432 = vpop.xlane.xlu0 %3431
    %v3433 = vsel %vm1026, %v3376, 0.0
    %3434 = vadd.xlane.f32.xlu0 %v3433
    %v3435 = vpop.xlane.xlu0 %3434
    %v3436 = vsel %vm1026, %v3378, 0.0
    %3437 = vadd.xlane.f32.xlu0 %v3436
    %v3438 = vpop.xlane.xlu0 %3437
    %v3439 = vsel %vm1026, %v3380, 0.0
    %3440 = vadd.xlane.f32.xlu0 %v3439
    %v3441 = vpop.xlane.xlu0 %3440
    %v3442 = vsel %vm1026, %v3382, 0.0
    %3443 = vadd.xlane.f32.xlu0 %v3442
    %v3444 = vpop.xlane.xlu0 %3443
    %v3445 = vsel %vm1026, %v3384, 0.0
    %3446 = vadd.xlane.f32.xlu0 %v3445
    %v3447 = vpop.xlane.xlu0 %3446
    %v3448 = vsel %vm1026, %v3386, 0.0
    %3449 = vadd.xlane.f32.xlu0 %v3448
    %v3450 = vpop.xlane.xlu0 %3449
    %v3451 = vsel %vm1026, %v3388, 0.0
    %3452 = vadd.xlane.f32.xlu0 %v3451
    %v3453 = vpop.xlane.xlu0 %3452
    %v3454 = vsel %vm1026, %v3390, 0.0
    %3455 = vadd.xlane.f32.xlu0 %v3454
    %v3456 = vpop.xlane.xlu0 %3455
    %v3457 = vsel %vm1026, %v3392, 0.0
    %3458 = vadd.xlane.f32.xlu0 %v3457
    %v3459 = vpop.xlane.xlu0 %3458
    %v3460 = vsel %vm1026, %v3394, 0.0
    %3461 = vadd.xlane.f32.xlu0 %v3460
    %v3462 = vpop.xlane.xlu0 %3461
    %v3463 = vsel %vm1026, %v3396, 0.0
    %3464 = vadd.xlane.f32.xlu0 %v3463
    %v3465 = vpop.xlane.xlu0 %3464
    %v3466 = vsel %vm1026, %v3398, 0.0
    %3467 = vadd.xlane.f32.xlu0 %v3466
    %v3468 = vpop.xlane.xlu0 %3467
    %v3469 = vsel %vm1026, %v3400, 0.0
    %3470 = vadd.xlane.f32.xlu0 %v3469
    %v3471 = vpop.xlane.xlu0 %3470
    %v3472 = vsel %vm1026, %v3402, 0.0
    %3473 = vadd.xlane.f32.xlu0 %v3472
    %v3474 = vpop.xlane.xlu0 %3473
    %v3475 = vrcp.pop %v3405
    %v3476 = vmul.f32 %v3356, %v3475
    %v3477 = vrcp.pop %v3408
    %v3478 = vmul.f32 %v3358, %v3477
    %v3479 = vrcp.pop %v3411
    %v3480 = vmul.f32 %v3360, %v3479
    %v3481 = vrcp.pop %v3414
    %v3482 = vmul.f32 %v3362, %v3481
    %v3483 = vrcp.pop %v3417
    %v3484 = vmul.f32 %v3364, %v3483
    %v3485 = vrcp.pop %v3420
    %v3486 = vmul.f32 %v3366, %v3485
    %v3487 = vrcp.pop %v3423
    %v3488 = vmul.f32 %v3368, %v3487
    %v3489 = vrcp.pop %v3426
    %v3490 = vmul.f32 %v3370, %v3489
    %v3491 = vrcp.pop %v3429
    %v3492 = vmul.f32 %v3372, %v3491
    %v3493 = vrcp.pop %v3432
    %v3494 = vmul.f32 %v3374, %v3493
    %v3495 = vrcp.pop %v3435
    %v3496 = vmul.f32 %v3376, %v3495
    %v3497 = vrcp.pop %v3438
    %v3498 = vmul.f32 %v3378, %v3497
    %v3499 = vrcp.pop %v3441
    %v3500 = vmul.f32 %v3380, %v3499
    %v3501 = vrcp.pop %v3444
    %v3502 = vmul.f32 %v3382, %v3501
    %v3503 = vrcp.pop %v3447
    %v3504 = vmul.f32 %v3384, %v3503
    %v3505 = vrcp.pop %v3450
    %v3506 = vmul.f32 %v3386, %v3505
    %v3507 = vrcp.pop %v3453
    %v3508 = vmul.f32 %v3388, %v3507
    %v3509 = vrcp.pop %v3456
    %v3510 = vmul.f32 %v3390, %v3509
    %v3511 = vrcp.pop %v3459
    %v3512 = vmul.f32 %v3392, %v3511
    %v3513 = vrcp.pop %v3462
    %v3514 = vmul.f32 %v3394, %v3513
    %v3515 = vrcp.pop %v3465
    %v3516 = vmul.f32 %v3396, %v3515
    %v3517 = vrcp.pop %v3468
    %v3518 = vmul.f32 %v3398, %v3517
    %v3519 = vrcp.pop %v3471
    %v3520 = vmul.f32 %v3400, %v3519
    %v3521 = vrcp.pop %v3474
    %v3522 = vmul.f32 %v3402, %v3521
    %v3523 = vpack.c.bf16 %v3478, %v3476
    %v3524 = vpack.c.bf16 %v3480, %v3480
    %v3525 = vpack.c.bf16 %v3484, %v3482
    %v3526 = vpack.c.bf16 %v3486, %v3486
    %v3527 = vpack.c.bf16 %v3490, %v3488
    %v3528 = vpack.c.bf16 %v3492, %v3492
    %v3529 = vpack.c.bf16 %v3496, %v3494
    %v3530 = vpack.c.bf16 %v3498, %v3498
    %v3531 = vpack.c.bf16 %v3502, %v3500
    %v3532 = vpack.c.bf16 %v3504, %v3504
    %v3533 = vpack.c.bf16 %v3508, %v3506
    %v3534 = vpack.c.bf16 %v3510, %v3510
    %v3535 = vpack.c.bf16 %v3514, %v3512
    %v3536 = vpack.c.bf16 %v3516, %v3516
    %v3537 = vpack.c.bf16 %v3520, %v3518
    %v3538 = vpack.c.bf16 %v3522, %v3522
    %3539 = vrot.lane.b32.xlu0 %v2690, 64
    %v3540 = vpop.permute.xlu0 %3539
    %3541 = vrot.lane.b32.xlu0 %v2691, 64
    %v3542 = vpop.permute.xlu0 %3541
    %v3545 = vsel %vm1026, %v3523, 0
    %v3548 = vsel %vm1026, %v3524, 0
    %v3551 = vsel %vm1318, %v3542, 0
    %3553 = vmatprep.subr.bf16.mxu0 0
    %3554 = vmatpush1.bf16.msra.mxu0 0
    %3555 = vmatprep.subr.bf16.mxu0 0
    %3556 = vmatpush1.bf16.msra.mxu0 0
    %3557 = vmatprep.subr.bf16.mxu0 0
    %3558 = vmatpush1.bf16.msra.mxu0 0
    %3559 = vmatprep.subr.bf16.mxu0 0
    %3560 = vmatpush1.bf16.msra.mxu0 0
    %3561 = vmatprep.subr.bf16.mxu0 0
    %3562 = vmatpush1.bf16.msra.mxu0 0
    %3563 = vmatprep.subr.bf16.mxu0 0
    %3564 = vmatpush1.bf16.msra.mxu0 0
    %3565 = vmatprep.subr.bf16.mxu0 0
    %3566 = vmatpush1.bf16.msra.mxu0 %v3551
    %3567 = vmatprep.subr.bf16.mxu0 0
    %3568 = vmatpush1.bf16.msra.mxu0 %v3540
    %3569 = vmatprep.subr.bf16.mxu0 0
    %3570 = vmatpush2.bf16.msra.mxu0 0
    %3571 = vmatprep.subr.bf16.mxu0 0
    %3572 = vmatpush2.bf16.msra.mxu0 0
    %3573 = vmatprep.subr.bf16.mxu0 0
    %3574 = vmatpush2.bf16.msra.mxu0 0
    %3575 = vmatprep.subr.bf16.mxu0 0
    %3576 = vmatpush2.bf16.msra.mxu0 0
    %3577 = vmatprep.subr.bf16.mxu0 0
    %3578 = vmatpush2.bf16.msra.mxu0 0
    %3579 = vmatprep.subr.bf16.mxu0 0
    %3580 = vmatpush2.bf16.msra.mxu0 0
    %3581 = vmatprep.subr.bf16.mxu0 0
    %3582 = vmatpush2.bf16.msra.mxu0 0
    %3583 = vmatprep.subr.bf16.mxu0 0
    %3584 = vmatpush2.bf16.msra.mxu0 0
    %3585 = vmatprep.mubr.bf16.mxu0 0
    %3586 = vmatmul.mubr.bf16.gmra.mxu0 %v3545
    %v3587 = vpop.f32.mrf.mxu0
    %v3588 = vadd.f32 0.0, %v3587
    %v3589 = vpop.f32.mrf.mxu0
    %v3590 = vpop.f32.mrf.mxu0
    %v3591 = vadd.f32 0.0, %v3590
    %v3592 = vpop.f32.mrf.mxu0
    %3593 = vmatprep.mubr.bf16.mxu0 0
    %3594 = vmatmul.mubr.bf16.gmra.mxu0 %v3548
    %v3595 = vpop.f32.mrf.mxu0
    %v3596 = vadd.f32 0.0, %v3595
    %v3597 = vpop.f32.mrf.mxu0
    %v3598 = vpop.f32.mrf.mxu0
    %v3599 = vpop.f32.mrf.mxu0
    %3600 = vdwg.mxu0
    %3601 = vrot.lane.b32.xlu0 %v2696, 64
    %v3602 = vpop.permute.xlu0 %3601
    %3603 = vrot.lane.b32.xlu0 %v2698, 64
    %v3604 = vpop.permute.xlu0 %3603
    %v3607 = vsel %vm1026, %v3525, 0
    %v3610 = vsel %vm1026, %v3526, 0
    %v3613 = vsel %vm1318, %v3604, 0
    %3615 = vmatprep.subr.bf16.mxu0 0
    %3616 = vmatpush1.bf16.msra.mxu0 0
    %3617 = vmatprep.subr.bf16.mxu0 0
    %3618 = vmatpush1.bf16.msra.mxu0 0
    %3619 = vmatprep.subr.bf16.mxu0 0
    %3620 = vmatpush1.bf16.msra.mxu0 0
    %3621 = vmatprep.subr.bf16.mxu0 0
    %3622 = vmatpush1.bf16.msra.mxu0 0
    %3623 = vmatprep.subr.bf16.mxu0 0
    %3624 = vmatpush1.bf16.msra.mxu0 0
    %3625 = vmatprep.subr.bf16.mxu0 0
    %3626 = vmatpush1.bf16.msra.mxu0 0
    %3627 = vmatprep.subr.bf16.mxu0 0
    %3628 = vmatpush1.bf16.msra.mxu0 %v3613
    %3629 = vmatprep.subr.bf16.mxu0 0
    %3630 = vmatpush1.bf16.msra.mxu0 %v3602
    %3631 = vmatprep.subr.bf16.mxu0 0
    %3632 = vmatpush2.bf16.msra.mxu0 0
    %3633 = vmatprep.subr.bf16.mxu0 0
    %3634 = vmatpush2.bf16.msra.mxu0 0
    %3635 = vmatprep.subr.bf16.mxu0 0
    %3636 = vmatpush2.bf16.msra.mxu0 0
    %3637 = vmatprep.subr.bf16.mxu0 0
    %3638 = vmatpush2.bf16.msra.mxu0 0
    %3639 = vmatprep.subr.bf16.mxu0 0
    %3640 = vmatpush2.bf16.msra.mxu0 0
    %3641 = vmatprep.subr.bf16.mxu0 0
    %3642 = vmatpush2.bf16.msra.mxu0 0
    %3643 = vmatprep.subr.bf16.mxu0 0
    %3644 = vmatpush2.bf16.msra.mxu0 0
    %3645 = vmatprep.subr.bf16.mxu0 0
    %3646 = vmatpush2.bf16.msra.mxu0 0
    %3647 = vmatprep.mubr.bf16.mxu0 0
    %3648 = vmatmul.mubr.bf16.gmra.mxu0 %v3607
    %v3649 = vpop.f32.mrf.mxu0
    %v3650 = vadd.f32 0.0, %v3649
    %v3651 = vpop.f32.mrf.mxu0
    %v3652 = vpop.f32.mrf.mxu0
    %v3653 = vadd.f32 0.0, %v3652
    %v3654 = vpop.f32.mrf.mxu0
    %3655 = vmatprep.mubr.bf16.mxu0 0
    %3656 = vmatmul.mubr.bf16.gmra.mxu0 %v3610
    %v3657 = vpop.f32.mrf.mxu0
    %v3658 = vadd.f32 0.0, %v3657
    %v3659 = vpop.f32.mrf.mxu0
    %v3660 = vpop.f32.mrf.mxu0
    %v3661 = vpop.f32.mrf.mxu0
    %3662 = vdwg.mxu0
    %3663 = vrot.lane.b32.xlu0 %v2700, 64
    %v3664 = vpop.permute.xlu0 %3663
    %3665 = vrot.lane.b32.xlu0 %v2702, 64
    %v3666 = vpop.permute.xlu0 %3665
    %v3669 = vsel %vm1026, %v3527, 0
    %v3672 = vsel %vm1026, %v3528, 0
    %v3675 = vsel %vm1318, %v3666, 0
    %3677 = vmatprep.subr.bf16.mxu0 0
    %3678 = vmatpush1.bf16.msra.mxu0 0
    %3679 = vmatprep.subr.bf16.mxu0 0
    %3680 = vmatpush1.bf16.msra.mxu0 0
    %3681 = vmatprep.subr.bf16.mxu0 0
    %3682 = vmatpush1.bf16.msra.mxu0 0
    %3683 = vmatprep.subr.bf16.mxu0 0
    %3684 = vmatpush1.bf16.msra.mxu0 0
    %3685 = vmatprep.subr.bf16.mxu0 0
    %3686 = vmatpush1.bf16.msra.mxu0 0
    %3687 = vmatprep.subr.bf16.mxu0 0
    %3688 = vmatpush1.bf16.msra.mxu0 0
    %3689 = vmatprep.subr.bf16.mxu0 0
    %3690 = vmatpush1.bf16.msra.mxu0 %v3675
    %3691 = vmatprep.subr.bf16.mxu0 0
    %3692 = vmatpush1.bf16.msra.mxu0 %v3664
    %3693 = vmatprep.subr.bf16.mxu0 0
    %3694 = vmatpush2.bf16.msra.mxu0 0
    %3695 = vmatprep.subr.bf16.mxu0 0
    %3696 = vmatpush2.bf16.msra.mxu0 0
    %3697 = vmatprep.subr.bf16.mxu0 0
    %3698 = vmatpush2.bf16.msra.mxu0 0
    %3699 = vmatprep.subr.bf16.mxu0 0
    %3700 = vmatpush2.bf16.msra.mxu0 0
    %3701 = vmatprep.subr.bf16.mxu0 0
    %3702 = vmatpush2.bf16.msra.mxu0 0
    %3703 = vmatprep.subr.bf16.mxu0 0
    %3704 = vmatpush2.bf16.msra.mxu0 0
    %3705 = vmatprep.subr.bf16.mxu0 0
    %3706 = vmatpush2.bf16.msra.mxu0 0
    %3707 = vmatprep.subr.bf16.mxu0 0
    %3708 = vmatpush2.bf16.msra.mxu0 0
    %3709 = vmatprep.mubr.bf16.mxu0 0
    %3710 = vmatmul.mubr.bf16.gmra.mxu0 %v3669
    %v3711 = vpop.f32.mrf.mxu0
    %v3712 = vadd.f32 0.0, %v3711
    %v3713 = vpop.f32.mrf.mxu0
    %v3714 = vpop.f32.mrf.mxu0
    %v3715 = vadd.f32 0.0, %v3714
    %v3716 = vpop.f32.mrf.mxu0
    %3717 = vmatprep.mubr.bf16.mxu0 0
    %3718 = vmatmul.mubr.bf16.gmra.mxu0 %v3672
    %v3719 = vpop.f32.mrf.mxu0
    %v3720 = vadd.f32 0.0, %v3719
    %v3721 = vpop.f32.mrf.mxu0
    %v3722 = vpop.f32.mrf.mxu0
    %v3723 = vpop.f32.mrf.mxu0
    %3724 = vdwg.mxu0
    %3725 = vrot.lane.b32.xlu0 %v2704, 64
    %v3726 = vpop.permute.xlu0 %3725
    %3727 = vrot.lane.b32.xlu0 %v2706, 64
    %v3728 = vpop.permute.xlu0 %3727
    %v3731 = vsel %vm1026, %v3529, 0
    %v3734 = vsel %vm1026, %v3530, 0
    %v3737 = vsel %vm1318, %v3728, 0
    %3739 = vmatprep.subr.bf16.mxu0 0
    %3740 = vmatpush1.bf16.msra.mxu0 0
    %3741 = vmatprep.subr.bf16.mxu0 0
    %3742 = vmatpush1.bf16.msra.mxu0 0
    %3743 = vmatprep.subr.bf16.mxu0 0
    %3744 = vmatpush1.bf16.msra.mxu0 0
    %3745 = vmatprep.subr.bf16.mxu0 0
    %3746 = vmatpush1.bf16.msra.mxu0 0
    %3747 = vmatprep.subr.bf16.mxu0 0
    %3748 = vmatpush1.bf16.msra.mxu0 0
    %3749 = vmatprep.subr.bf16.mxu0 0
    %3750 = vmatpush1.bf16.msra.mxu0 0
    %3751 = vmatprep.subr.bf16.mxu0 0
    %3752 = vmatpush1.bf16.msra.mxu0 %v3737
    %3753 = vmatprep.subr.bf16.mxu0 0
    %3754 = vmatpush1.bf16.msra.mxu0 %v3726
    %3755 = vmatprep.subr.bf16.mxu0 0
    %3756 = vmatpush2.bf16.msra.mxu0 0
    %3757 = vmatprep.subr.bf16.mxu0 0
    %3758 = vmatpush2.bf16.msra.mxu0 0
    %3759 = vmatprep.subr.bf16.mxu0 0
    %3760 = vmatpush2.bf16.msra.mxu0 0
    %3761 = vmatprep.subr.bf16.mxu0 0
    %3762 = vmatpush2.bf16.msra.mxu0 0
    %3763 = vmatprep.subr.bf16.mxu0 0
    %3764 = vmatpush2.bf16.msra.mxu0 0
    %3765 = vmatprep.subr.bf16.mxu0 0
    %3766 = vmatpush2.bf16.msra.mxu0 0
    %3767 = vmatprep.subr.bf16.mxu0 0
    %3768 = vmatpush2.bf16.msra.mxu0 0
    %3769 = vmatprep.subr.bf16.mxu0 0
    %3770 = vmatpush2.bf16.msra.mxu0 0
    %3771 = vmatprep.mubr.bf16.mxu0 0
    %3772 = vmatmul.mubr.bf16.gmra.mxu0 %v3731
    %v3773 = vpop.f32.mrf.mxu0
    %v3774 = vadd.f32 0.0, %v3773
    %v3775 = vpop.f32.mrf.mxu0
    %v3776 = vpop.f32.mrf.mxu0
    %v3777 = vadd.f32 0.0, %v3776
    %v3778 = vpop.f32.mrf.mxu0
    %3779 = vmatprep.mubr.bf16.mxu0 0
    %3780 = vmatmul.mubr.bf16.gmra.mxu0 %v3734
    %v3781 = vpop.f32.mrf.mxu0
    %v3782 = vadd.f32 0.0, %v3781
    %v3783 = vpop.f32.mrf.mxu0
    %v3784 = vpop.f32.mrf.mxu0
    %v3785 = vpop.f32.mrf.mxu0
    %3786 = vdwg.mxu0
    %3787 = vrot.lane.b32.xlu0 %v2710, 64
    %v3788 = vpop.permute.xlu0 %3787
    %3789 = vrot.lane.b32.xlu0 %v2709, 64
    %v3790 = vpop.permute.xlu0 %3789
    %v3793 = vsel %vm1026, %v3531, 0
    %v3796 = vsel %vm1026, %v3532, 0
    %v3799 = vsel %vm1318, %v3790, 0
    %3801 = vmatprep.subr.bf16.mxu0 0
    %3802 = vmatpush1.bf16.msra.mxu0 0
    %3803 = vmatprep.subr.bf16.mxu0 0
    %3804 = vmatpush1.bf16.msra.mxu0 0
    %3805 = vmatprep.subr.bf16.mxu0 0
    %3806 = vmatpush1.bf16.msra.mxu0 0
    %3807 = vmatprep.subr.bf16.mxu0 0
    %3808 = vmatpush1.bf16.msra.mxu0 0
    %3809 = vmatprep.subr.bf16.mxu0 0
    %3810 = vmatpush1.bf16.msra.mxu0 0
    %3811 = vmatprep.subr.bf16.mxu0 0
    %3812 = vmatpush1.bf16.msra.mxu0 0
    %3813 = vmatprep.subr.bf16.mxu0 0
    %3814 = vmatpush1.bf16.msra.mxu0 %v3799
    %3815 = vmatprep.subr.bf16.mxu0 0
    %3816 = vmatpush1.bf16.msra.mxu0 %v3788
    %3817 = vmatprep.subr.bf16.mxu0 0
    %3818 = vmatpush2.bf16.msra.mxu0 0
    %3819 = vmatprep.subr.bf16.mxu0 0
    %3820 = vmatpush2.bf16.msra.mxu0 0
    %3821 = vmatprep.subr.bf16.mxu0 0
    %3822 = vmatpush2.bf16.msra.mxu0 0
    %3823 = vmatprep.subr.bf16.mxu0 0
    %3824 = vmatpush2.bf16.msra.mxu0 0
    %3825 = vmatprep.subr.bf16.mxu0 0
    %3826 = vmatpush2.bf16.msra.mxu0 0
    %3827 = vmatprep.subr.bf16.mxu0 0
    %3828 = vmatpush2.bf16.msra.mxu0 0
    %3829 = vmatprep.subr.bf16.mxu0 0
    %3830 = vmatpush2.bf16.msra.mxu0 0
    %3831 = vmatprep.subr.bf16.mxu0 0
    %3832 = vmatpush2.bf16.msra.mxu0 0
    %3833 = vmatprep.mubr.bf16.mxu0 0
    %3834 = vmatmul.mubr.bf16.gmra.mxu0 %v3793
    %v3835 = vpop.f32.mrf.mxu0
    %v3836 = vadd.f32 0.0, %v3835
    %v3837 = vpop.f32.mrf.mxu0
    %v3838 = vpop.f32.mrf.mxu0
    %v3839 = vadd.f32 0.0, %v3838
    %v3840 = vpop.f32.mrf.mxu0
    %3841 = vmatprep.mubr.bf16.mxu0 0
    %3842 = vmatmul.mubr.bf16.gmra.mxu0 %v3796
    %v3843 = vpop.f32.mrf.mxu0
    %v3844 = vadd.f32 0.0, %v3843
    %v3845 = vpop.f32.mrf.mxu0
    %v3846 = vpop.f32.mrf.mxu0
    %v3847 = vpop.f32.mrf.mxu0
    %3848 = vdwg.mxu0
    %3849 = vrot.lane.b32.xlu0 %v2712, 64
    %v3850 = vpop.permute.xlu0 %3849
    %3851 = vrot.lane.b32.xlu0 %v2714, 64
    %v3852 = vpop.permute.xlu0 %3851
    %v3855 = vsel %vm1026, %v3533, 0
    %v3858 = vsel %vm1026, %v3534, 0
    %v3861 = vsel %vm1318, %v3852, 0
    %3863 = vmatprep.subr.bf16.mxu0 0
    %3864 = vmatpush1.bf16.msra.mxu0 0
    %3865 = vmatprep.subr.bf16.mxu0 0
    %3866 = vmatpush1.bf16.msra.mxu0 0
    %3867 = vmatprep.subr.bf16.mxu0 0
    %3868 = vmatpush1.bf16.msra.mxu0 0
    %3869 = vmatprep.subr.bf16.mxu0 0
    %3870 = vmatpush1.bf16.msra.mxu0 0
    %3871 = vmatprep.subr.bf16.mxu0 0
    %3872 = vmatpush1.bf16.msra.mxu0 0
    %3873 = vmatprep.subr.bf16.mxu0 0
    %3874 = vmatpush1.bf16.msra.mxu0 0
    %3875 = vmatprep.subr.bf16.mxu0 0
    %3876 = vmatpush1.bf16.msra.mxu0 %v3861
    %3877 = vmatprep.subr.bf16.mxu0 0
    %3878 = vmatpush1.bf16.msra.mxu0 %v3850
    %3879 = vmatprep.subr.bf16.mxu0 0
    %3880 = vmatpush2.bf16.msra.mxu0 0
    %3881 = vmatprep.subr.bf16.mxu0 0
    %3882 = vmatpush2.bf16.msra.mxu0 0
    %3883 = vmatprep.subr.bf16.mxu0 0
    %3884 = vmatpush2.bf16.msra.mxu0 0
    %3885 = vmatprep.subr.bf16.mxu0 0
    %3886 = vmatpush2.bf16.msra.mxu0 0
    %3887 = vmatprep.subr.bf16.mxu0 0
    %3888 = vmatpush2.bf16.msra.mxu0 0
    %3889 = vmatprep.subr.bf16.mxu0 0
    %3890 = vmatpush2.bf16.msra.mxu0 0
    %3891 = vmatprep.subr.bf16.mxu0 0
    %3892 = vmatpush2.bf16.msra.mxu0 0
    %3893 = vmatprep.subr.bf16.mxu0 0
    %3894 = vmatpush2.bf16.msra.mxu0 0
    %3895 = vmatprep.mubr.bf16.mxu0 0
    %3896 = vmatmul.mubr.bf16.gmra.mxu0 %v3855
    %v3897 = vpop.f32.mrf.mxu0
    %v3898 = vadd.f32 0.0, %v3897
    %v3899 = vpop.f32.mrf.mxu0
    %v3900 = vpop.f32.mrf.mxu0
    %v3901 = vadd.f32 0.0, %v3900
    %v3902 = vpop.f32.mrf.mxu0
    %3903 = vmatprep.mubr.bf16.mxu0 0
    %3904 = vmatmul.mubr.bf16.gmra.mxu0 %v3858
    %v3905 = vpop.f32.mrf.mxu0
    %v3906 = vadd.f32 0.0, %v3905
    %v3907 = vpop.f32.mrf.mxu0
    %v3908 = vpop.f32.mrf.mxu0
    %v3909 = vpop.f32.mrf.mxu0
    %3910 = vdwg.mxu0
    %3911 = vrot.lane.b32.xlu0 %v2716, 64
    %v3912 = vpop.permute.xlu0 %3911
    %3913 = vrot.lane.b32.xlu0 %v2718, 64
    %v3914 = vpop.permute.xlu0 %3913
    %v3917 = vsel %vm1026, %v3535, 0
    %v3920 = vsel %vm1026, %v3536, 0
    %v3923 = vsel %vm1318, %v3914, 0
    %3925 = vmatprep.subr.bf16.mxu0 0
    %3926 = vmatpush1.bf16.msra.mxu0 0
    %3927 = vmatprep.subr.bf16.mxu0 0
    %3928 = vmatpush1.bf16.msra.mxu0 0
    %3929 = vmatprep.subr.bf16.mxu0 0
    %3930 = vmatpush1.bf16.msra.mxu0 0
    %3931 = vmatprep.subr.bf16.mxu0 0
    %3932 = vmatpush1.bf16.msra.mxu0 0
    %3933 = vmatprep.subr.bf16.mxu0 0
    %3934 = vmatpush1.bf16.msra.mxu0 0
    %3935 = vmatprep.subr.bf16.mxu0 0
    %3936 = vmatpush1.bf16.msra.mxu0 0
    %3937 = vmatprep.subr.bf16.mxu0 0
    %3938 = vmatpush1.bf16.msra.mxu0 %v3923
    %3939 = vmatprep.subr.bf16.mxu0 0
    %3940 = vmatpush1.bf16.msra.mxu0 %v3912
    %3941 = vmatprep.subr.bf16.mxu0 0
    %3942 = vmatpush2.bf16.msra.mxu0 0
    %3943 = vmatprep.subr.bf16.mxu0 0
    %3944 = vmatpush2.bf16.msra.mxu0 0
    %3945 = vmatprep.subr.bf16.mxu0 0
    %3946 = vmatpush2.bf16.msra.mxu0 0
    %3947 = vmatprep.subr.bf16.mxu0 0
    %3948 = vmatpush2.bf16.msra.mxu0 0
    %3949 = vmatprep.subr.bf16.mxu0 0
    %3950 = vmatpush2.bf16.msra.mxu0 0
    %3951 = vmatprep.subr.bf16.mxu0 0
    %3952 = vmatpush2.bf16.msra.mxu0 0
    %3953 = vmatprep.subr.bf16.mxu0 0
    %3954 = vmatpush2.bf16.msra.mxu0 0
    %3955 = vmatprep.subr.bf16.mxu0 0
    %3956 = vmatpush2.bf16.msra.mxu0 0
    %3957 = vmatprep.mubr.bf16.mxu0 0
    %3958 = vmatmul.mubr.bf16.gmra.mxu0 %v3917
    %v3959 = vpop.f32.mrf.mxu0
    %v3960 = vadd.f32 0.0, %v3959
    %v3961 = vpop.f32.mrf.mxu0
    %v3962 = vpop.f32.mrf.mxu0
    %v3963 = vadd.f32 0.0, %v3962
    %v3964 = vpop.f32.mrf.mxu0
    %3965 = vmatprep.mubr.bf16.mxu0 0
    %3966 = vmatmul.mubr.bf16.gmra.mxu0 %v3920
    %v3967 = vpop.f32.mrf.mxu0
    %v3968 = vadd.f32 0.0, %v3967
    %v3969 = vpop.f32.mrf.mxu0
    %v3970 = vpop.f32.mrf.mxu0
    %v3971 = vpop.f32.mrf.mxu0
    %3972 = vdwg.mxu0
    %3973 = vrot.lane.b32.xlu0 %v2720, 64
    %v3974 = vpop.permute.xlu0 %3973
    %3975 = vrot.lane.b32.xlu0 %v2722, 64
    %v3976 = vpop.permute.xlu0 %3975
    %v3979 = vsel %vm1026, %v3537, 0
    %v3982 = vsel %vm1026, %v3538, 0
    %v3985 = vsel %vm1318, %v3976, 0
    %3987 = vmatprep.subr.bf16.mxu0 0
    %3988 = vmatpush1.bf16.msra.mxu0 0
    %3989 = vmatprep.subr.bf16.mxu0 0
    %3990 = vmatpush1.bf16.msra.mxu0 0
    %3991 = vmatprep.subr.bf16.mxu0 0
    %3992 = vmatpush1.bf16.msra.mxu0 0
    %3993 = vmatprep.subr.bf16.mxu0 0
    %3994 = vmatpush1.bf16.msra.mxu0 0
    %3995 = vmatprep.subr.bf16.mxu0 0
    %3996 = vmatpush1.bf16.msra.mxu0 0
    %3997 = vmatprep.subr.bf16.mxu0 0
    %3998 = vmatpush1.bf16.msra.mxu0 0
    %3999 = vmatprep.subr.bf16.mxu0 0
    %4000 = vmatpush1.bf16.msra.mxu0 %v3985
    %4001 = vmatprep.subr.bf16.mxu0 0
    %4002 = vmatpush1.bf16.msra.mxu0 %v3974
    %4003 = vmatprep.subr.bf16.mxu0 0
    %4004 = vmatpush2.bf16.msra.mxu0 0
    %4005 = vmatprep.subr.bf16.mxu0 0
    %4006 = vmatpush2.bf16.msra.mxu0 0
    %4007 = vmatprep.subr.bf16.mxu0 0
    %4008 = vmatpush2.bf16.msra.mxu0 0
    %4009 = vmatprep.subr.bf16.mxu0 0
    %4010 = vmatpush2.bf16.msra.mxu0 0
    %4011 = vmatprep.subr.bf16.mxu0 0
    %4012 = vmatpush2.bf16.msra.mxu0 0
    %4013 = vmatprep.subr.bf16.mxu0 0
    %4014 = vmatpush2.bf16.msra.mxu0 0
    %4015 = vmatprep.subr.bf16.mxu0 0
    %4016 = vmatpush2.bf16.msra.mxu0 0
    %4017 = vmatprep.subr.bf16.mxu0 0
    %4018 = vmatpush2.bf16.msra.mxu0 0
    %4019 = vmatprep.mubr.bf16.mxu0 0
    %4020 = vmatmul.mubr.bf16.gmra.mxu0 %v3979
    %v4021 = vpop.f32.mrf.mxu0
    %v4022 = vadd.f32 0.0, %v4021
    %v4023 = vpop.f32.mrf.mxu0
    %v4024 = vpop.f32.mrf.mxu0
    %v4025 = vadd.f32 0.0, %v4024
    %v4026 = vpop.f32.mrf.mxu0
    %4027 = vmatprep.mubr.bf16.mxu0 0
    %4028 = vmatmul.mubr.bf16.gmra.mxu0 %v3982
    %v4029 = vpop.f32.mrf.mxu0
    %v4030 = vadd.f32 0.0, %v4029
    %v4031 = vpop.f32.mrf.mxu0
    %v4032 = vpop.f32.mrf.mxu0
    %v4033 = vpop.f32.mrf.mxu0
    %4034 = vdwg.mxu0
    %s4035 = scalar_lea.vmem [#allocation13], 96
    %4036 = vst.msk [vmem:[%s4035] sm:$0xff] %vm1026, %v3476
    %4037 = vst.msk [vmem:[%s4035 + $0x8] sm:$0xff] %vm1026, %v3478
    %4038 = vst.msk [vmem:[%s4035 + $0x10] sm:$0xff] %vm1026, %v3480
    %4039 = vst.msk [vmem:[%s4035 + $0x18] sm:$0xff] %vm1026, %v3482
    %4040 = vst.msk [vmem:[%s4035 + $0x20] sm:$0xff] %vm1026, %v3484
    %4041 = vst.msk [vmem:[%s4035 + $0x28] sm:$0xff] %vm1026, %v3486
    %4042 = vst.msk [vmem:[%s4035 + $0x30] sm:$0xff] %vm1026, %v3488
    %4043 = vst.msk [vmem:[%s4035 + $0x38] sm:$0xff] %vm1026, %v3490
    %4044 = vst.msk [vmem:[%s4035 + $0x40] sm:$0xff] %vm1026, %v3492
    %4045 = vst.msk [vmem:[%s4035 + $0x48] sm:$0xff] %vm1026, %v3494
    %4046 = vst.msk [vmem:[%s4035 + $0x50] sm:$0xff] %vm1026, %v3496
    %4047 = vst.msk [vmem:[%s4035 + $0x58] sm:$0xff] %vm1026, %v3498
    %4051 = vrot.lane.b32.xlu0 %v3650, 8
    %v4052 = vpop.permute.xlu0 %4051
    %4053 = vrot.lane.b32.xlu0 %v3653, 8
    %v4054 = vpop.permute.xlu0 %4053
    %4055 = vrot.lane.b32.xlu0 %v3658, 8
    %v4056 = vpop.permute.xlu0 %4055
    %4063 = vrot.lane.b32.xlu0 %v3712, 16
    %v4064 = vpop.permute.xlu0 %4063
    %4065 = vrot.lane.b32.xlu0 %v3715, 16
    %v4066 = vpop.permute.xlu0 %4065
    %4067 = vrot.lane.b32.xlu0 %v3720, 16
    %v4068 = vpop.permute.xlu0 %4067
    %4075 = vrot.lane.b32.xlu0 %v3774, 24
    %v4076 = vpop.permute.xlu0 %4075
    %4077 = vrot.lane.b32.xlu0 %v3777, 24
    %v4078 = vpop.permute.xlu0 %4077
    %4079 = vrot.lane.b32.xlu0 %v3782, 24
    %v4080 = vpop.permute.xlu0 %4079
    %v4084 = vsel %vm493, %v3588, %v4052
    %v4085 = vsel %vm493, %v3591, %v4054
    %v4086 = vsel %vm493, %v3596, %v4056
    %v4087 = vsel %vm1855, %v4084, %v4064
    %v4088 = vsel %vm1855, %v4085, %v4066
    %v4089 = vsel %vm1855, %v4086, %v4068
    %v4090 = vsel %vm1026, %v4087, %v4076
    %v4091 = vsel %vm1026, %v4088, %v4078
    %v4092 = vsel %vm1026, %v4089, %v4080
    %s4093 = scalar_lea.vmem [#allocation13], 288
    %4094 = vst.msk [vmem:[%s4093] sm:$0xff] %vm1026, %v3500
    %4095 = vst.msk [vmem:[%s4093 + $0x8] sm:$0xff] %vm1026, %v3502
    %4096 = vst.msk [vmem:[%s4093 + $0x10] sm:$0xff] %vm1026, %v3504
    %4097 = vst.msk [vmem:[%s4093 + $0x18] sm:$0xff] %vm1026, %v3506
    %4098 = vst.msk [vmem:[%s4093 + $0x20] sm:$0xff] %vm1026, %v3508
    %4099 = vst.msk [vmem:[%s4093 + $0x28] sm:$0xff] %vm1026, %v3510
    %4100 = vst.msk [vmem:[%s4093 + $0x30] sm:$0xff] %vm1026, %v3512
    %4101 = vst.msk [vmem:[%s4093 + $0x38] sm:$0xff] %vm1026, %v3514
    %4102 = vst.msk [vmem:[%s4093 + $0x40] sm:$0xff] %vm1026, %v3516
    %4103 = vst.msk [vmem:[%s4093 + $0x48] sm:$0xff] %vm1026, %v3518
    %4104 = vst.msk [vmem:[%s4093 + $0x50] sm:$0xff] %vm1026, %v3520
    %4105 = vst.msk [vmem:[%s4093 + $0x58] sm:$0xff] %vm1026, %v3522
    %4109 = vrot.lane.b32.xlu0 %v3898, 8
    %v4110 = vpop.permute.xlu0 %4109
    %4111 = vrot.lane.b32.xlu0 %v3901, 8
    %v4112 = vpop.permute.xlu0 %4111
    %4113 = vrot.lane.b32.xlu0 %v3906, 8
    %v4114 = vpop.permute.xlu0 %4113
    %4121 = vrot.lane.b32.xlu0 %v3960, 16
    %v4122 = vpop.permute.xlu0 %4121
    %4123 = vrot.lane.b32.xlu0 %v3963, 16
    %v4124 = vpop.permute.xlu0 %4123
    %4125 = vrot.lane.b32.xlu0 %v3968, 16
    %v4126 = vpop.permute.xlu0 %4125
    %4133 = vrot.lane.b32.xlu0 %v4022, 24
    %v4134 = vpop.permute.xlu0 %4133
    %4135 = vrot.lane.b32.xlu0 %v4025, 24
    %v4136 = vpop.permute.xlu0 %4135
    %4137 = vrot.lane.b32.xlu0 %v4030, 24
    %v4138 = vpop.permute.xlu0 %4137
    %v4142 = vsel %vm493, %v3836, %v4110
    %v4143 = vsel %vm493, %v3839, %v4112
    %v4144 = vsel %vm493, %v3844, %v4114
    %v4145 = vsel %vm1855, %v4142, %v4122
    %v4146 = vsel %vm1855, %v4143, %v4124
    %v4147 = vsel %vm1855, %v4144, %v4126
    %v4148 = vsel %vm1026, %v4145, %v4134
    %v4149 = vsel %vm1026, %v4146, %v4136
    %v4150 = vsel %vm1026, %v4147, %v4138
    %v4151 = vpack.c.bf16 %v4091, %v4090
    %v4152 = vpack.c.bf16 %v4148, %v4092
    %v4153 = vpack.c.bf16 %v4150, %v4149
    %s4154 = scalar_lea.vmem %s9, 16
    %v4155 = vld [vmem:[%s4154] sm:$0xf]
    %v4156 = vld [vmem:[%s4154 + $0x4] sm:$0xf]
    %v4157 = vld [vmem:[%s4154 + $0x8] sm:$0xf]
    %v4158 = vld [vmem:[%s4154 + $0xc] sm:$0xf]
    %s4159 = scalar_lea.vmem %s10, 1
    %v4160 = vld [vmem:[%s4159] sm:$0x1]
    %v4162 = vlaneseq
    %v4163 = vshrl.u32 %v4162, 7
    %v4164 = vsub.s32 0, %v4163
    %v4165 = vrot.slane %v4160, %v4164
    %v4171 = vunpack.c.l.b16 %v4155
    %v4172 = vunpack.c.l.b16 %v4156
    %v4173 = vunpack.c.l.b16 %v4157
    %v4174 = vunpack.c.l.b16 %v4158
    %v4175 = vpack.c.b16 %v4172, %v4171
    %v4176 = vpack.c.b16 %v4174, %v4173
    %v4180 = vsel %vm259, %v4151, 0
    %v4183 = vsel %vm259, %v4152, 0
    %v4186 = vsel %vm259, %v4153, 0
    %4188 = vmatprep.subr.bf16.mxu0 0
    %4189 = vmatpush1.bf16.msra.mxu0 0
    %4190 = vmatprep.subr.bf16.mxu0 0
    %4191 = vmatpush1.bf16.msra.mxu0 0
    %4192 = vmatprep.subr.bf16.mxu0 0
    %4193 = vmatpush1.bf16.msra.mxu0 0
    %4194 = vmatprep.subr.bf16.mxu0 0
    %4195 = vmatpush1.bf16.msra.mxu0 0
    %4196 = vmatprep.subr.bf16.mxu0 0
    %4197 = vmatpush1.bf16.msra.mxu0 0
    %4198 = vmatprep.subr.bf16.mxu0 0
    %4199 = vmatpush1.bf16.msra.mxu0 0
    %4200 = vmatprep.subr.bf16.mxu0 0
    %4201 = vmatpush1.bf16.msra.mxu0 %v4176
    %4202 = vmatprep.subr.bf16.mxu0 0
    %4203 = vmatpush1.bf16.msra.mxu0 %v4175
    %4204 = vmatprep.subr.bf16.mxu0 0
    %4205 = vmatpush2.bf16.msra.mxu0 0
    %4206 = vmatprep.subr.bf16.mxu0 0
    %4207 = vmatpush2.bf16.msra.mxu0 0
    %4208 = vmatprep.subr.bf16.mxu0 0
    %4209 = vmatpush2.bf16.msra.mxu0 0
    %4210 = vmatprep.subr.bf16.mxu0 0
    %4211 = vmatpush2.bf16.msra.mxu0 0
    %4212 = vmatprep.subr.bf16.mxu0 0
    %4213 = vmatpush2.bf16.msra.mxu0 0
    %4214 = vmatprep.subr.bf16.mxu0 0
    %4215 = vmatpush2.bf16.msra.mxu0 0
    %4216 = vmatprep.subr.bf16.mxu0 0
    %4217 = vmatpush2.bf16.msra.mxu0 0
    %4218 = vmatprep.subr.bf16.mxu0 0
    %4219 = vmatpush2.bf16.msra.mxu0 0
    %4220 = vmatprep.mubr.bf16.mxu0 0
    %4221 = vmatmul.mubr.bf16.gmra.mxu0 %v4180
    %v4222 = vpop.f32.mrf.mxu0
    %v4223 = vadd.f32 %v4165, %v4222
    %v4224 = vpop.f32.mrf.mxu0
    %v4225 = vpop.f32.mrf.mxu0
    %v4226 = vadd.f32 %v4165, %v4225
    %v4227 = vpop.f32.mrf.mxu0
    %4228 = vmatprep.mubr.bf16.mxu0 0
    %4229 = vmatmul.mubr.bf16.gmra.mxu0 %v4183
    %v4230 = vpop.f32.mrf.mxu0
    %v4231 = vadd.f32 %v4165, %v4230
    %v4232 = vpop.f32.mrf.mxu0
    %v4233 = vpop.f32.mrf.mxu0
    %v4234 = vadd.f32 %v4165, %v4233
    %v4235 = vpop.f32.mrf.mxu0
    %4236 = vmatprep.mubr.bf16.mxu0 0
    %4237 = vmatmul.mubr.bf16.gmra.mxu0 %v4186
    %v4238 = vpop.f32.mrf.mxu0
    %v4239 = vadd.f32 %v4165, %v4238
    %v4240 = vpop.f32.mrf.mxu0
    %v4241 = vpop.f32.mrf.mxu0
    %v4242 = vadd.f32 %v4165, %v4241
    %v4243 = vpop.f32.mrf.mxu0
    %4244 = vdwg.mxu0
    %v4245 = vadd.f32 %v2484, %v4223
    %v4246 = vadd.f32 %v2485, %v4226
    %v4247 = vadd.f32 %v2486, %v4231
    %v4248 = vadd.f32 %v2487, %v4234
    %v4249 = vadd.f32 %v2488, %v4239
    %v4250 = vadd.f32 %v2489, %v4242
    %s4251 = scalar_lea.vmem %s11, 1
    %v4252 = vld [vmem:[%s4251] sm:$0x1]
    %s4253 = scalar_lea.vmem [#allocation11], 1
    %v4254 = vld [vmem:[%s4253] sm:$0x1]
    %v4255 = vsel %vm259, %v4245, 0.0
    %4256 = vadd.xlane.f32.xlu0 %v4255
    %v4257 = vpop.xlane.xlu0 %4256
    %v4258 = vsel %vm259, %v4246, 0.0
    %4259 = vadd.xlane.f32.xlu0 %v4258
    %v4260 = vpop.xlane.xlu0 %4259
    %v4261 = vsel %vm259, %v4247, 0.0
    %4262 = vadd.xlane.f32.xlu0 %v4261
    %v4263 = vpop.xlane.xlu0 %4262
    %v4264 = vsel %vm259, %v4248, 0.0
    %4265 = vadd.xlane.f32.xlu0 %v4264
    %v4266 = vpop.xlane.xlu0 %4265
    %v4267 = vsel %vm259, %v4249, 0.0
    %4268 = vadd.xlane.f32.xlu0 %v4267
    %v4269 = vpop.xlane.xlu0 %4268
    %v4270 = vsel %vm259, %v4250, 0.0
    %4271 = vadd.xlane.f32.xlu0 %v4270
    %v4272 = vpop.xlane.xlu0 %4271
    %v4273 = vmul.f32 %v4257, %v278
    %v4274 = vmul.f32 %v4260, %v278
    %v4275 = vmul.f32 %v4263, %v278
    %v4276 = vmul.f32 %v4266, %v278
    %v4277 = vmul.f32 %v4269, %v278
    %v4278 = vmul.f32 %v4272, %v278
    %v4279 = vsub.f32 %v4245, %v4273
    %v4280 = vsub.f32 %v4246, %v4274
    %v4281 = vsub.f32 %v4247, %v4275
    %v4282 = vsub.f32 %v4248, %v4276
    %v4283 = vsub.f32 %v4249, %v4277
    %v4284 = vsub.f32 %v4250, %v4278
    %v4285 = vmul.f32 %v4279, %v4279
    %v4286 = vmul.f32 %v4280, %v4280
    %v4287 = vmul.f32 %v4281, %v4281
    %v4288 = vmul.f32 %v4282, %v4282
    %v4289 = vmul.f32 %v4283, %v4283
    %v4290 = vmul.f32 %v4284, %v4284
    %v4291 = vsel %vm259, %v4285, 0.0
    %4292 = vadd.xlane.f32.xlu0 %v4291
    %v4293 = vpop.xlane.xlu0 %4292
    %v4294 = vsel %vm259, %v4286, 0.0
    %4295 = vadd.xlane.f32.xlu0 %v4294
    %v4296 = vpop.xlane.xlu0 %4295
    %v4297 = vsel %vm259, %v4287, 0.0
    %4298 = vadd.xlane.f32.xlu0 %v4297
    %v4299 = vpop.xlane.xlu0 %4298
    %v4300 = vsel %vm259, %v4288, 0.0
    %4301 = vadd.xlane.f32.xlu0 %v4300
    %v4302 = vpop.xlane.xlu0 %4301
    %v4303 = vsel %vm259, %v4289, 0.0
    %4304 = vadd.xlane.f32.xlu0 %v4303
    %v4305 = vpop.xlane.xlu0 %4304
    %v4306 = vsel %vm259, %v4290, 0.0
    %4307 = vadd.xlane.f32.xlu0 %v4306
    %v4308 = vpop.xlane.xlu0 %4307
    %v4309 = vmul.f32 %v4293, %v278
    %v4310 = vmul.f32 %v4296, %v278
    %v4311 = vmul.f32 %v4299, %v278
    %v4312 = vmul.f32 %v4302, %v278
    %v4313 = vmul.f32 %v4305, %v278
    %v4314 = vmul.f32 %v4308, %v278
    %v4315 = vadd.f32 %v4309, 1e-06
    %v4316 = vadd.f32 %v4310, 1e-06
    %v4317 = vadd.f32 %v4311, 1e-06
    %v4318 = vadd.f32 %v4312, 1e-06
    %v4319 = vadd.f32 %v4313, 1e-06
    %v4320 = vadd.f32 %v4314, 1e-06
    %v4321 = vrsqrt.pop %v4315
    %v4322 = vrsqrt.pop %v4316
    %v4323 = vrsqrt.pop %v4317
    %v4324 = vrsqrt.pop %v4318
    %v4325 = vrsqrt.pop %v4319
    %v4326 = vrsqrt.pop %v4320
    %v4327 = vmul.f32 %v4279, %v4321
    %v4328 = vmul.f32 %v4280, %v4322
    %v4329 = vmul.f32 %v4281, %v4323
    %v4330 = vmul.f32 %v4282, %v4324
    %v4331 = vmul.f32 %v4283, %v4325
    %v4332 = vmul.f32 %v4284, %v4326
    %v4334 = vlaneseq
    %v4335 = vshrl.u32 %v4334, 7
    %v4336 = vsub.s32 0, %v4335
    %v4337 = vrot.slane %v4252, %v4336
    %v4339 = vmul.f32 %v4327, %v4337
    %v4340 = vmul.f32 %v4328, %v4337
    %v4341 = vmul.f32 %v4329, %v4337
    %v4342 = vmul.f32 %v4330, %v4337
    %v4343 = vmul.f32 %v4331, %v4337
    %v4344 = vmul.f32 %v4332, %v4337
    %v4346 = vlaneseq
    %v4347 = vshrl.u32 %v4346, 7
    %v4348 = vsub.s32 0, %v4347
    %v4349 = vrot.slane %v4254, %v4348
    %v4351 = vadd.f32 %v4339, %v4349
    %v4352 = vadd.f32 %v4340, %v4349
    %v4353 = vadd.f32 %v4341, %v4349
    %v4354 = vadd.f32 %v4342, %v4349
    %v4355 = vadd.f32 %v4343, %v4349
    %v4356 = vadd.f32 %v4344, %v4349
    %v4357 = vpack.c.bf16 %v4352, %v4351
    %v4358 = vpack.c.bf16 %v4354, %v4353
    %v4359 = vpack.c.bf16 %v4356, %v4355
    %s4360 = scalar_lea.vmem %s13, 16
    %v4361 = vld [vmem:[%s4360] sm:$0xf]
    %v4362 = vld [vmem:[%s4360 + $0x4] sm:$0xf]
    %v4363 = vld [vmem:[%s4360 + $0x8] sm:$0xf]
    %v4364 = vld [vmem:[%s4360 + $0xc] sm:$0xf]
    %s4365 = scalar_lea.vmem %s14, 1
    %v4366 = vld [vmem:[%s4365] sm:$0x1]
    %v4368 = vlaneseq
    %v4369 = vshrl.u32 %v4368, 7
    %v4370 = vsub.s32 0, %v4369
    %v4371 = vrot.slane %v4366, %v4370
    %v4377 = vunpack.c.l.b16 %v4361
    %v4378 = vunpack.c.l.b16 %v4362
    %v4379 = vunpack.c.l.b16 %v4363
    %v4380 = vunpack.c.l.b16 %v4364
    %v4381 = vpack.c.b16 %v4378, %v4377
    %v4382 = vpack.c.b16 %v4380, %v4379
    %v4386 = vsel %vm259, %v4357, 0
    %v4389 = vsel %vm259, %v4358, 0
    %v4392 = vsel %vm259, %v4359, 0
    %4394 = vmatprep.subr.bf16.mxu0 0
    %4395 = vmatpush1.bf16.msra.mxu0 0
    %4396 = vmatprep.subr.bf16.mxu0 0
    %4397 = vmatpush1.bf16.msra.mxu0 0
    %4398 = vmatprep.subr.bf16.mxu0 0
    %4399 = vmatpush1.bf16.msra.mxu0 0
    %4400 = vmatprep.subr.bf16.mxu0 0
    %4401 = vmatpush1.bf16.msra.mxu0 0
    %4402 = vmatprep.subr.bf16.mxu0 0
    %4403 = vmatpush1.bf16.msra.mxu0 0
    %4404 = vmatprep.subr.bf16.mxu0 0
    %4405 = vmatpush1.bf16.msra.mxu0 0
    %4406 = vmatprep.subr.bf16.mxu0 0
    %4407 = vmatpush1.bf16.msra.mxu0 %v4382
    %4408 = vmatprep.subr.bf16.mxu0 0
    %4409 = vmatpush1.bf16.msra.mxu0 %v4381
    %4410 = vmatprep.subr.bf16.mxu0 0
    %4411 = vmatpush2.bf16.msra.mxu0 0
    %4412 = vmatprep.subr.bf16.mxu0 0
    %4413 = vmatpush2.bf16.msra.mxu0 0
    %4414 = vmatprep.subr.bf16.mxu0 0
    %4415 = vmatpush2.bf16.msra.mxu0 0
    %4416 = vmatprep.subr.bf16.mxu0 0
    %4417 = vmatpush2.bf16.msra.mxu0 0
    %4418 = vmatprep.subr.bf16.mxu0 0
    %4419 = vmatpush2.bf16.msra.mxu0 0
    %4420 = vmatprep.subr.bf16.mxu0 0
    %4421 = vmatpush2.bf16.msra.mxu0 0
    %4422 = vmatprep.subr.bf16.mxu0 0
    %4423 = vmatpush2.bf16.msra.mxu0 0
    %4424 = vmatprep.subr.bf16.mxu0 0
    %4425 = vmatpush2.bf16.msra.mxu0 0
    %4426 = vmatprep.mubr.bf16.mxu0 0
    %4427 = vmatmul.mubr.bf16.gmra.mxu0 %v4386
    %v4428 = vpop.f32.mrf.mxu0
    %v4429 = vadd.f32 %v4371, %v4428
    %v4430 = vpop.f32.mrf.mxu0
    %v4431 = vpop.f32.mrf.mxu0
    %v4432 = vadd.f32 %v4371, %v4431
    %v4433 = vpop.f32.mrf.mxu0
    %4434 = vmatprep.mubr.bf16.mxu0 0
    %4435 = vmatmul.mubr.bf16.gmra.mxu0 %v4389
    %v4436 = vpop.f32.mrf.mxu0
    %v4437 = vadd.f32 %v4371, %v4436
    %v4438 = vpop.f32.mrf.mxu0
    %v4439 = vpop.f32.mrf.mxu0
    %v4440 = vadd.f32 %v4371, %v4439
    %v4441 = vpop.f32.mrf.mxu0
    %4442 = vmatprep.mubr.bf16.mxu0 0
    %4443 = vmatmul.mubr.bf16.gmra.mxu0 %v4392
    %v4444 = vpop.f32.mrf.mxu0
    %v4445 = vadd.f32 %v4371, %v4444
    %v4446 = vpop.f32.mrf.mxu0
    %v4447 = vpop.f32.mrf.mxu0
    %v4448 = vadd.f32 %v4371, %v4447
    %v4449 = vpop.f32.mrf.mxu0
    %4450 = vdwg.mxu0
    %v4451 = vmul.f32 %v4429, 0.5
    %v4452 = vmul.f32 %v4432, 0.5
    %v4453 = vmul.f32 %v4437, 0.5
    %v4454 = vmul.f32 %v4440, 0.5
    %v4455 = vmul.f32 %v4445, 0.5
    %v4456 = vmul.f32 %v4448, 0.5
    %v4457 = vmul.f32 %v4429, 0.70710677
    %v4458 = vmul.f32 %v4432, 0.70710677
    %v4459 = vmul.f32 %v4437, 0.70710677
    %v4460 = vmul.f32 %v4440, 0.70710677
    %v4461 = vmul.f32 %v4445, 0.70710677
    %v4462 = vmul.f32 %v4448, 0.70710677
    %v4463 = vand.u32 2147483647, %v4457
    %v4464 = vand.u32 2147483647, %v4458
    %v4465 = vand.u32 2147483647, %v4459
    %v4466 = vand.u32 2147483647, %v4460
    %v4467 = vand.u32 2147483647, %v4461
    %v4468 = vand.u32 2147483647, %v4462
    %v4469 = vmul.f32 %v4463, 0.3275911
    %v4470 = vmul.f32 %v4464, 0.3275911
    %v4471 = vmul.f32 %v4465, 0.3275911
    %v4472 = vmul.f32 %v4466, 0.3275911
    %v4473 = vmul.f32 %v4467, 0.3275911
    %v4474 = vmul.f32 %v4468, 0.3275911
    %v4475 = vadd.f32 %v4469, 1.0
    %v4476 = vadd.f32 %v4470, 1.0
    %v4477 = vadd.f32 %v4471, 1.0
    %v4478 = vadd.f32 %v4472, 1.0
    %v4479 = vadd.f32 %v4473, 1.0
    %v4480 = vadd.f32 %v4474, 1.0
    %v4481 = vrcp.pop %v4475
    %v4482 = vrcp.pop %v4476
    %v4483 = vrcp.pop %v4477
    %v4484 = vrcp.pop %v4478
    %v4485 = vrcp.pop %v4479
    %v4486 = vrcp.pop %v4480
    %v4487 = vmul.f32 %v4481, 1.0614054
    %v4488 = vmul.f32 %v4482, 1.0614054
    %v4489 = vmul.f32 %v4483, 1.0614054
    %v4490 = vmul.f32 %v4484, 1.0614054
    %v4491 = vmul.f32 %v4485, 1.0614054
    %v4492 = vmul.f32 %v4486, 1.0614054
    %v4493 = vadd.f32 %v4487, -1.4531521
    %v4494 = vadd.f32 %v4488, -1.4531521
    %v4495 = vadd.f32 %v4489, -1.4531521
    %v4496 = vadd.f32 %v4490, -1.4531521
    %v4497 = vadd.f32 %v4491, -1.4531521
    %v4498 = vadd.f32 %v4492, -1.4531521
    %v4499 = vmul.f32 %v4481, %v4493
    %v4500 = vmul.f32 %v4482, %v4494
    %v4501 = vmul.f32 %v4483, %v4495
    %v4502 = vmul.f32 %v4484, %v4496
    %v4503 = vmul.f32 %v4485, %v4497
    %v4504 = vmul.f32 %v4486, %v4498
    %v4505 = vadd.f32 %v4499, 1.4214138
    %v4506 = vadd.f32 %v4500, 1.4214138
    %v4507 = vadd.f32 %v4501, 1.4214138
    %v4508 = vadd.f32 %v4502, 1.4214138
    %v4509 = vadd.f32 %v4503, 1.4214138
    %v4510 = vadd.f32 %v4504, 1.4214138
    %v4511 = vmul.f32 %v4481, %v4505
    %v4512 = vmul.f32 %v4482, %v4506
    %v4513 = vmul.f32 %v4483, %v4507
    %v4514 = vmul.f32 %v4484, %v4508
    %v4515 = vmul.f32 %v4485, %v4509
    %v4516 = vmul.f32 %v4486, %v4510
    %v4517 = vadd.f32 %v4511, -0.28449672
    %v4518 = vadd.f32 %v4512, -0.28449672
    %v4519 = vadd.f32 %v4513, -0.28449672
    %v4520 = vadd.f32 %v4514, -0.28449672
    %v4521 = vadd.f32 %v4515, -0.28449672
    %v4522 = vadd.f32 %v4516, -0.28449672
    %v4523 = vmul.f32 %v4481, %v4517
    %v4524 = vmul.f32 %v4482, %v4518
    %v4525 = vmul.f32 %v4483, %v4519
    %v4526 = vmul.f32 %v4484, %v4520
    %v4527 = vmul.f32 %v4485, %v4521
    %v4528 = vmul.f32 %v4486, %v4522
    %v4529 = vadd.f32 %v4523, 0.2548296
    %v4530 = vadd.f32 %v4524, 0.2548296
    %v4531 = vadd.f32 %v4525, 0.2548296
    %v4532 = vadd.f32 %v4526, 0.2548296
    %v4533 = vadd.f32 %v4527, 0.2548296
    %v4534 = vadd.f32 %v4528, 0.2548296
    %v4535 = vmul.f32 %v4481, %v4529
    %v4536 = vmul.f32 %v4482, %v4530
    %v4537 = vmul.f32 %v4483, %v4531
    %v4538 = vmul.f32 %v4484, %v4532
    %v4539 = vmul.f32 %v4485, %v4533
    %v4540 = vmul.f32 %v4486, %v4534
    %v4541 = vsub.f32 0.0, %v4463
    %v4542 = vsub.f32 0.0, %v4464
    %v4543 = vsub.f32 0.0, %v4465
    %v4544 = vsub.f32 0.0, %v4466
    %v4545 = vsub.f32 0.0, %v4467
    %v4546 = vsub.f32 0.0, %v4468
    %v4547 = vmul.f32 %v4541, %v4463
    %v4548 = vmul.f32 %v4542, %v4464
    %v4549 = vmul.f32 %v4543, %v4465
    %v4550 = vmul.f32 %v4544, %v4466
    %v4551 = vmul.f32 %v4545, %v4467
    %v4552 = vmul.f32 %v4546, %v4468
    %v4553 = vmul.f32 %v4547, 1.442695
    %v4554 = vpow.pop %v4553
    %v4555 = vmul.f32 %v4548, 1.442695
    %v4556 = vpow.pop %v4555
    %v4557 = vmul.f32 %v4549, 1.442695
    %v4558 = vpow.pop %v4557
    %v4559 = vmul.f32 %v4550, 1.442695
    %v4560 = vpow.pop %v4559
    %v4561 = vmul.f32 %v4551, 1.442695
    %v4562 = vpow.pop %v4561
    %v4563 = vmul.f32 %v4552, 1.442695
    %v4564 = vpow.pop %v4563
    %v4565 = vmul.f32 %v4535, %v4554
    %v4566 = vmul.f32 %v4536, %v4556
    %v4567 = vmul.f32 %v4537, %v4558
    %v4568 = vmul.f32 %v4538, %v4560
    %v4569 = vmul.f32 %v4539, %v4562
    %v4570 = vmul.f32 %v4540, %v4564
    %v4571 = vsub.f32 1.0, %v4565
    %v4572 = vsub.f32 1.0, %v4566
    %v4573 = vsub.f32 1.0, %v4567
    %v4574 = vsub.f32 1.0, %v4568
    %v4575 = vsub.f32 1.0, %v4569
    %v4576 = vsub.f32 1.0, %v4570
    %vm4577 = vcmp.ge.f32.partialorder %v4457, 0.0
    %vm4578 = vcmp.ge.f32.partialorder %v4458, 0.0
    %vm4579 = vcmp.ge.f32.partialorder %v4459, 0.0
    %vm4580 = vcmp.ge.f32.partialorder %v4460, 0.0
    %vm4581 = vcmp.ge.f32.partialorder %v4461, 0.0
    %vm4582 = vcmp.ge.f32.partialorder %v4462, 0.0
    %v4583 = vsub.f32 0.0, %v4571
    %v4584 = vsub.f32 0.0, %v4572
    %v4585 = vsub.f32 0.0, %v4573
    %v4586 = vsub.f32 0.0, %v4574
    %v4587 = vsub.f32 0.0, %v4575
    %v4588 = vsub.f32 0.0, %v4576
    %v4589 = vsel %vm4577, %v4571, %v4583
    %v4590 = vsel %vm4578, %v4572, %v4584
    %v4591 = vsel %vm4579, %v4573, %v4585
    %v4592 = vsel %vm4580, %v4574, %v4586
    %v4593 = vsel %vm4581, %v4575, %v4587
    %v4594 = vsel %vm4582, %v4576, %v4588
    %v4595 = vadd.f32 %v4589, 1.0
    %v4596 = vadd.f32 %v4590, 1.0
    %v4597 = vadd.f32 %v4591, 1.0
    %v4598 = vadd.f32 %v4592, 1.0
    %v4599 = vadd.f32 %v4593, 1.0
    %v4600 = vadd.f32 %v4594, 1.0
    %v4601 = vmul.f32 %v4451, %v4595
    %v4602 = vmul.f32 %v4452, %v4596
    %v4603 = vmul.f32 %v4453, %v4597
    %v4604 = vmul.f32 %v4454, %v4598
    %v4605 = vmul.f32 %v4455, %v4599
    %v4606 = vmul.f32 %v4456, %v4600
    %v4607 = vpack.c.bf16 %v4602, %v4601
    %v4608 = vpack.c.bf16 %v4604, %v4603
    %v4609 = vpack.c.bf16 %v4606, %v4605
    %s4610 = scalar_lea.vmem %s15, 32
    %v4611 = vld [vmem:[%s4610] sm:$0xf]
    %v4612 = vld [vmem:[%s4610 + $0x4] sm:$0xf]
    %v4613 = vld [vmem:[%s4610 + $0x8] sm:$0xf]
    %v4614 = vld [vmem:[%s4610 + $0xc] sm:$0xf]
    %v4615 = vld [vmem:[%s4610 + $0x10] sm:$0xf]
    %v4616 = vld [vmem:[%s4610 + $0x14] sm:$0xf]
    %v4617 = vld [vmem:[%s4610 + $0x18] sm:$0xf]
    %v4618 = vld [vmem:[%s4610 + $0x1c] sm:$0xf]
    %v4627 = vunpack.c.l.b16 %v4611
    %v4628 = vunpack.c.l.b16 %v4612
    %v4629 = vunpack.c.l.b16 %v4613
    %v4630 = vunpack.c.l.b16 %v4614
    %v4631 = vunpack.c.l.b16 %v4615
    %v4632 = vunpack.c.l.b16 %v4616
    %v4633 = vunpack.c.l.b16 %v4617
    %v4634 = vunpack.c.l.b16 %v4618
    %v4635 = vpack.c.b16 %v4628, %v4627
    %v4636 = vpack.c.b16 %v4630, %v4629
    %v4637 = vpack.c.b16 %v4632, %v4631
    %v4638 = vpack.c.b16 %v4634, %v4633
    %v4644 = vsel %vm191, %v4607, 0
    %v4647 = vsel %vm191, %v4608, 0
    %v4650 = vsel %vm191, %v4609, 0
    %4652 = vmatprep.subr.bf16.mxu0 0
    %4653 = vmatpush1.bf16.msra.mxu0 0
    %4654 = vmatprep.subr.bf16.mxu0 0
    %4655 = vmatpush1.bf16.msra.mxu0 0
    %4656 = vmatprep.subr.bf16.mxu0 0
    %4657 = vmatpush1.bf16.msra.mxu0 0
    %4658 = vmatprep.subr.bf16.mxu0 0
    %4659 = vmatpush1.bf16.msra.mxu0 0
    %4660 = vmatprep.subr.bf16.mxu0 0
    %4661 = vmatpush1.bf16.msra.mxu0 %v4638
    %4662 = vmatprep.subr.bf16.mxu0 0
    %4663 = vmatpush1.bf16.msra.mxu0 %v4637
    %4664 = vmatprep.subr.bf16.mxu0 0
    %4665 = vmatpush1.bf16.msra.mxu0 %v4636
    %4666 = vmatprep.subr.bf16.mxu0 0
    %4667 = vmatpush1.bf16.msra.mxu0 %v4635
    %4668 = vmatprep.subr.bf16.mxu0 0
    %4669 = vmatpush2.bf16.msra.mxu0 0
    %4670 = vmatprep.subr.bf16.mxu0 0
    %4671 = vmatpush2.bf16.msra.mxu0 0
    %4672 = vmatprep.subr.bf16.mxu0 0
    %4673 = vmatpush2.bf16.msra.mxu0 0
    %4674 = vmatprep.subr.bf16.mxu0 0
    %4675 = vmatpush2.bf16.msra.mxu0 0
    %4676 = vmatprep.subr.bf16.mxu0 0
    %4677 = vmatpush2.bf16.msra.mxu0 0
    %4678 = vmatprep.subr.bf16.mxu0 0
    %4679 = vmatpush2.bf16.msra.mxu0 0
    %4680 = vmatprep.subr.bf16.mxu0 0
    %4681 = vmatpush2.bf16.msra.mxu0 0
    %4682 = vmatprep.subr.bf16.mxu0 0
    %4683 = vmatpush2.bf16.msra.mxu0 0
    %4684 = vmatprep.mubr.bf16.mxu0 0
    %4685 = vmatmul.mubr.bf16.gmra.mxu0 %v4644
    %v4686 = vpop.f32.mrf.mxu0
    %v4687 = vadd.f32 0.0, %v4686
    %v4688 = vpop.f32.mrf.mxu0
    %v4689 = vpop.f32.mrf.mxu0
    %v4690 = vadd.f32 0.0, %v4689
    %v4691 = vpop.f32.mrf.mxu0
    %4692 = vmatprep.mubr.bf16.mxu0 0
    %4693 = vmatmul.mubr.bf16.gmra.mxu0 %v4647
    %v4694 = vpop.f32.mrf.mxu0
    %v4695 = vadd.f32 0.0, %v4694
    %v4696 = vpop.f32.mrf.mxu0
    %v4697 = vpop.f32.mrf.mxu0
    %v4698 = vadd.f32 0.0, %v4697
    %v4699 = vpop.f32.mrf.mxu0
    %4700 = vmatprep.mubr.bf16.mxu0 0
    %4701 = vmatmul.mubr.bf16.gmra.mxu0 %v4650
    %v4702 = vpop.f32.mrf.mxu0
    %v4703 = vadd.f32 0.0, %v4702
    %v4704 = vpop.f32.mrf.mxu0
    %v4705 = vpop.f32.mrf.mxu0
    %v4706 = vadd.f32 0.0, %v4705
    %v4707 = vpop.f32.mrf.mxu0
    %4708 = vdwg.mxu0
    %v4709 = vadd.f32 %v4245, %v4687
    %v4710 = vadd.f32 %v4246, %v4690
    %v4711 = vadd.f32 %v4247, %v4695
    %v4712 = vadd.f32 %v4248, %v4698
    %v4713 = vadd.f32 %v4249, %v4703
    %v4714 = vadd.f32 %v4250, %v4706
    %s4715 = scalar_lea.vmem %s16, 1
    %v4716 = vld [vmem:[%s4715] sm:$0x1]
    %v4718 = vlaneseq
    %v4719 = vshrl.u32 %v4718, 7
    %v4720 = vsub.s32 0, %v4719
    %v4721 = vrot.slane %v4716, %v4720
    %v4723 = vadd.f32 %v4709, %v4721
    %v4724 = vadd.f32 %v4710, %v4721
    %v4725 = vadd.f32 %v4711, %v4721
    %v4726 = vadd.f32 %v4712, %v4721
    %v4727 = vadd.f32 %v4713, %v4721
    %v4728 = vadd.f32 %v4714, %v4721
    %v4729 = vld [vmem:[%s17] sm:$0x1]
    %v4730 = vld [vmem:[%s18] sm:$0x1]
    %v4731 = vsel %vm259, %v4723, 0.0
    %4732 = vadd.xlane.f32.xlu0 %v4731
    %v4733 = vpop.xlane.xlu0 %4732
    %v4734 = vsel %vm259, %v4724, 0.0
    %4735 = vadd.xlane.f32.xlu0 %v4734
    %v4736 = vpop.xlane.xlu0 %4735
    %v4737 = vsel %vm259, %v4725, 0.0
    %4738 = vadd.xlane.f32.xlu0 %v4737
    %v4739 = vpop.xlane.xlu0 %4738
    %v4740 = vsel %vm259, %v4726, 0.0
    %4741 = vadd.xlane.f32.xlu0 %v4740
    %v4742 = vpop.xlane.xlu0 %4741
    %v4743 = vsel %vm259, %v4727, 0.0
    %4744 = vadd.xlane.f32.xlu0 %v4743
    %v4745 = vpop.xlane.xlu0 %4744
    %v4746 = vsel %vm259, %v4728, 0.0
    %4747 = vadd.xlane.f32.xlu0 %v4746
    %v4748 = vpop.xlane.xlu0 %4747
    %v4749 = vmul.f32 %v4733, %v278
    %v4750 = vmul.f32 %v4736, %v278
    %v4751 = vmul.f32 %v4739, %v278
    %v4752 = vmul.f32 %v4742, %v278
    %v4753 = vmul.f32 %v4745, %v278
    %v4754 = vmul.f32 %v4748, %v278
    %v4755 = vsub.f32 %v4723, %v4749
    %v4756 = vsub.f32 %v4724, %v4750
    %v4757 = vsub.f32 %v4725, %v4751
    %v4758 = vsub.f32 %v4726, %v4752
    %v4759 = vsub.f32 %v4727, %v4753
    %v4760 = vsub.f32 %v4728, %v4754
    %v4761 = vmul.f32 %v4755, %v4755
    %v4762 = vmul.f32 %v4756, %v4756
    %v4763 = vmul.f32 %v4757, %v4757
    %v4764 = vmul.f32 %v4758, %v4758
    %v4765 = vmul.f32 %v4759, %v4759
    %v4766 = vmul.f32 %v4760, %v4760
    %v4767 = vsel %vm259, %v4761, 0.0
    %4768 = vadd.xlane.f32.xlu0 %v4767
    %v4769 = vpop.xlane.xlu0 %4768
    %v4770 = vsel %vm259, %v4762, 0.0
    %4771 = vadd.xlane.f32.xlu0 %v4770
    %v4772 = vpop.xlane.xlu0 %4771
    %v4773 = vsel %vm259, %v4763, 0.0
    %4774 = vadd.xlane.f32.xlu0 %v4773
    %v4775 = vpop.xlane.xlu0 %4774
    %v4776 = vsel %vm259, %v4764, 0.0
    %4777 = vadd.xlane.f32.xlu0 %v4776
    %v4778 = vpop.xlane.xlu0 %4777
    %v4779 = vsel %vm259, %v4765, 0.0
    %4780 = vadd.xlane.f32.xlu0 %v4779
    %v4781 = vpop.xlane.xlu0 %4780
    %v4782 = vsel %vm259, %v4766, 0.0
    %4783 = vadd.xlane.f32.xlu0 %v4782
    %v4784 = vpop.xlane.xlu0 %4783
    %v4785 = vmul.f32 %v4769, %v278
    %v4786 = vmul.f32 %v4772, %v278
    %v4787 = vmul.f32 %v4775, %v278
    %v4788 = vmul.f32 %v4778, %v278
    %v4789 = vmul.f32 %v4781, %v278
    %v4790 = vmul.f32 %v4784, %v278
    %v4791 = vadd.f32 %v4785, 1e-06
    %v4792 = vadd.f32 %v4786, 1e-06
    %v4793 = vadd.f32 %v4787, 1e-06
    %v4794 = vadd.f32 %v4788, 1e-06
    %v4795 = vadd.f32 %v4789, 1e-06
    %v4796 = vadd.f32 %v4790, 1e-06
    %v4797 = vrsqrt.pop %v4791
    %v4798 = vrsqrt.pop %v4792
    %v4799 = vrsqrt.pop %v4793
    %v4800 = vrsqrt.pop %v4794
    %v4801 = vrsqrt.pop %v4795
    %v4802 = vrsqrt.pop %v4796
    %v4803 = vmul.f32 %v4755, %v4797
    %v4804 = vmul.f32 %v4756, %v4798
    %v4805 = vmul.f32 %v4757, %v4799
    %v4806 = vmul.f32 %v4758, %v4800
    %v4807 = vmul.f32 %v4759, %v4801
    %v4808 = vmul.f32 %v4760, %v4802
    %v4810 = vlaneseq
    %v4811 = vshrl.u32 %v4810, 7
    %v4812 = vsub.s32 0, %v4811
    %v4813 = vrot.slane %v4729, %v4812
    %v4815 = vmul.f32 %v4803, %v4813
    %v4816 = vmul.f32 %v4804, %v4813
    %v4817 = vmul.f32 %v4805, %v4813
    %v4818 = vmul.f32 %v4806, %v4813
    %v4819 = vmul.f32 %v4807, %v4813
    %v4820 = vmul.f32 %v4808, %v4813
    %v4822 = vlaneseq
    %v4823 = vshrl.u32 %v4822, 7
    %v4824 = vsub.s32 0, %v4823
    %v4825 = vrot.slane %v4730, %v4824
    %v4827 = vadd.f32 %v4815, %v4825
    %v4828 = vadd.f32 %v4816, %v4825
    %v4829 = vadd.f32 %v4817, %v4825
    %v4830 = vadd.f32 %v4818, %v4825
    %v4831 = vadd.f32 %v4819, %v4825
    %v4832 = vadd.f32 %v4820, %v4825
    %4833 = vst.msk [vmem:[%s19] sm:$0xff] %vm259, %v4827
    %4834 = vst.msk [vmem:[%s19 + $0x8] sm:$0xff] %vm259, %v4828
    %4835 = vst.msk [vmem:[%s19 + $0x10] sm:$0xff] %vm259, %v4829
    %4836 = vst.msk [vmem:[%s19 + $0x18] sm:$0xff] %vm259, %v4830
    %4837 = vst.msk [vmem:[%s19 + $0x20] sm:$0xff] %vm259, %v4831
    %4838 = vst.msk [vmem:[%s19 + $0x28] sm:$0xff] %vm259, %v4832
    // Predicated region
    $region102: #{tpu_custom_call.1} parent=1 // pred_check
      _
    $region103: #{tpu_custom_call.1} parent=1 // pred_check_branch
      %4840 = sbr.rel (0) target = $region105
    $region104: #{tpu_custom_call.1} parent=1 // pred_region
      _
    $region105: #{tpu_custom_call.1} parent=1 // pred_fallthru
      _
    // Predicated region
    $region106: #{tpu_custom_call.1} parent=1 // pred_check
      _
    $region107: #{tpu_custom_call.1} parent=1 // pred_check_branch
      %4842 = sbr.rel (0) target = $region109
    $region108: #{tpu_custom_call.1} parent=1 // pred_region
      %s4844 = ssub.s32 6144, 6144
      %4845 = vsyncadd [#allocation4], %s4844
      %s4846 = sshll.u32 [#allocation13], 4
      %s4847 = int_to_ptr.vmem [resolvable:$true] %s4846
      %4852 = dma.vmem_to_hbm [thread:$0]  %s4847, 6144, %s20, [#allocation4], 128, 128, 8
    $region109: #{tpu_custom_call.1} parent=1 // pred_fallthru
      _
    // Predicated region
    $region110: #{tpu_custom_call.1} parent=1 // pred_check
      _
    $region111: #{tpu_custom_call.1} parent=1 // pred_check_branch
      %4854 = sbr.rel (0) target = $region113
    $region112: #{tpu_custom_call.1} parent=1 // pred_region
      _
    $region113: #{tpu_custom_call.1} parent=1 // pred_fallthru
      _
    // Predicated region
    $region114: #{tpu_custom_call.1} parent=1 // pred_check
      _
    $region115: #{tpu_custom_call.1} parent=1 // pred_check_branch
      %4856 = sbr.rel (0) target = $region117
    $region116: #{tpu_custom_call.1} parent=1 // pred_region
      %4857 = dma.done [#allocation4], 6144
    $region117: #{tpu_custom_call.1} parent=1 // pred_fallthru
      _
    %4858 = vsyncpa [#allocation3], 1
    %4859 = vsyncpa [#allocation6], 1
    %4860 = vsyncpa [#allocation9], 1
    %4861 = vsyncpa [#allocation12], 1
    %4862 = vsyncpa [#allocation4], 1

</llo_original>
